<compile_context>
chip_gen: v5e
topology: v5e:2x2
jax: 0.10.0
libtpu: 0.0.40
codegen_flags: <defaults>
</compile_context>

<pallas_src>
import functools
import math

import jax
import jax.numpy as jnp
from jax import lax
from jax.experimental import pallas as pl
from jax.experimental.pallas import tpu as pltpu

_RMS_EPS = 1.1920928955078125e-07   # torch.finfo(torch.float32).eps (nn.RMSNorm eps=None)
_INV_SQRT2 = 1.0 / math.sqrt(2.0)


# ----------------------------- kernel body ----------------------------------
def _linear(h, w_ref, b_ref):
    # w_ref: (fin, fout) pre-transposed; b_ref: (1, fout).
    # h @ W + b  ==  PyTorch  h @ W_pt.T + b.
    return jnp.dot(h, w_ref[...], preferred_element_type=jnp.float32) + b_ref[...]


def _rmsnorm(h, g_ref):
    # Hidden dim is never padded, so the mean is over exactly H true features.
    ms = jnp.mean(h * h, axis=-1, keepdims=True)
    return h * lax.rsqrt(ms + _RMS_EPS) * g_ref[...]


def _gelu(h):
    # nn.GELU() default approximate='none' -> exact erf formulation.
    return 0.5 * h * (1.0 + lax.erf(h * _INV_SQRT2))


def _sigmoid(z):
    # Exact identity sigmoid(z) = 0.5*(tanh(z/2)+1); tanh maps to the EUP slot.
    return 0.5 * (jnp.tanh(0.5 * z) + 1.0)


def _emulator_kernel(x_ref,
                     w1_ref, b1_ref, g1_ref,
                     w2_ref, b2_ref, g2_ref,
                     w3_ref, b3_ref, g3_ref,
                     w4_ref, b4_ref,
                     out_ref):
    x = x_ref[...]                                            # (bt, D)
    # Dropout(p=0.0) is the identity -> omitted.
    h = _gelu(_rmsnorm(_linear(x, w1_ref, b1_ref), g1_ref))   # Linear->RMSNorm->GELU
    h = _gelu(_rmsnorm(_linear(h, w2_ref, b2_ref), g2_ref))
    h = _gelu(_rmsnorm(_linear(h, w3_ref, b3_ref), g3_ref))
    out_ref[...] = _sigmoid(_linear(h, w4_ref, b4_ref))       # (bt, O)


# ----------------------------- wrapper ---------------------------------------
def _round_up(n, m):
    return ((n + m - 1) // m) * m


@functools.partial(jax.jit, static_argnames=("batch_tile",))
def emulator_forward(x, params, *, batch_tile=1024):
    """Pallas forward of Emulator. x: (B, D_in) f32 -> (B, D_out) f32."""
    (w1, b1, g1, w2, b2, g2, w3, b3, g3, w4, b4) = params
    B, D = x.shape
    O = w4.shape[1]

    # Batch tile: multiple of 8, capped at ~ceil(B/2) so the grid has >= 2
    # steps (lets "parallel" shard tiles across v7x's two TensorCores).
    bt = _round_up(min(batch_tile, max(pl.cdiv(B, 2), 8)), 8)
    grid = pl.cdiv(B, bt)           # partial last tile handled by OOB masking

    def full_spec(arr):
        nd = arr.ndim
        return pl.BlockSpec(arr.shape, lambda i, _nd=nd: (0,) * _nd)

    return pl.pallas_call(
        _emulator_kernel,
        out_shape=jax.ShapeDtypeStruct((B, O), jnp.float32),
        grid=(grid,),
        in_specs=[
            pl.BlockSpec((bt, D), lambda i: (i, 0)),           # x batch tile (full D)
            full_spec(w1), full_spec(b1), full_spec(g1),       # layer 1
            full_spec(w2), full_spec(b2), full_spec(g2),       # layer 2
            full_spec(w3), full_spec(b3), full_spec(g3),       # layer 3
            full_spec(w4), full_spec(b4),                      # output layer
        ],
        out_specs=pl.BlockSpec((bt, O), lambda i: (i, 0)),     # full O, no pad/slice
        compiler_params=pltpu.CompilerParams(
            dimension_semantics=("parallel",)),                # batch tiles independent
    )(x, w1, b1, g1, w2, b2, g2, w3, b3, g3, w4, b4)


# ----------------------------- params / reference ----------------------------
def init_params(key, input_dim, hidden_dim, output_dim):
    """PyTorch-style init. Linear: U(-1/sqrt(fan_in), +); RMSNorm weight: ones."""
    layer_dims = [(input_dim, hidden_dim), (hidden_dim, hidden_dim),
                  (hidden_dim, hidden_dim), (hidden_dim, output_dim)]
    ws, bs = [], []
    for fin, fout in layer_dims:
        key, kw, kb = jax.random.split(key, 3)
        bound = 1.0 / math.sqrt(fin)
        ws.append(jax.random.uniform(kw, (fin, fout), jnp.float32, -bound, bound))
        bs.append(jax.random.uniform(kb, (1, fout), jnp.float32, -bound, bound))
    ones_h = jnp.ones((1, hidden_dim), jnp.float32)
    w1, w2, w3, w4 = ws
    b1, b2, b3, b4 = bs
    return (w1, b1, ones_h, w2, b2, ones_h, w3, b3, ones_h, w4, b4)


def reference_forward(x, params):
    """Pure-JAX replica of the PyTorch Emulator forward (for correctness check)."""
    (w1, b1, g1, w2, b2, g2, w3, b3, g3, w4, b4) = params

    def rms(h, g):
        return h * lax.rsqrt(jnp.mean(h * h, axis=-1, keepdims=True) + _RMS_EPS) * g

    def gelu(h):
        return 0.5 * h * (1.0 + lax.erf(h * _INV_SQRT2))

    h = gelu(rms(x @ w1 + b1, g1))
    h = gelu(rms(h @ w2 + b2, g2))
    h = gelu(rms(h @ w3 + b3, g3))
    z = h @ w4 + b4
    return 1.0 / (1.0 + jnp.exp(-z))


# ----------------------------- main -------------------------------------------
if __name__ == "__main__":
    B = 200            # -> bt=104, grid=2 ("parallel" tiles + masked partial tail)
    INPUT_DIM = 17
    HIDDEN_DIM = 32
    OUTPUT_DIM = 10

    key = jax.random.PRNGKey(0)
    key, kx = jax.random.split(key)
    x = jax.random.normal(kx, (B, INPUT_DIM), jnp.float32)
    params = init_params(key, INPUT_DIM, HIDDEN_DIM, OUTPUT_DIM)

    out = jax.block_until_ready(emulator_forward(x, params))
    ref = jax.block_until_ready(reference_forward(x, params))

    assert out.shape == (B, OUTPUT_DIM) and out.dtype == jnp.float32
    assert jnp.allclose(out, ref, atol=2e-5, rtol=2e-5), (
        f"max abs diff {jnp.max(jnp.abs(out - ref))}")

    print("KERNEL_OK")
</pallas_src>

<mosaic_0001>
module attributes {stable_mosaic.version = 11 : i64} {
  func.func @_emulator_kernel(%arg0: i32, %arg1: memref<104x17xf32, #tpu.memory_space<vmem>>, %arg2: memref<17x32xf32, #tpu.memory_space<vmem>>, %arg3: memref<1x32xf32, #tpu.memory_space<vmem>>, %arg4: memref<1x32xf32, #tpu.memory_space<vmem>>, %arg5: memref<32x32xf32, #tpu.memory_space<vmem>>, %arg6: memref<1x32xf32, #tpu.memory_space<vmem>>, %arg7: memref<1x32xf32, #tpu.memory_space<vmem>>, %arg8: memref<32x32xf32, #tpu.memory_space<vmem>>, %arg9: memref<1x32xf32, #tpu.memory_space<vmem>>, %arg10: memref<1x32xf32, #tpu.memory_space<vmem>>, %arg11: memref<32x10xf32, #tpu.memory_space<vmem>>, %arg12: memref<1x10xf32, #tpu.memory_space<vmem>>, %arg13: memref<104x10xf32, #tpu.memory_space<vmem>>) attributes {dimension_semantics = [#tpu.dimension_semantics<parallel>], iteration_bounds = array<i64: 2>, scalar_prefetch = 0 : i64, scratch_operands = 0 : i64, tpu.core_type = #tpu.core_type<tc>, window_params = [{transform_indices = @transform_0, window_bounds = array<i64: 104, 17>}, {pipeline_mode = #tpu.pipeline_mode<synchronous>, transform_indices = @transform_1, window_bounds = array<i64: 17, 32>}, {pipeline_mode = #tpu.pipeline_mode<synchronous>, transform_indices = @transform_2, window_bounds = array<i64: 1, 32>}, {pipeline_mode = #tpu.pipeline_mode<synchronous>, transform_indices = @transform_3, window_bounds = array<i64: 1, 32>}, {pipeline_mode = #tpu.pipeline_mode<synchronous>, transform_indices = @transform_4, window_bounds = array<i64: 32, 32>}, {pipeline_mode = #tpu.pipeline_mode<synchronous>, transform_indices = @transform_5, window_bounds = array<i64: 1, 32>}, {pipeline_mode = #tpu.pipeline_mode<synchronous>, transform_indices = @transform_6, window_bounds = array<i64: 1, 32>}, {pipeline_mode = #tpu.pipeline_mode<synchronous>, transform_indices = @transform_7, window_bounds = array<i64: 32, 32>}, {pipeline_mode = #tpu.pipeline_mode<synchronous>, transform_indices = @transform_8, window_bounds = array<i64: 1, 32>}, {pipeline_mode = #tpu.pipeline_mode<synchronous>, transform_indices = @transform_9, window_bounds = array<i64: 1, 32>}, {pipeline_mode = #tpu.pipeline_mode<synchronous>, transform_indices = @transform_10, window_bounds = array<i64: 32, 10>}, {pipeline_mode = #tpu.pipeline_mode<synchronous>, transform_indices = @transform_11, window_bounds = array<i64: 1, 10>}, {transform_indices = @transform_12, window_bounds = array<i64: 104, 10>}]} {
    %c0 = arith.constant 0 : index
    %c0_0 = arith.constant 0 : index
    %0 = vector.load %arg1[%c0, %c0_0] : memref<104x17xf32, #tpu.memory_space<vmem>>, vector<104x17xf32>
    %c0_1 = arith.constant 0 : index
    %c0_2 = arith.constant 0 : index
    %1 = vector.load %arg2[%c0_1, %c0_2] : memref<17x32xf32, #tpu.memory_space<vmem>>, vector<17x32xf32>
    %cst = arith.constant dense<0.000000e+00> : vector<104x32xf32>
    %2 = tpu.matmul %0, %1, %cst {dimension_numbers = #tpu.dot_dimension_numbers<[1], [0], [0], [1], [0, 0, 1, 1], [], []>} : vector<104x17xf32>, vector<17x32xf32>, vector<104x32xf32> -> vector<104x32xf32>
    %c0_3 = arith.constant 0 : index
    %c0_4 = arith.constant 0 : index
    %3 = vector.load %arg3[%c0_3, %c0_4] : memref<1x32xf32, #tpu.memory_space<vmem>>, vector<1x32xf32>
    %4 = vector.broadcast %3 : vector<1x32xf32> to vector<104x32xf32>
    %5 = arith.addf %2, %4 : vector<104x32xf32>
    %6 = arith.mulf %5, %5 : vector<104x32xf32>
    %cst_5 = arith.constant dense<0.000000e+00> : vector<104xf32>
    %7 = vector.multi_reduction <add>, %6, %cst_5 [1] : vector<104x32xf32> to vector<104xf32>
    %8 = vector.shape_cast %7 : vector<104xf32> to vector<104x1xf32>
    %cst_6 = arith.constant 3.200000e+01 : f32
    %9 = vector.broadcast %cst_6 : f32 to vector<104x1xf32>
    %10 = arith.divf %8, %9 : vector<104x1xf32>
    %cst_7 = arith.constant 1.1920929E-7 : f32
    %11 = vector.broadcast %cst_7 : f32 to vector<104x1xf32>
    %12 = arith.addf %10, %11 : vector<104x1xf32>
    %13 = math.rsqrt %12 : vector<104x1xf32>
    %14 = vector.broadcast %13 : vector<104x1xf32> to vector<104x32xf32>
    %15 = arith.mulf %5, %14 : vector<104x32xf32>
    %c0_8 = arith.constant 0 : index
    %c0_9 = arith.constant 0 : index
    %16 = vector.load %arg4[%c0_8, %c0_9] : memref<1x32xf32, #tpu.memory_space<vmem>>, vector<1x32xf32>
    %17 = vector.broadcast %16 : vector<1x32xf32> to vector<104x32xf32>
    %18 = arith.mulf %15, %17 : vector<104x32xf32>
    %cst_10 = arith.constant 5.000000e-01 : f32
    %19 = vector.broadcast %cst_10 : f32 to vector<104x32xf32>
    %20 = arith.mulf %19, %18 : vector<104x32xf32>
    %cst_11 = arith.constant 0.707106769 : f32
    %21 = vector.broadcast %cst_11 : f32 to vector<104x32xf32>
    %22 = arith.mulf %18, %21 : vector<104x32xf32>
    %23 = math.erf %22 : vector<104x32xf32>
    %cst_12 = arith.constant 1.000000e+00 : f32
    %24 = vector.broadcast %cst_12 : f32 to vector<104x32xf32>
    %25 = arith.addf %24, %23 : vector<104x32xf32>
    %26 = arith.mulf %20, %25 : vector<104x32xf32>
    %c0_13 = arith.constant 0 : index
    %c0_14 = arith.constant 0 : index
    %27 = vector.load %arg5[%c0_13, %c0_14] : memref<32x32xf32, #tpu.memory_space<vmem>>, vector<32x32xf32>
    %cst_15 = arith.constant dense<0.000000e+00> : vector<104x32xf32>
    %28 = tpu.matmul %26, %27, %cst_15 {dimension_numbers = #tpu.dot_dimension_numbers<[1], [0], [0], [1], [0, 0, 1, 1], [], []>} : vector<104x32xf32>, vector<32x32xf32>, vector<104x32xf32> -> vector<104x32xf32>
    %c0_16 = arith.constant 0 : index
    %c0_17 = arith.constant 0 : index
    %29 = vector.load %arg6[%c0_16, %c0_17] : memref<1x32xf32, #tpu.memory_space<vmem>>, vector<1x32xf32>
    %30 = vector.broadcast %29 : vector<1x32xf32> to vector<104x32xf32>
    %31 = arith.addf %28, %30 : vector<104x32xf32>
    %32 = arith.mulf %31, %31 : vector<104x32xf32>
    %cst_18 = arith.constant dense<0.000000e+00> : vector<104xf32>
    %33 = vector.multi_reduction <add>, %32, %cst_18 [1] : vector<104x32xf32> to vector<104xf32>
    %34 = vector.shape_cast %33 : vector<104xf32> to vector<104x1xf32>
    %cst_19 = arith.constant 3.200000e+01 : f32
    %35 = vector.broadcast %cst_19 : f32 to vector<104x1xf32>
    %36 = arith.divf %34, %35 : vector<104x1xf32>
    %cst_20 = arith.constant 1.1920929E-7 : f32
    %37 = vector.broadcast %cst_20 : f32 to vector<104x1xf32>
    %38 = arith.addf %36, %37 : vector<104x1xf32>
    %39 = math.rsqrt %38 : vector<104x1xf32>
    %40 = vector.broadcast %39 : vector<104x1xf32> to vector<104x32xf32>
    %41 = arith.mulf %31, %40 : vector<104x32xf32>
    %c0_21 = arith.constant 0 : index
    %c0_22 = arith.constant 0 : index
    %42 = vector.load %arg7[%c0_21, %c0_22] : memref<1x32xf32, #tpu.memory_space<vmem>>, vector<1x32xf32>
    %43 = vector.broadcast %42 : vector<1x32xf32> to vector<104x32xf32>
    %44 = arith.mulf %41, %43 : vector<104x32xf32>
    %cst_23 = arith.constant 5.000000e-01 : f32
    %45 = vector.broadcast %cst_23 : f32 to vector<104x32xf32>
    %46 = arith.mulf %45, %44 : vector<104x32xf32>
    %cst_24 = arith.constant 0.707106769 : f32
    %47 = vector.broadcast %cst_24 : f32 to vector<104x32xf32>
    %48 = arith.mulf %44, %47 : vector<104x32xf32>
    %49 = math.erf %48 : vector<104x32xf32>
    %cst_25 = arith.constant 1.000000e+00 : f32
    %50 = vector.broadcast %cst_25 : f32 to vector<104x32xf32>
    %51 = arith.addf %50, %49 : vector<104x32xf32>
    %52 = arith.mulf %46, %51 : vector<104x32xf32>
    %c0_26 = arith.constant 0 : index
    %c0_27 = arith.constant 0 : index
    %53 = vector.load %arg8[%c0_26, %c0_27] : memref<32x32xf32, #tpu.memory_space<vmem>>, vector<32x32xf32>
    %cst_28 = arith.constant dense<0.000000e+00> : vector<104x32xf32>
    %54 = tpu.matmul %52, %53, %cst_28 {dimension_numbers = #tpu.dot_dimension_numbers<[1], [0], [0], [1], [0, 0, 1, 1], [], []>} : vector<104x32xf32>, vector<32x32xf32>, vector<104x32xf32> -> vector<104x32xf32>
    %c0_29 = arith.constant 0 : index
    %c0_30 = arith.constant 0 : index
    %55 = vector.load %arg9[%c0_29, %c0_30] : memref<1x32xf32, #tpu.memory_space<vmem>>, vector<1x32xf32>
    %56 = vector.broadcast %55 : vector<1x32xf32> to vector<104x32xf32>
    %57 = arith.addf %54, %56 : vector<104x32xf32>
    %58 = arith.mulf %57, %57 : vector<104x32xf32>
    %cst_31 = arith.constant dense<0.000000e+00> : vector<104xf32>
    %59 = vector.multi_reduction <add>, %58, %cst_31 [1] : vector<104x32xf32> to vector<104xf32>
    %60 = vector.shape_cast %59 : vector<104xf32> to vector<104x1xf32>
    %cst_32 = arith.constant 3.200000e+01 : f32
    %61 = vector.broadcast %cst_32 : f32 to vector<104x1xf32>
    %62 = arith.divf %60, %61 : vector<104x1xf32>
    %cst_33 = arith.constant 1.1920929E-7 : f32
    %63 = vector.broadcast %cst_33 : f32 to vector<104x1xf32>
    %64 = arith.addf %62, %63 : vector<104x1xf32>
    %65 = math.rsqrt %64 : vector<104x1xf32>
    %66 = vector.broadcast %65 : vector<104x1xf32> to vector<104x32xf32>
    %67 = arith.mulf %57, %66 : vector<104x32xf32>
    %c0_34 = arith.constant 0 : index
    %c0_35 = arith.constant 0 : index
    %68 = vector.load %arg10[%c0_34, %c0_35] : memref<1x32xf32, #tpu.memory_space<vmem>>, vector<1x32xf32>
    %69 = vector.broadcast %68 : vector<1x32xf32> to vector<104x32xf32>
    %70 = arith.mulf %67, %69 : vector<104x32xf32>
    %cst_36 = arith.constant 5.000000e-01 : f32
    %71 = vector.broadcast %cst_36 : f32 to vector<104x32xf32>
    %72 = arith.mulf %71, %70 : vector<104x32xf32>
    %cst_37 = arith.constant 0.707106769 : f32
    %73 = vector.broadcast %cst_37 : f32 to vector<104x32xf32>
    %74 = arith.mulf %70, %73 : vector<104x32xf32>
    %75 = math.erf %74 : vector<104x32xf32>
    %cst_38 = arith.constant 1.000000e+00 : f32
    %76 = vector.broadcast %cst_38 : f32 to vector<104x32xf32>
    %77 = arith.addf %76, %75 : vector<104x32xf32>
    %78 = arith.mulf %72, %77 : vector<104x32xf32>
    %c0_39 = arith.constant 0 : index
    %c0_40 = arith.constant 0 : index
    %79 = vector.load %arg11[%c0_39, %c0_40] : memref<32x10xf32, #tpu.memory_space<vmem>>, vector<32x10xf32>
    %cst_41 = arith.constant dense<0.000000e+00> : vector<104x10xf32>
    %80 = tpu.matmul %78, %79, %cst_41 {dimension_numbers = #tpu.dot_dimension_numbers<[1], [0], [0], [1], [0, 0, 1, 1], [], []>} : vector<104x32xf32>, vector<32x10xf32>, vector<104x10xf32> -> vector<104x10xf32>
    %c0_42 = arith.constant 0 : index
    %c0_43 = arith.constant 0 : index
    %81 = vector.load %arg12[%c0_42, %c0_43] : memref<1x10xf32, #tpu.memory_space<vmem>>, vector<1x10xf32>
    %82 = vector.broadcast %81 : vector<1x10xf32> to vector<104x10xf32>
    %83 = arith.addf %80, %82 : vector<104x10xf32>
    %cst_44 = arith.constant 5.000000e-01 : f32
    %84 = vector.broadcast %cst_44 : f32 to vector<104x10xf32>
    %85 = arith.mulf %84, %83 : vector<104x10xf32>
    %86 = math.tanh %85 : vector<104x10xf32>
    %cst_45 = arith.constant 1.000000e+00 : f32
    %87 = vector.broadcast %cst_45 : f32 to vector<104x10xf32>
    %88 = arith.addf %86, %87 : vector<104x10xf32>
    %cst_46 = arith.constant 5.000000e-01 : f32
    %89 = vector.broadcast %cst_46 : f32 to vector<104x10xf32>
    %90 = arith.mulf %89, %88 : vector<104x10xf32>
    %c0_47 = arith.constant 0 : index
    %c0_48 = arith.constant 0 : index
    %91 = vector.load %arg13[%c0_47, %c0_48] : memref<104x10xf32, #tpu.memory_space<vmem>>, vector<104x10xf32>
    tpu.vector_store %arg13[%c0_47, %c0_48], %90 {strides = array<i32>} : memref<104x10xf32, #tpu.memory_space<vmem>>, vector<104x10xf32>,
    return
  }
  func.func @transform_0(%arg0: i32) -> (i32, i32) {
    %c0_i32 = arith.constant 0 : i32
    %c0_i32_0 = arith.constant 0 : i32
    return %arg0, %c0_i32 : i32, i32
  }
  func.func @transform_1(%arg0: i32) -> (i32, i32) {
    %c0_i32 = arith.constant 0 : i32
    %c0_i32_0 = arith.constant 0 : i32
    %c0_i32_1 = arith.constant 0 : i32
    return %c0_i32, %c0_i32_0 : i32, i32
  }
  func.func @transform_2(%arg0: i32) -> (i32, i32) {
    %c0_i32 = arith.constant 0 : i32
    %c0_i32_0 = arith.constant 0 : i32
    %c0_i32_1 = arith.constant 0 : i32
    return %c0_i32, %c0_i32_0 : i32, i32
  }
  func.func @transform_3(%arg0: i32) -> (i32, i32) {
    %c0_i32 = arith.constant 0 : i32
    %c0_i32_0 = arith.constant 0 : i32
    %c0_i32_1 = arith.constant 0 : i32
    return %c0_i32, %c0_i32_0 : i32, i32
  }
  func.func @transform_4(%arg0: i32) -> (i32, i32) {
    %c0_i32 = arith.constant 0 : i32
    %c0_i32_0 = arith.constant 0 : i32
    %c0_i32_1 = arith.constant 0 : i32
    return %c0_i32, %c0_i32_0 : i32, i32
  }
  func.func @transform_5(%arg0: i32) -> (i32, i32) {
    %c0_i32 = arith.constant 0 : i32
    %c0_i32_0 = arith.constant 0 : i32
    %c0_i32_1 = arith.constant 0 : i32
    return %c0_i32, %c0_i32_0 : i32, i32
  }
  func.func @transform_6(%arg0: i32) -> (i32, i32) {
    %c0_i32 = arith.constant 0 : i32
    %c0_i32_0 = arith.constant 0 : i32
    %c0_i32_1 = arith.constant 0 : i32
    return %c0_i32, %c0_i32_0 : i32, i32
  }
  func.func @transform_7(%arg0: i32) -> (i32, i32) {
    %c0_i32 = arith.constant 0 : i32
    %c0_i32_0 = arith.constant 0 : i32
    %c0_i32_1 = arith.constant 0 : i32
    return %c0_i32, %c0_i32_0 : i32, i32
  }
  func.func @transform_8(%arg0: i32) -> (i32, i32) {
    %c0_i32 = arith.constant 0 : i32
    %c0_i32_0 = arith.constant 0 : i32
    %c0_i32_1 = arith.constant 0 : i32
    return %c0_i32, %c0_i32_0 : i32, i32
  }
  func.func @transform_9(%arg0: i32) -> (i32, i32) {
    %c0_i32 = arith.constant 0 : i32
    %c0_i32_0 = arith.constant 0 : i32
    %c0_i32_1 = arith.constant 0 : i32
    return %c0_i32, %c0_i32_0 : i32, i32
  }
  func.func @transform_10(%arg0: i32) -> (i32, i32) {
    %c0_i32 = arith.constant 0 : i32
    %c0_i32_0 = arith.constant 0 : i32
    %c0_i32_1 = arith.constant 0 : i32
    return %c0_i32, %c0_i32_0 : i32, i32
  }
  func.func @transform_11(%arg0: i32) -> (i32, i32) {
    %c0_i32 = arith.constant 0 : i32
    %c0_i32_0 = arith.constant 0 : i32
    %c0_i32_1 = arith.constant 0 : i32
    return %c0_i32, %c0_i32_0 : i32, i32
  }
  func.func @transform_12(%arg0: i32) -> (i32, i32) {
    %c0_i32 = arith.constant 0 : i32
    %c0_i32_0 = arith.constant 0 : i32
    return %arg0, %c0_i32 : i32, i32
  }
}

</mosaic_0001>

<llo_original>
// kernel: emulator_forward.1
$region0: #{emulator_forward.1}
  #allocation0 [shape = 'u32[]', space=smem, size = 0x4, offset = 0x4, fixed_abs, tag = 'smem constant byte address 0x4 - core index']
  #allocation1 [shape = 'u32[72,128]{1,0:T(1,128)}', space=vmem, size = 0x9000, scoped, tag = 'internal scratch']
  %s0 = inlined_call_operand.vmem [shape: f32[200,17], index: 0, kind: input, shape index: {}]
  %s1 = inlined_call_operand.vmem [shape: f32[17,32], index: 1, kind: input, shape index: {}]
  %s2 = inlined_call_operand.vmem [shape: f32[1,32], index: 2, kind: input, shape index: {}]
  %s3 = inlined_call_operand.vmem [shape: f32[1,32], index: 3, kind: input, shape index: {}]
  %s4 = inlined_call_operand.vmem [shape: f32[32,32], index: 4, kind: input, shape index: {}]
  %s5 = inlined_call_operand.vmem [shape: f32[1,32], index: 5, kind: input, shape index: {}]
  %s6 = inlined_call_operand.vmem [shape: f32[1,32], index: 6, kind: input, shape index: {}]
  %s7 = inlined_call_operand.vmem [shape: f32[32,32], index: 7, kind: input, shape index: {}]
  %s8 = inlined_call_operand.vmem [shape: f32[1,32], index: 8, kind: input, shape index: {}]
  %s9 = inlined_call_operand.vmem [shape: f32[1,32], index: 9, kind: input, shape index: {}]
  %s10 = inlined_call_operand.vmem [shape: f32[32,10], index: 10, kind: input, shape index: {}]
  %s11 = inlined_call_operand.vmem [shape: f32[1,10], index: 11, kind: input, shape index: {}]
  %s12 = inlined_call_operand.vmem [shape: f32[200,10], index: 12, kind: output, shape index: {}]
  %s13 = sld [smem:[#allocation0]]
  $region129: #{emulator_forward.1} parent=0
    _
  %s15 = ssub.s32 1, %s13
  %s16 = scalar_select 0, %s15, %s13
  $region1: #{emulator_forward.1} parent=0
    #allocation2 [shape = 'u8[106496]{0}', space=vmem, size = 0x1a000, scoped, tag = 'output window, operand 0']
    loop: start=0, step=1, limit=4
    $region2: #{emulator_forward.1} parent=1 // loop_pre_header
      _
    $region3: #{emulator_forward.1} parent=1 // loop_header
      %s18 = sphi 0, %s22
      %p19 = scmp.ge.s32.totalorder %s18, 4
      %s28 = sphi 0, %s30
      %s31 = sphi 0, %s28
      %s32 = sphi 0, %s31
      %s48 = sphi 0, %s32
      %s52 = sphi 0, %s52
      %s54 = sphi 0, %s52
      %s55 = sphi 0, %s54
      %s69 = sphi 0, %s55
      %s73 = sphi 0, %s73
      %s75 = sphi 0, %s73
      %s76 = sphi 0, %s75
      %s90 = sphi 0, %s76
      %s94 = sphi 0, %s94
      %s96 = sphi 0, %s94
      %s97 = sphi 0, %s96
      %s111 = sphi 0, %s97
      %s115 = sphi 0, %s115
      %s117 = sphi 0, %s115
      %s118 = sphi 0, %s117
      %s132 = sphi 0, %s118
      %s136 = sphi 0, %s136
      %s138 = sphi 0, %s136
      %s139 = sphi 0, %s138
      %s153 = sphi 0, %s139
      %s157 = sphi 0, %s157
      %s159 = sphi 0, %s157
      %s160 = sphi 0, %s159
      %s174 = sphi 0, %s160
      %s178 = sphi 0, %s178
      %s180 = sphi 0, %s178
      %s181 = sphi 0, %s180
      %s195 = sphi 0, %s181
      %s199 = sphi 0, %s199
      %s201 = sphi 0, %s199
      %s202 = sphi 0, %s201
      %s216 = sphi 0, %s202
      %s220 = sphi 0, %s220
      %s222 = sphi 0, %s220
      %s223 = sphi 0, %s222
      %s237 = sphi 0, %s223
      %s241 = sphi 0, %s241
      %s243 = sphi 0, %s241
      %s244 = sphi 0, %s243
      %s258 = sphi 0, %s244
      %s262 = sphi 0, %s262
      %s264 = sphi 0, %s262
      %s265 = sphi 0, %s264
      %s279 = sphi 0, %s265
      %s285 = sphi 0, %s287
      %s288 = sphi 0, %s285
      %s289 = sphi 0, %s288
      %s305 = sphi 0, %s289
    $region4: #{emulator_forward.1} parent=1 // loop_header_branch
      %21 = sbr.rel (%p19) target = $region8
    $region5: #{emulator_forward.1} parent=1 // loop_body
      %s23 = ssub.s32 %s18, 1
      %s24 = ssub.s32 %s18, 2
      %s25 = sadd.s32 %s18, 1
      %s26 = ssub.s32 %s18, %s25
      %p27 = scmp.eq.s32.totalorder %s26, 0
      %s29 = sadd.s32 %s28, 1
      %s30 = scalar_select %p27, %s28, %s29
      %p33 = pneg %p27
      %p34 = scmp.eq.s32.totalorder %s18, 1
      %p35 = por %p33, %p34
      %p36 = scmp.ne.s32.totalorder %s28, %s31
      %p37 = scmp.eq.s32.totalorder %s18, 0
      %p38 = por %p36, %p37
      %p39 = scmp.ne.s32.totalorder %s28, %s31
      %p40 = scmp.eq.s32.totalorder %s23, 1
      %p41 = por %p39, %p40
      %p42 = scmp.ne.s32.totalorder %s31, %s32
      %p43 = scmp.eq.s32.totalorder %s23, 0
      %p44 = por %p42, %p43
      %p45 = scmp.ne.s32.totalorder %s31, %s32
      %p46 = scmp.eq.s32.totalorder %s24, 1
      %p47 = por %p45, %p46
      %p49 = scmp.ne.s32.totalorder %s32, %s48
      %p50 = scmp.eq.s32.totalorder %s24, 0
      %p51 = por %p49, %p50
      %s53 = sadd.s32 %s52, 1
      %p56 = scmp.eq.s32.totalorder %s18, 1
      %p57 = scmp.ne.s32.totalorder %s52, %s54
      %p58 = scmp.eq.s32.totalorder %s18, 0
      %p59 = por %p57, %p58
      %p60 = scmp.ne.s32.totalorder %s52, %s54
      %p61 = scmp.eq.s32.totalorder %s23, 1
      %p62 = por %p60, %p61
      %p63 = scmp.ne.s32.totalorder %s54, %s55
      %p64 = scmp.eq.s32.totalorder %s23, 0
      %p65 = por %p63, %p64
      %p66 = scmp.ne.s32.totalorder %s54, %s55
      %p67 = scmp.eq.s32.totalorder %s24, 1
      %p68 = por %p66, %p67
      %p70 = scmp.ne.s32.totalorder %s55, %s69
      %p71 = scmp.eq.s32.totalorder %s24, 0
      %p72 = por %p70, %p71
      %s74 = sadd.s32 %s73, 1
      %p77 = scmp.eq.s32.totalorder %s18, 1
      %p78 = scmp.ne.s32.totalorder %s73, %s75
      %p79 = scmp.eq.s32.totalorder %s18, 0
      %p80 = por %p78, %p79
      %p81 = scmp.ne.s32.totalorder %s73, %s75
      %p82 = scmp.eq.s32.totalorder %s23, 1
      %p83 = por %p81, %p82
      %p84 = scmp.ne.s32.totalorder %s75, %s76
      %p85 = scmp.eq.s32.totalorder %s23, 0
      %p86 = por %p84, %p85
      %p87 = scmp.ne.s32.totalorder %s75, %s76
      %p88 = scmp.eq.s32.totalorder %s24, 1
      %p89 = por %p87, %p88
      %p91 = scmp.ne.s32.totalorder %s76, %s90
      %p92 = scmp.eq.s32.totalorder %s24, 0
      %p93 = por %p91, %p92
      %s95 = sadd.s32 %s94, 1
      %p98 = scmp.eq.s32.totalorder %s18, 1
      %p99 = scmp.ne.s32.totalorder %s94, %s96
      %p100 = scmp.eq.s32.totalorder %s18, 0
      %p101 = por %p99, %p100
      %p102 = scmp.ne.s32.totalorder %s94, %s96
      %p103 = scmp.eq.s32.totalorder %s23, 1
      %p104 = por %p102, %p103
      %p105 = scmp.ne.s32.totalorder %s96, %s97
      %p106 = scmp.eq.s32.totalorder %s23, 0
      %p107 = por %p105, %p106
      %p108 = scmp.ne.s32.totalorder %s96, %s97
      %p109 = scmp.eq.s32.totalorder %s24, 1
      %p110 = por %p108, %p109
      %p112 = scmp.ne.s32.totalorder %s97, %s111
      %p113 = scmp.eq.s32.totalorder %s24, 0
      %p114 = por %p112, %p113
      %s116 = sadd.s32 %s115, 1
      %p119 = scmp.eq.s32.totalorder %s18, 1
      %p120 = scmp.ne.s32.totalorder %s115, %s117
      %p121 = scmp.eq.s32.totalorder %s18, 0
      %p122 = por %p120, %p121
      %p123 = scmp.ne.s32.totalorder %s115, %s117
      %p124 = scmp.eq.s32.totalorder %s23, 1
      %p125 = por %p123, %p124
      %p126 = scmp.ne.s32.totalorder %s117, %s118
      %p127 = scmp.eq.s32.totalorder %s23, 0
      %p128 = por %p126, %p127
      %p129 = scmp.ne.s32.totalorder %s117, %s118
      %p130 = scmp.eq.s32.totalorder %s24, 1
      %p131 = por %p129, %p130
      %p133 = scmp.ne.s32.totalorder %s118, %s132
      %p134 = scmp.eq.s32.totalorder %s24, 0
      %p135 = por %p133, %p134
      %s137 = sadd.s32 %s136, 1
      %p140 = scmp.eq.s32.totalorder %s18, 1
      %p141 = scmp.ne.s32.totalorder %s136, %s138
      %p142 = scmp.eq.s32.totalorder %s18, 0
      %p143 = por %p141, %p142
      %p144 = scmp.ne.s32.totalorder %s136, %s138
      %p145 = scmp.eq.s32.totalorder %s23, 1
      %p146 = por %p144, %p145
      %p147 = scmp.ne.s32.totalorder %s138, %s139
      %p148 = scmp.eq.s32.totalorder %s23, 0
      %p149 = por %p147, %p148
      %p150 = scmp.ne.s32.totalorder %s138, %s139
      %p151 = scmp.eq.s32.totalorder %s24, 1
      %p152 = por %p150, %p151
      %p154 = scmp.ne.s32.totalorder %s139, %s153
      %p155 = scmp.eq.s32.totalorder %s24, 0
      %p156 = por %p154, %p155
      %s158 = sadd.s32 %s157, 1
      %p161 = scmp.eq.s32.totalorder %s18, 1
      %p162 = scmp.ne.s32.totalorder %s157, %s159
      %p163 = scmp.eq.s32.totalorder %s18, 0
      %p164 = por %p162, %p163
      %p165 = scmp.ne.s32.totalorder %s157, %s159
      %p166 = scmp.eq.s32.totalorder %s23, 1
      %p167 = por %p165, %p166
      %p168 = scmp.ne.s32.totalorder %s159, %s160
      %p169 = scmp.eq.s32.totalorder %s23, 0
      %p170 = por %p168, %p169
      %p171 = scmp.ne.s32.totalorder %s159, %s160
      %p172 = scmp.eq.s32.totalorder %s24, 1
      %p173 = por %p171, %p172
      %p175 = scmp.ne.s32.totalorder %s160, %s174
      %p176 = scmp.eq.s32.totalorder %s24, 0
      %p177 = por %p175, %p176
      %s179 = sadd.s32 %s178, 1
      %p182 = scmp.eq.s32.totalorder %s18, 1
      %p183 = scmp.ne.s32.totalorder %s178, %s180
      %p184 = scmp.eq.s32.totalorder %s18, 0
      %p185 = por %p183, %p184
      %p186 = scmp.ne.s32.totalorder %s178, %s180
      %p187 = scmp.eq.s32.totalorder %s23, 1
      %p188 = por %p186, %p187
      %p189 = scmp.ne.s32.totalorder %s180, %s181
      %p190 = scmp.eq.s32.totalorder %s23, 0
      %p191 = por %p189, %p190
      %p192 = scmp.ne.s32.totalorder %s180, %s181
      %p193 = scmp.eq.s32.totalorder %s24, 1
      %p194 = por %p192, %p193
      %p196 = scmp.ne.s32.totalorder %s181, %s195
      %p197 = scmp.eq.s32.totalorder %s24, 0
      %p198 = por %p196, %p197
      %s200 = sadd.s32 %s199, 1
      %p203 = scmp.eq.s32.totalorder %s18, 1
      %p204 = scmp.ne.s32.totalorder %s199, %s201
      %p205 = scmp.eq.s32.totalorder %s18, 0
      %p206 = por %p204, %p205
      %p207 = scmp.ne.s32.totalorder %s199, %s201
      %p208 = scmp.eq.s32.totalorder %s23, 1
      %p209 = por %p207, %p208
      %p210 = scmp.ne.s32.totalorder %s201, %s202
      %p211 = scmp.eq.s32.totalorder %s23, 0
      %p212 = por %p210, %p211
      %p213 = scmp.ne.s32.totalorder %s201, %s202
      %p214 = scmp.eq.s32.totalorder %s24, 1
      %p215 = por %p213, %p214
      %p217 = scmp.ne.s32.totalorder %s202, %s216
      %p218 = scmp.eq.s32.totalorder %s24, 0
      %p219 = por %p217, %p218
      %s221 = sadd.s32 %s220, 1
      %p224 = scmp.eq.s32.totalorder %s18, 1
      %p225 = scmp.ne.s32.totalorder %s220, %s222
      %p226 = scmp.eq.s32.totalorder %s18, 0
      %p227 = por %p225, %p226
      %p228 = scmp.ne.s32.totalorder %s220, %s222
      %p229 = scmp.eq.s32.totalorder %s23, 1
      %p230 = por %p228, %p229
      %p231 = scmp.ne.s32.totalorder %s222, %s223
      %p232 = scmp.eq.s32.totalorder %s23, 0
      %p233 = por %p231, %p232
      %p234 = scmp.ne.s32.totalorder %s222, %s223
      %p235 = scmp.eq.s32.totalorder %s24, 1
      %p236 = por %p234, %p235
      %p238 = scmp.ne.s32.totalorder %s223, %s237
      %p239 = scmp.eq.s32.totalorder %s24, 0
      %p240 = por %p238, %p239
      %s242 = sadd.s32 %s241, 1
      %p245 = scmp.eq.s32.totalorder %s18, 1
      %p246 = scmp.ne.s32.totalorder %s241, %s243
      %p247 = scmp.eq.s32.totalorder %s18, 0
      %p248 = por %p246, %p247
      %p249 = scmp.ne.s32.totalorder %s241, %s243
      %p250 = scmp.eq.s32.totalorder %s23, 1
      %p251 = por %p249, %p250
      %p252 = scmp.ne.s32.totalorder %s243, %s244
      %p253 = scmp.eq.s32.totalorder %s23, 0
      %p254 = por %p252, %p253
      %p255 = scmp.ne.s32.totalorder %s243, %s244
      %p256 = scmp.eq.s32.totalorder %s24, 1
      %p257 = por %p255, %p256
      %p259 = scmp.ne.s32.totalorder %s244, %s258
      %p260 = scmp.eq.s32.totalorder %s24, 0
      %p261 = por %p259, %p260
      %s263 = sadd.s32 %s262, 1
      %p266 = scmp.eq.s32.totalorder %s18, 1
      %p267 = scmp.ne.s32.totalorder %s262, %s264
      %p268 = scmp.eq.s32.totalorder %s18, 0
      %p269 = por %p267, %p268
      %p270 = scmp.ne.s32.totalorder %s262, %s264
      %p271 = scmp.eq.s32.totalorder %s23, 1
      %p272 = por %p270, %p271
      %p273 = scmp.ne.s32.totalorder %s264, %s265
      %p274 = scmp.eq.s32.totalorder %s23, 0
      %p275 = por %p273, %p274
      %p276 = scmp.ne.s32.totalorder %s264, %s265
      %p277 = scmp.eq.s32.totalorder %s24, 1
      %p278 = por %p276, %p277
      %p280 = scmp.ne.s32.totalorder %s265, %s279
      %p281 = scmp.eq.s32.totalorder %s24, 0
      %p282 = por %p280, %p281
      %s283 = ssub.s32 %s18, %s25
      %p284 = scmp.eq.s32.totalorder %s283, 0
      %s286 = sadd.s32 %s285, 1
      %s287 = scalar_select %p284, %s285, %s286
      %p290 = pneg %p284
      %p291 = scmp.eq.s32.totalorder %s18, 1
      %p292 = por %p290, %p291
      %p293 = scmp.ne.s32.totalorder %s285, %s288
      %p294 = scmp.eq.s32.totalorder %s18, 0
      %p295 = por %p293, %p294
      %p296 = scmp.ne.s32.totalorder %s285, %s288
      %p297 = scmp.eq.s32.totalorder %s23, 1
      %p298 = por %p296, %p297
      %p299 = scmp.ne.s32.totalorder %s288, %s289
      %p300 = scmp.eq.s32.totalorder %s23, 0
      %p301 = por %p299, %p300
      %p302 = scmp.ne.s32.totalorder %s288, %s289
      %p303 = scmp.eq.s32.totalorder %s24, 1
      %p304 = por %p302, %p303
      %p306 = scmp.ne.s32.totalorder %s289, %s305
      %p307 = scmp.eq.s32.totalorder %s24, 0
      %p308 = por %p306, %p307
      %p309 = scmp.le.s32.totalorder 1, %s18
      %p310 = scmp.lt.s32.totalorder %s18, 3
      %p311 = pnand %p309, %p310
      %p312 = pneg %p311
      // Predicated region
      $region9: #{emulator_forward.1} parent=5 // pred_check
        _
      $region10: #{emulator_forward.1} parent=5 // pred_check_branch
        %314 = sbr.rel (%p311) target = $region12
      $region11: #{emulator_forward.1} parent=5 // pred_region
        %s315 = ssub.s32 %s18, 1
        // Predicated region
        $region13: #{emulator_forward.1} parent=11 // pred_check
          %p316 = pneg %p65
        $region14: #{emulator_forward.1} parent=11 // pred_check_branch
          %318 = sbr.rel (%p316) target = $region16
        $region15: #{emulator_forward.1} parent=11 // pred_region
          _
        $region16: #{emulator_forward.1} parent=11 // pred_fallthru
          _
        // Predicated region
        $region17: #{emulator_forward.1} parent=11 // pred_check
          %p319 = pneg %p86
        $region18: #{emulator_forward.1} parent=11 // pred_check_branch
          %321 = sbr.rel (%p319) target = $region20
        $region19: #{emulator_forward.1} parent=11 // pred_region
          _
        $region20: #{emulator_forward.1} parent=11 // pred_fallthru
          _
        // Predicated region
        $region21: #{emulator_forward.1} parent=11 // pred_check
          %p322 = pneg %p107
        $region22: #{emulator_forward.1} parent=11 // pred_check_branch
          %324 = sbr.rel (%p322) target = $region24
        $region23: #{emulator_forward.1} parent=11 // pred_region
          _
        $region24: #{emulator_forward.1} parent=11 // pred_fallthru
          _
        // Predicated region
        $region25: #{emulator_forward.1} parent=11 // pred_check
          %p325 = pneg %p128
        $region26: #{emulator_forward.1} parent=11 // pred_check_branch
          %327 = sbr.rel (%p325) target = $region28
        $region27: #{emulator_forward.1} parent=11 // pred_region
          _
        $region28: #{emulator_forward.1} parent=11 // pred_fallthru
          _
        // Predicated region
        $region29: #{emulator_forward.1} parent=11 // pred_check
          %p328 = pneg %p149
        $region30: #{emulator_forward.1} parent=11 // pred_check_branch
          %330 = sbr.rel (%p328) target = $region32
        $region31: #{emulator_forward.1} parent=11 // pred_region
          _
        $region32: #{emulator_forward.1} parent=11 // pred_fallthru
          _
        // Predicated region
        $region33: #{emulator_forward.1} parent=11 // pred_check
          %p331 = pneg %p170
        $region34: #{emulator_forward.1} parent=11 // pred_check_branch
          %333 = sbr.rel (%p331) target = $region36
        $region35: #{emulator_forward.1} parent=11 // pred_region
          _
        $region36: #{emulator_forward.1} parent=11 // pred_fallthru
          _
        // Predicated region
        $region37: #{emulator_forward.1} parent=11 // pred_check
          %p334 = pneg %p191
        $region38: #{emulator_forward.1} parent=11 // pred_check_branch
          %336 = sbr.rel (%p334) target = $region40
        $region39: #{emulator_forward.1} parent=11 // pred_region
          _
        $region40: #{emulator_forward.1} parent=11 // pred_fallthru
          _
        // Predicated region
        $region41: #{emulator_forward.1} parent=11 // pred_check
          %p337 = pneg %p212
        $region42: #{emulator_forward.1} parent=11 // pred_check_branch
          %339 = sbr.rel (%p337) target = $region44
        $region43: #{emulator_forward.1} parent=11 // pred_region
          _
        $region44: #{emulator_forward.1} parent=11 // pred_fallthru
          _
        // Predicated region
        $region45: #{emulator_forward.1} parent=11 // pred_check
          %p340 = pneg %p233
        $region46: #{emulator_forward.1} parent=11 // pred_check_branch
          %342 = sbr.rel (%p340) target = $region48
        $region47: #{emulator_forward.1} parent=11 // pred_region
          _
        $region48: #{emulator_forward.1} parent=11 // pred_fallthru
          _
        // Predicated region
        $region49: #{emulator_forward.1} parent=11 // pred_check
          %p343 = pneg %p254
        $region50: #{emulator_forward.1} parent=11 // pred_check_branch
          %345 = sbr.rel (%p343) target = $region52
        $region51: #{emulator_forward.1} parent=11 // pred_region
          _
        $region52: #{emulator_forward.1} parent=11 // pred_fallthru
          _
        // Predicated region
        $region53: #{emulator_forward.1} parent=11 // pred_check
          %p346 = pneg %p275
        $region54: #{emulator_forward.1} parent=11 // pred_check_branch
          %348 = sbr.rel (%p346) target = $region56
        $region55: #{emulator_forward.1} parent=11 // pred_region
          _
        $region56: #{emulator_forward.1} parent=11 // pred_fallthru
          _
      $region12: #{emulator_forward.1} parent=5 // pred_fallthru
        _
      %p349 = scmp.lt.s32.totalorder %s18, 2
      // Predicated region
      $region57: #{emulator_forward.1} parent=5 // pred_check
        %p350 = pneg %p349
      $region58: #{emulator_forward.1} parent=5 // pred_check_branch
        %352 = sbr.rel (%p350) target = $region60
      $region59: #{emulator_forward.1} parent=5 // pred_region
        // Predicated region
        $region61: #{emulator_forward.1} parent=59 // pred_check
          %p353 = pneg %p38
        $region62: #{emulator_forward.1} parent=59 // pred_check_branch
          %355 = sbr.rel (%p353) target = $region64
        $region63: #{emulator_forward.1} parent=59 // pred_region
          %s356 = smul.u32 13, %s18
          %s357 = ssub.s32 25, %s356
          %p358 = scmp.lt.s32.totalorder %s357, 13
          %s359 = scalar_select %p358, %s357, 13
          %s360 = smul.u32 8, %s359
          %p361 = scmp.lt.s32.totalorder %s356, 24
          %s362 = scalar_select %p361, %s356, 24
          %s363 = smul.addr %s362, 8
          %s364 = scalar_lea.vmem %s0, %s363
          %s365 = smul.u32 13, %s18
          %s366 = ssub.s32 25, %s365
          %p367 = scmp.lt.s32.totalorder %s366, 13
          %s368 = scalar_select %p367, %s366, 13
          %s369 = smul.u32 8, %s368
        $region64: #{emulator_forward.1} parent=59 // pred_fallthru
          _
      $region60: #{emulator_forward.1} parent=5 // pred_fallthru
        _
      %p370 = scmp.le.s32.totalorder 1, %s18
      %p371 = scmp.lt.s32.totalorder %s18, 3
      %p372 = pnand %p370, %p371
      %p373 = pneg %p372
      // Predicated region
      $region65: #{emulator_forward.1} parent=5 // pred_check
        _
      $region66: #{emulator_forward.1} parent=5 // pred_check_branch
        %375 = sbr.rel (%p372) target = $region68
      $region67: #{emulator_forward.1} parent=5 // pred_region
        %s376 = ssub.s32 %s18, 1
        %s377 = smul.u32 13, %s23
        %s378 = ssub.s32 25, %s377
        %p379 = scmp.lt.s32.totalorder %s378, 13
        %s380 = scalar_select %p379, %s378, 13
        %s381 = smul.u32 8, %s380
        %p382 = scmp.lt.s32.totalorder %s377, 24
        %s383 = scalar_select %p382, %s377, 24
        %s384 = smul.addr %s383, 8
        %s385 = scalar_lea.vmem %s0, %s384
        %p386 = pneg %p44
        %p387 = pneg %p41
        %p388 = pneg %p65
        %p389 = pneg %p62
        %p390 = pneg %p86
        %p391 = pneg %p83
        %p392 = pneg %p107
        %p393 = pneg %p104
        %p394 = pneg %p128
        %p395 = pneg %p125
        %p396 = pneg %p149
        %p397 = pneg %p146
        %p398 = pneg %p170
        %p399 = pneg %p167
        %p400 = pneg %p191
        %p401 = pneg %p188
        %p402 = pneg %p212
        %p403 = pneg %p209
        %p404 = pneg %p233
        %p405 = pneg %p230
        %p406 = pneg %p254
        %p407 = pneg %p251
        %p408 = pneg %p275
        %p409 = pneg %p272
        %p410 = pneg %p301
        %p411 = pneg %p298
        %s412 = sand.u32 %s288, 1
        %s413 = sand.u32 %s288, 1
        %s414 = smul.addr %s413, 104
        %s415 = scalar_lea.vmem [#allocation2], %s414
        %s416 = smul.u32 13, %s23
        %s417 = ssub.s32 25, %s416
        %p418 = scmp.lt.s32.totalorder %s417, 13
        %s419 = scalar_select %p418, %s417, 13
        %s420 = smul.u32 8, %s419
        %p421 = scmp.lt.s32.totalorder %s416, 24
        %s422 = scalar_select %p421, %s416, 24
        %s423 = smul.addr %s422, 8
        %s424 = scalar_lea.vmem %s0, %s423
        %s425 = smul.u32 13, %s23
        %s426 = ssub.s32 25, %s425
        %p427 = scmp.lt.s32.totalorder %s426, 13
        %s428 = scalar_select %p427, %s426, 13
        %s429 = smul.u32 8, %s428
        %s430 = smul.u32 13, %s23
        %s431 = ssub.s32 25, %s430
        %p432 = scmp.lt.s32.totalorder %s431, 13
        %s433 = scalar_select %p432, %s431, 13
        %s434 = smul.u32 8, %s433
        %v435 = vld [vmem:[%s424] sm:$0xff]
        %v436 = vld [vmem:[%s424 + $0x8] sm:$0xff]
        %v437 = vld [vmem:[%s424 + $0x10] sm:$0xff]
        %v438 = vld [vmem:[%s424 + $0x18] sm:$0xff]
        %v439 = vld [vmem:[%s424 + $0x20] sm:$0xff]
        %v440 = vld [vmem:[%s424 + $0x28] sm:$0xff]
        %v441 = vld [vmem:[%s424 + $0x30] sm:$0xff]
        %v442 = vld [vmem:[%s424 + $0x38] sm:$0xff]
        %v443 = vld [vmem:[%s424 + $0x40] sm:$0xff]
        %v444 = vld [vmem:[%s424 + $0x48] sm:$0xff]
        %v445 = vld [vmem:[%s424 + $0x50] sm:$0xff]
        %v446 = vld [vmem:[%s424 + $0x58] sm:$0xff]
        %v447 = vld [vmem:[%s424 + $0x60] sm:$0xff]
        %v448 = vld [vmem:[%s1] sm:$0xff]
        %v449 = vld [vmem:[%s1 + $0x8] sm:$0xff]
        %v450 = vld [vmem:[%s1 + $0x10] sm:$0x1]
        %v451 = vld [vmem:[%s2] sm:$0x1]
        %v453 = vperm.slane %v451, 0
        %vm455 = vcmask 138240
        %v457 = vsel %vm455, %v435, 0
        %v460 = vsel %vm455, %v436, 0
        %v463 = vsel %vm455, %v437, 0
        %v466 = vsel %vm455, %v438, 0
        %v469 = vsel %vm455, %v439, 0
        %v472 = vsel %vm455, %v440, 0
        %v475 = vsel %vm455, %v441, 0
        %v478 = vsel %vm455, %v442, 0
        %v481 = vsel %vm455, %v443, 0
        %v484 = vsel %vm455, %v444, 0
        %v487 = vsel %vm455, %v445, 0
        %v490 = vsel %vm455, %v446, 0
        %v493 = vsel %vm455, %v447, 0
        %vm495 = vcmask 1040384
        %v497 = vsel %vm495, %v450, 0
        %499 = vmatpush.msra.mxu0 0.0
        %500 = vmatpush.msra.mxu0 0.0
        %501 = vmatpush.msra.mxu0 0.0
        %502 = vmatpush.msra.mxu0 0.0
        %503 = vmatpush.msra.mxu0 0.0
        %504 = vmatpush.msra.mxu0 0.0
        %505 = vmatpush.msra.mxu0 0.0
        %506 = vmatpush.msra.mxu0 0.0
        %507 = vmatpush.msra.mxu0 0.0
        %508 = vmatpush.msra.mxu0 0.0
        %509 = vmatpush.msra.mxu0 0.0
        %510 = vmatpush.msra.mxu0 0.0
        %511 = vmatpush.msra.mxu0 0.0
        %512 = vmatpush.msra.mxu0 %v497
        %513 = vmatpush.msra.mxu0 %v449
        %514 = vmatpush.msra.mxu0 %v448
        %515 = vmatmul.f32.gmra.mxu0 %v457
        %v516 = vpop.f32.mrf.mxu0
        %v517 = vadd.f32 %v453, %v516
        %518 = vmatmul.f32.gmra.mxu0 %v460
        %v519 = vpop.f32.mrf.mxu0
        %v520 = vadd.f32 %v453, %v519
        %521 = vmatmul.f32.gmra.mxu0 %v463
        %v522 = vpop.f32.mrf.mxu0
        %v523 = vadd.f32 %v453, %v522
        %524 = vmatmul.f32.gmra.mxu0 %v466
        %v525 = vpop.f32.mrf.mxu0
        %v526 = vadd.f32 %v453, %v525
        %527 = vmatmul.f32.gmra.mxu0 %v469
        %v528 = vpop.f32.mrf.mxu0
        %v529 = vadd.f32 %v453, %v528
        %530 = vmatmul.f32.gmra.mxu0 %v472
        %v531 = vpop.f32.mrf.mxu0
        %v532 = vadd.f32 %v453, %v531
        %533 = vmatmul.f32.gmra.mxu0 %v475
        %v534 = vpop.f32.mrf.mxu0
        %v535 = vadd.f32 %v453, %v534
        %536 = vmatmul.f32.gmra.mxu0 %v478
        %v537 = vpop.f32.mrf.mxu0
        %v538 = vadd.f32 %v453, %v537
        %539 = vmatmul.f32.gmra.mxu0 %v481
        %v540 = vpop.f32.mrf.mxu0
        %v541 = vadd.f32 %v453, %v540
        %542 = vmatmul.f32.gmra.mxu0 %v484
        %v543 = vpop.f32.mrf.mxu0
        %v544 = vadd.f32 %v453, %v543
        %545 = vmatmul.f32.gmra.mxu0 %v487
        %v546 = vpop.f32.mrf.mxu0
        %v547 = vadd.f32 %v453, %v546
        %548 = vmatmul.f32.gmra.mxu0 %v490
        %v549 = vpop.f32.mrf.mxu0
        %v550 = vadd.f32 %v453, %v549
        %551 = vmatmul.f32.gmra.mxu0 %v493
        %v552 = vpop.f32.mrf.mxu0
        %v553 = vadd.f32 %v453, %v552
        %554 = vdwg.mxu0
        %v555 = vmul.f32 %v517, %v517
        %v556 = vmul.f32 %v520, %v520
        %v557 = vmul.f32 %v523, %v523
        %v558 = vmul.f32 %v526, %v526
        %v559 = vmul.f32 %v529, %v529
        %v560 = vmul.f32 %v532, %v532
        %v561 = vmul.f32 %v535, %v535
        %v562 = vmul.f32 %v538, %v538
        %v563 = vmul.f32 %v541, %v541
        %v564 = vmul.f32 %v544, %v544
        %v565 = vmul.f32 %v547, %v547
        %v566 = vmul.f32 %v550, %v550
        %v567 = vmul.f32 %v553, %v553
        %vm568 = vcmask 261120
        %v569 = vsel %vm568, %v555, 0.0
        %570 = vadd.xlane.f32.xlu0 %v569
        %v571 = vpop.xlane.xlu0 %570
        %v572 = vsel %vm568, %v556, 0.0
        %573 = vadd.xlane.f32.xlu0 %v572
        %v574 = vpop.xlane.xlu0 %573
        %v575 = vsel %vm568, %v557, 0.0
        %576 = vadd.xlane.f32.xlu0 %v575
        %v577 = vpop.xlane.xlu0 %576
        %v578 = vsel %vm568, %v558, 0.0
        %579 = vadd.xlane.f32.xlu0 %v578
        %v580 = vpop.xlane.xlu0 %579
        %v581 = vsel %vm568, %v559, 0.0
        %582 = vadd.xlane.f32.xlu0 %v581
        %v583 = vpop.xlane.xlu0 %582
        %v584 = vsel %vm568, %v560, 0.0
        %585 = vadd.xlane.f32.xlu0 %v584
        %v586 = vpop.xlane.xlu0 %585
        %v587 = vsel %vm568, %v561, 0.0
        %588 = vadd.xlane.f32.xlu0 %v587
        %v589 = vpop.xlane.xlu0 %588
        %v590 = vsel %vm568, %v562, 0.0
        %591 = vadd.xlane.f32.xlu0 %v590
        %v592 = vpop.xlane.xlu0 %591
        %v593 = vsel %vm568, %v563, 0.0
        %594 = vadd.xlane.f32.xlu0 %v593
        %v595 = vpop.xlane.xlu0 %594
        %v596 = vsel %vm568, %v564, 0.0
        %597 = vadd.xlane.f32.xlu0 %v596
        %v598 = vpop.xlane.xlu0 %597
        %v599 = vsel %vm568, %v565, 0.0
        %600 = vadd.xlane.f32.xlu0 %v599
        %v601 = vpop.xlane.xlu0 %600
        %v602 = vsel %vm568, %v566, 0.0
        %603 = vadd.xlane.f32.xlu0 %v602
        %v604 = vpop.xlane.xlu0 %603
        %v605 = vsel %vm568, %v567, 0.0
        %606 = vadd.xlane.f32.xlu0 %v605
        %v607 = vpop.xlane.xlu0 %606
        %v608 = vrcp.pop 32.0
        %v609 = vmul.f32 32.0, %v608
        %v610 = vsub.f32 1.0, %v609
        %v611 = vmul.f32 %v608, %v610
        %v612 = vadd.f32 %v608, %v611
        %vm613 = vweird.f32 %v608
        %v614 = vsel %vm613, %v608, %v612
        %v615 = vmul.f32 %v571, %v614
        %v616 = vmul.f32 %v574, %v614
        %v617 = vmul.f32 %v577, %v614
        %v618 = vmul.f32 %v580, %v614
        %v619 = vmul.f32 %v583, %v614
        %v620 = vmul.f32 %v586, %v614
        %v621 = vmul.f32 %v589, %v614
        %v622 = vmul.f32 %v592, %v614
        %v623 = vmul.f32 %v595, %v614
        %v624 = vmul.f32 %v598, %v614
        %v625 = vmul.f32 %v601, %v614
        %v626 = vmul.f32 %v604, %v614
        %v627 = vmul.f32 %v607, %v614
        %v628 = vadd.f32 %v615, 1.1920929e-07
        %v629 = vadd.f32 %v616, 1.1920929e-07
        %v630 = vadd.f32 %v617, 1.1920929e-07
        %v631 = vadd.f32 %v618, 1.1920929e-07
        %v632 = vadd.f32 %v619, 1.1920929e-07
        %v633 = vadd.f32 %v620, 1.1920929e-07
        %v634 = vadd.f32 %v621, 1.1920929e-07
        %v635 = vadd.f32 %v622, 1.1920929e-07
        %v636 = vadd.f32 %v623, 1.1920929e-07
        %v637 = vadd.f32 %v624, 1.1920929e-07
        %v638 = vadd.f32 %v625, 1.1920929e-07
        %v639 = vadd.f32 %v626, 1.1920929e-07
        %v640 = vadd.f32 %v627, 1.1920929e-07
        %v641 = vrsqrt.pop %v628
        %v642 = vmul.f32 %v641, %v628
        %v643 = vmul.f32 %v642, %v641
        %v644 = vmul.f32 0.5, %v643
        %v645 = vsub.f32 1.5, %v644
        %v646 = vmul.f32 %v641, %v645
        %vm647 = vweird.f32 %v628
        %vm648 = vweird.f32 %v641
        %vm649 = vmor %vm647, %vm648
        %v650 = vsel %vm649, %v641, %v646
        %v651 = vrsqrt.pop %v629
        %v652 = vmul.f32 %v651, %v629
        %v653 = vmul.f32 %v652, %v651
        %v654 = vmul.f32 0.5, %v653
        %v655 = vsub.f32 1.5, %v654
        %v656 = vmul.f32 %v651, %v655
        %vm657 = vweird.f32 %v629
        %vm658 = vweird.f32 %v651
        %vm659 = vmor %vm657, %vm658
        %v660 = vsel %vm659, %v651, %v656
        %v661 = vrsqrt.pop %v630
        %v662 = vmul.f32 %v661, %v630
        %v663 = vmul.f32 %v662, %v661
        %v664 = vmul.f32 0.5, %v663
        %v665 = vsub.f32 1.5, %v664
        %v666 = vmul.f32 %v661, %v665
        %vm667 = vweird.f32 %v630
        %vm668 = vweird.f32 %v661
        %vm669 = vmor %vm667, %vm668
        %v670 = vsel %vm669, %v661, %v666
        %v671 = vrsqrt.pop %v631
        %v672 = vmul.f32 %v671, %v631
        %v673 = vmul.f32 %v672, %v671
        %v674 = vmul.f32 0.5, %v673
        %v675 = vsub.f32 1.5, %v674
        %v676 = vmul.f32 %v671, %v675
        %vm677 = vweird.f32 %v631
        %vm678 = vweird.f32 %v671
        %vm679 = vmor %vm677, %vm678
        %v680 = vsel %vm679, %v671, %v676
        %v681 = vrsqrt.pop %v632
        %v682 = vmul.f32 %v681, %v632
        %v683 = vmul.f32 %v682, %v681
        %v684 = vmul.f32 0.5, %v683
        %v685 = vsub.f32 1.5, %v684
        %v686 = vmul.f32 %v681, %v685
        %vm687 = vweird.f32 %v632
        %vm688 = vweird.f32 %v681
        %vm689 = vmor %vm687, %vm688
        %v690 = vsel %vm689, %v681, %v686
        %v691 = vrsqrt.pop %v633
        %v692 = vmul.f32 %v691, %v633
        %v693 = vmul.f32 %v692, %v691
        %v694 = vmul.f32 0.5, %v693
        %v695 = vsub.f32 1.5, %v694
        %v696 = vmul.f32 %v691, %v695
        %vm697 = vweird.f32 %v633
        %vm698 = vweird.f32 %v691
        %vm699 = vmor %vm697, %vm698
        %v700 = vsel %vm699, %v691, %v696
        %v701 = vrsqrt.pop %v634
        %v702 = vmul.f32 %v701, %v634
        %v703 = vmul.f32 %v702, %v701
        %v704 = vmul.f32 0.5, %v703
        %v705 = vsub.f32 1.5, %v704
        %v706 = vmul.f32 %v701, %v705
        %vm707 = vweird.f32 %v634
        %vm708 = vweird.f32 %v701
        %vm709 = vmor %vm707, %vm708
        %v710 = vsel %vm709, %v701, %v706
        %v711 = vrsqrt.pop %v635
        %v712 = vmul.f32 %v711, %v635
        %v713 = vmul.f32 %v712, %v711
        %v714 = vmul.f32 0.5, %v713
        %v715 = vsub.f32 1.5, %v714
        %v716 = vmul.f32 %v711, %v715
        %vm717 = vweird.f32 %v635
        %vm718 = vweird.f32 %v711
        %vm719 = vmor %vm717, %vm718
        %v720 = vsel %vm719, %v711, %v716
        %v721 = vrsqrt.pop %v636
        %v722 = vmul.f32 %v721, %v636
        %v723 = vmul.f32 %v722, %v721
        %v724 = vmul.f32 0.5, %v723
        %v725 = vsub.f32 1.5, %v724
        %v726 = vmul.f32 %v721, %v725
        %vm727 = vweird.f32 %v636
        %vm728 = vweird.f32 %v721
        %vm729 = vmor %vm727, %vm728
        %v730 = vsel %vm729, %v721, %v726
        %v731 = vrsqrt.pop %v637
        %v732 = vmul.f32 %v731, %v637
        %v733 = vmul.f32 %v732, %v731
        %v734 = vmul.f32 0.5, %v733
        %v735 = vsub.f32 1.5, %v734
        %v736 = vmul.f32 %v731, %v735
        %vm737 = vweird.f32 %v637
        %vm738 = vweird.f32 %v731
        %vm739 = vmor %vm737, %vm738
        %v740 = vsel %vm739, %v731, %v736
        %v741 = vrsqrt.pop %v638
        %v742 = vmul.f32 %v741, %v638
        %v743 = vmul.f32 %v742, %v741
        %v744 = vmul.f32 0.5, %v743
        %v745 = vsub.f32 1.5, %v744
        %v746 = vmul.f32 %v741, %v745
        %vm747 = vweird.f32 %v638
        %vm748 = vweird.f32 %v741
        %vm749 = vmor %vm747, %vm748
        %v750 = vsel %vm749, %v741, %v746
        %v751 = vrsqrt.pop %v639
        %v752 = vmul.f32 %v751, %v639
        %v753 = vmul.f32 %v752, %v751
        %v754 = vmul.f32 0.5, %v753
        %v755 = vsub.f32 1.5, %v754
        %v756 = vmul.f32 %v751, %v755
        %vm757 = vweird.f32 %v639
        %vm758 = vweird.f32 %v751
        %vm759 = vmor %vm757, %vm758
        %v760 = vsel %vm759, %v751, %v756
        %v761 = vrsqrt.pop %v640
        %v762 = vmul.f32 %v761, %v640
        %v763 = vmul.f32 %v762, %v761
        %v764 = vmul.f32 0.5, %v763
        %v765 = vsub.f32 1.5, %v764
        %v766 = vmul.f32 %v761, %v765
        %vm767 = vweird.f32 %v640
        %vm768 = vweird.f32 %v761
        %vm769 = vmor %vm767, %vm768
        %v770 = vsel %vm769, %v761, %v766
        %v771 = vmul.f32 %v517, %v650
        %v772 = vmul.f32 %v520, %v660
        %v773 = vmul.f32 %v523, %v670
        %v774 = vmul.f32 %v526, %v680
        %v775 = vmul.f32 %v529, %v690
        %v776 = vmul.f32 %v532, %v700
        %v777 = vmul.f32 %v535, %v710
        %v778 = vmul.f32 %v538, %v720
        %v779 = vmul.f32 %v541, %v730
        %v780 = vmul.f32 %v544, %v740
        %v781 = vmul.f32 %v547, %v750
        %v782 = vmul.f32 %v550, %v760
        %v783 = vmul.f32 %v553, %v770
        %v784 = vld [vmem:[%s3] sm:$0x1]
        %v786 = vperm.slane %v784, 0
        %v788 = vmul.f32 %v771, %v786
        %v789 = vmul.f32 %v772, %v786
        %v790 = vmul.f32 %v773, %v786
        %v791 = vmul.f32 %v774, %v786
        %v792 = vmul.f32 %v775, %v786
        %v793 = vmul.f32 %v776, %v786
        %v794 = vmul.f32 %v777, %v786
        %v795 = vmul.f32 %v778, %v786
        %v796 = vmul.f32 %v779, %v786
        %v797 = vmul.f32 %v780, %v786
        %v798 = vmul.f32 %v781, %v786
        %v799 = vmul.f32 %v782, %v786
        %v800 = vmul.f32 %v783, %v786
        %v801 = vmul.f32 %v788, 0.5
        %v802 = vmul.f32 %v789, 0.5
        %v803 = vmul.f32 %v790, 0.5
        %v804 = vmul.f32 %v791, 0.5
        %v805 = vmul.f32 %v792, 0.5
        %v806 = vmul.f32 %v793, 0.5
        %v807 = vmul.f32 %v794, 0.5
        %v808 = vmul.f32 %v795, 0.5
        %v809 = vmul.f32 %v796, 0.5
        %v810 = vmul.f32 %v797, 0.5
        %v811 = vmul.f32 %v798, 0.5
        %v812 = vmul.f32 %v799, 0.5
        %v813 = vmul.f32 %v800, 0.5
        %v814 = vmul.f32 %v788, 0.70710677
        %v815 = vmul.f32 %v789, 0.70710677
        %v816 = vmul.f32 %v790, 0.70710677
        %v817 = vmul.f32 %v791, 0.70710677
        %v818 = vmul.f32 %v792, 0.70710677
        %v819 = vmul.f32 %v793, 0.70710677
        %v820 = vmul.f32 %v794, 0.70710677
        %v821 = vmul.f32 %v795, 0.70710677
        %v822 = vmul.f32 %v796, 0.70710677
        %v823 = vmul.f32 %v797, 0.70710677
        %v824 = vmul.f32 %v798, 0.70710677
        %v825 = vmul.f32 %v799, 0.70710677
        %v826 = vmul.f32 %v800, 0.70710677
        %v827 = vmul.f32 %v814, %v814
        %v828 = vmin.f32 16.0, %v827
        %v829 = vmul.f32 %v828, 2.1237322e-06
        %v830 = vadd.f32 %v829, 0.00028619796
        %v831 = vmul.f32 %v828, %v830
        %v832 = vadd.f32 %v831, 0.0036580483
        %v833 = vmul.f32 %v828, %v832
        %v834 = vadd.f32 %v833, 0.05243302
        %v835 = vmul.f32 %v828, %v834
        %v836 = vadd.f32 %v835, 0.18741608
        %v837 = vmul.f32 %v828, %v836
        %v838 = vadd.f32 %v837, 1.1283791
        %v839 = vmul.f32 %v814, %v838
        %v840 = vmul.f32 %v828, 3.8918573e-05
        %v841 = vadd.f32 %v840, 0.001143296
        %v842 = vmul.f32 %v828, %v841
        %v843 = vadd.f32 %v842, 0.014752088
        %v844 = vmul.f32 %v828, %v843
        %v845 = vadd.f32 %v844, 0.112945676
        %v846 = vmul.f32 %v828, %v845
        %v847 = vadd.f32 %v846, 0.4994258
        %v848 = vmul.f32 %v828, %v847
        %v849 = vadd.f32 %v848, 1.0
        %v850 = vrcp.pop %v849
        %v851 = vmul.f32 %v849, %v850
        %v852 = vsub.f32 1.0, %v851
        %v853 = vmul.f32 %v850, %v852
        %v854 = vadd.f32 %v850, %v853
        %vm855 = vweird.f32 %v849
        %vm856 = vweird.f32 %v850
        %vm857 = vmor %vm855, %vm856
        %v858 = vsel %vm857, %v850, %v854
        %v859 = vand.u32 2147483647, %v849
        %vm860 = vcmp.eq.f32.partialorder %v859, 8.507059e+37
        %v861 = vand.u32 %v849, 2147483648
        %v862 = vor.u32 1.1754944e-38, %v861
        %v863 = vsel %vm860, %v862, %v858
        %v864 = vmul.f32 %v839, %v863
        %v865 = vmin.f32 %v864, 1.0
        %v866 = vmax.f32 %v865, -1.0
        %v867 = vmul.f32 %v815, %v815
        %v868 = vmin.f32 16.0, %v867
        %v869 = vmul.f32 %v868, 2.1237322e-06
        %v870 = vadd.f32 %v869, 0.00028619796
        %v871 = vmul.f32 %v868, %v870
        %v872 = vadd.f32 %v871, 0.0036580483
        %v873 = vmul.f32 %v868, %v872
        %v874 = vadd.f32 %v873, 0.05243302
        %v875 = vmul.f32 %v868, %v874
        %v876 = vadd.f32 %v875, 0.18741608
        %v877 = vmul.f32 %v868, %v876
        %v878 = vadd.f32 %v877, 1.1283791
        %v879 = vmul.f32 %v815, %v878
        %v880 = vmul.f32 %v868, 3.8918573e-05
        %v881 = vadd.f32 %v880, 0.001143296
        %v882 = vmul.f32 %v868, %v881
        %v883 = vadd.f32 %v882, 0.014752088
        %v884 = vmul.f32 %v868, %v883
        %v885 = vadd.f32 %v884, 0.112945676
        %v886 = vmul.f32 %v868, %v885
        %v887 = vadd.f32 %v886, 0.4994258
        %v888 = vmul.f32 %v868, %v887
        %v889 = vadd.f32 %v888, 1.0
        %v890 = vrcp.pop %v889
        %v891 = vmul.f32 %v889, %v890
        %v892 = vsub.f32 1.0, %v891
        %v893 = vmul.f32 %v890, %v892
        %v894 = vadd.f32 %v890, %v893
        %vm895 = vweird.f32 %v889
        %vm896 = vweird.f32 %v890
        %vm897 = vmor %vm895, %vm896
        %v898 = vsel %vm897, %v890, %v894
        %v899 = vand.u32 2147483647, %v889
        %vm900 = vcmp.eq.f32.partialorder %v899, 8.507059e+37
        %v901 = vand.u32 %v889, 2147483648
        %v902 = vor.u32 1.1754944e-38, %v901
        %v903 = vsel %vm900, %v902, %v898
        %v904 = vmul.f32 %v879, %v903
        %v905 = vmin.f32 %v904, 1.0
        %v906 = vmax.f32 %v905, -1.0
        %v907 = vmul.f32 %v816, %v816
        %v908 = vmin.f32 16.0, %v907
        %v909 = vmul.f32 %v908, 2.1237322e-06
        %v910 = vadd.f32 %v909, 0.00028619796
        %v911 = vmul.f32 %v908, %v910
        %v912 = vadd.f32 %v911, 0.0036580483
        %v913 = vmul.f32 %v908, %v912
        %v914 = vadd.f32 %v913, 0.05243302
        %v915 = vmul.f32 %v908, %v914
        %v916 = vadd.f32 %v915, 0.18741608
        %v917 = vmul.f32 %v908, %v916
        %v918 = vadd.f32 %v917, 1.1283791
        %v919 = vmul.f32 %v816, %v918
        %v920 = vmul.f32 %v908, 3.8918573e-05
        %v921 = vadd.f32 %v920, 0.001143296
        %v922 = vmul.f32 %v908, %v921
        %v923 = vadd.f32 %v922, 0.014752088
        %v924 = vmul.f32 %v908, %v923
        %v925 = vadd.f32 %v924, 0.112945676
        %v926 = vmul.f32 %v908, %v925
        %v927 = vadd.f32 %v926, 0.4994258
        %v928 = vmul.f32 %v908, %v927
        %v929 = vadd.f32 %v928, 1.0
        %v930 = vrcp.pop %v929
        %v931 = vmul.f32 %v929, %v930
        %v932 = vsub.f32 1.0, %v931
        %v933 = vmul.f32 %v930, %v932
        %v934 = vadd.f32 %v930, %v933
        %vm935 = vweird.f32 %v929
        %vm936 = vweird.f32 %v930
        %vm937 = vmor %vm935, %vm936
        %v938 = vsel %vm937, %v930, %v934
        %v939 = vand.u32 2147483647, %v929
        %vm940 = vcmp.eq.f32.partialorder %v939, 8.507059e+37
        %v941 = vand.u32 %v929, 2147483648
        %v942 = vor.u32 1.1754944e-38, %v941
        %v943 = vsel %vm940, %v942, %v938
        %v944 = vmul.f32 %v919, %v943
        %v945 = vmin.f32 %v944, 1.0
        %v946 = vmax.f32 %v945, -1.0
        %v947 = vmul.f32 %v817, %v817
        %v948 = vmin.f32 16.0, %v947
        %v949 = vmul.f32 %v948, 2.1237322e-06
        %v950 = vadd.f32 %v949, 0.00028619796
        %v951 = vmul.f32 %v948, %v950
        %v952 = vadd.f32 %v951, 0.0036580483
        %v953 = vmul.f32 %v948, %v952
        %v954 = vadd.f32 %v953, 0.05243302
        %v955 = vmul.f32 %v948, %v954
        %v956 = vadd.f32 %v955, 0.18741608
        %v957 = vmul.f32 %v948, %v956
        %v958 = vadd.f32 %v957, 1.1283791
        %v959 = vmul.f32 %v817, %v958
        %v960 = vmul.f32 %v948, 3.8918573e-05
        %v961 = vadd.f32 %v960, 0.001143296
        %v962 = vmul.f32 %v948, %v961
        %v963 = vadd.f32 %v962, 0.014752088
        %v964 = vmul.f32 %v948, %v963
        %v965 = vadd.f32 %v964, 0.112945676
        %v966 = vmul.f32 %v948, %v965
        %v967 = vadd.f32 %v966, 0.4994258
        %v968 = vmul.f32 %v948, %v967
        %v969 = vadd.f32 %v968, 1.0
        %v970 = vrcp.pop %v969
        %v971 = vmul.f32 %v969, %v970
        %v972 = vsub.f32 1.0, %v971
        %v973 = vmul.f32 %v970, %v972
        %v974 = vadd.f32 %v970, %v973
        %vm975 = vweird.f32 %v969
        %vm976 = vweird.f32 %v970
        %vm977 = vmor %vm975, %vm976
        %v978 = vsel %vm977, %v970, %v974
        %v979 = vand.u32 2147483647, %v969
        %vm980 = vcmp.eq.f32.partialorder %v979, 8.507059e+37
        %v981 = vand.u32 %v969, 2147483648
        %v982 = vor.u32 1.1754944e-38, %v981
        %v983 = vsel %vm980, %v982, %v978
        %v984 = vmul.f32 %v959, %v983
        %v985 = vmin.f32 %v984, 1.0
        %v986 = vmax.f32 %v985, -1.0
        %v987 = vmul.f32 %v818, %v818
        %v988 = vmin.f32 16.0, %v987
        %v989 = vmul.f32 %v988, 2.1237322e-06
        %v990 = vadd.f32 %v989, 0.00028619796
        %v991 = vmul.f32 %v988, %v990
        %v992 = vadd.f32 %v991, 0.0036580483
        %v993 = vmul.f32 %v988, %v992
        %v994 = vadd.f32 %v993, 0.05243302
        %v995 = vmul.f32 %v988, %v994
        %v996 = vadd.f32 %v995, 0.18741608
        %v997 = vmul.f32 %v988, %v996
        %v998 = vadd.f32 %v997, 1.1283791
        %v999 = vmul.f32 %v818, %v998
        %v1000 = vmul.f32 %v988, 3.8918573e-05
        %v1001 = vadd.f32 %v1000, 0.001143296
        %v1002 = vmul.f32 %v988, %v1001
        %v1003 = vadd.f32 %v1002, 0.014752088
        %v1004 = vmul.f32 %v988, %v1003
        %v1005 = vadd.f32 %v1004, 0.112945676
        %v1006 = vmul.f32 %v988, %v1005
        %v1007 = vadd.f32 %v1006, 0.4994258
        %v1008 = vmul.f32 %v988, %v1007
        %v1009 = vadd.f32 %v1008, 1.0
        %v1010 = vrcp.pop %v1009
        %v1011 = vmul.f32 %v1009, %v1010
        %v1012 = vsub.f32 1.0, %v1011
        %v1013 = vmul.f32 %v1010, %v1012
        %v1014 = vadd.f32 %v1010, %v1013
        %vm1015 = vweird.f32 %v1009
        %vm1016 = vweird.f32 %v1010
        %vm1017 = vmor %vm1015, %vm1016
        %v1018 = vsel %vm1017, %v1010, %v1014
        %v1019 = vand.u32 2147483647, %v1009
        %vm1020 = vcmp.eq.f32.partialorder %v1019, 8.507059e+37
        %v1021 = vand.u32 %v1009, 2147483648
        %v1022 = vor.u32 1.1754944e-38, %v1021
        %v1023 = vsel %vm1020, %v1022, %v1018
        %v1024 = vmul.f32 %v999, %v1023
        %v1025 = vmin.f32 %v1024, 1.0
        %v1026 = vmax.f32 %v1025, -1.0
        %v1027 = vmul.f32 %v819, %v819
        %v1028 = vmin.f32 16.0, %v1027
        %v1029 = vmul.f32 %v1028, 2.1237322e-06
        %v1030 = vadd.f32 %v1029, 0.00028619796
        %v1031 = vmul.f32 %v1028, %v1030
        %v1032 = vadd.f32 %v1031, 0.0036580483
        %v1033 = vmul.f32 %v1028, %v1032
        %v1034 = vadd.f32 %v1033, 0.05243302
        %v1035 = vmul.f32 %v1028, %v1034
        %v1036 = vadd.f32 %v1035, 0.18741608
        %v1037 = vmul.f32 %v1028, %v1036
        %v1038 = vadd.f32 %v1037, 1.1283791
        %v1039 = vmul.f32 %v819, %v1038
        %v1040 = vmul.f32 %v1028, 3.8918573e-05
        %v1041 = vadd.f32 %v1040, 0.001143296
        %v1042 = vmul.f32 %v1028, %v1041
        %v1043 = vadd.f32 %v1042, 0.014752088
        %v1044 = vmul.f32 %v1028, %v1043
        %v1045 = vadd.f32 %v1044, 0.112945676
        %v1046 = vmul.f32 %v1028, %v1045
        %v1047 = vadd.f32 %v1046, 0.4994258
        %v1048 = vmul.f32 %v1028, %v1047
        %v1049 = vadd.f32 %v1048, 1.0
        %v1050 = vrcp.pop %v1049
        %v1051 = vmul.f32 %v1049, %v1050
        %v1052 = vsub.f32 1.0, %v1051
        %v1053 = vmul.f32 %v1050, %v1052
        %v1054 = vadd.f32 %v1050, %v1053
        %vm1055 = vweird.f32 %v1049
        %vm1056 = vweird.f32 %v1050
        %vm1057 = vmor %vm1055, %vm1056
        %v1058 = vsel %vm1057, %v1050, %v1054
        %v1059 = vand.u32 2147483647, %v1049
        %vm1060 = vcmp.eq.f32.partialorder %v1059, 8.507059e+37
        %v1061 = vand.u32 %v1049, 2147483648
        %v1062 = vor.u32 1.1754944e-38, %v1061
        %v1063 = vsel %vm1060, %v1062, %v1058
        %v1064 = vmul.f32 %v1039, %v1063
        %v1065 = vmin.f32 %v1064, 1.0
        %v1066 = vmax.f32 %v1065, -1.0
        %v1067 = vmul.f32 %v820, %v820
        %v1068 = vmin.f32 16.0, %v1067
        %v1069 = vmul.f32 %v1068, 2.1237322e-06
        %v1070 = vadd.f32 %v1069, 0.00028619796
        %v1071 = vmul.f32 %v1068, %v1070
        %v1072 = vadd.f32 %v1071, 0.0036580483
        %v1073 = vmul.f32 %v1068, %v1072
        %v1074 = vadd.f32 %v1073, 0.05243302
        %v1075 = vmul.f32 %v1068, %v1074
        %v1076 = vadd.f32 %v1075, 0.18741608
        %v1077 = vmul.f32 %v1068, %v1076
        %v1078 = vadd.f32 %v1077, 1.1283791
        %v1079 = vmul.f32 %v820, %v1078
        %v1080 = vmul.f32 %v1068, 3.8918573e-05
        %v1081 = vadd.f32 %v1080, 0.001143296
        %v1082 = vmul.f32 %v1068, %v1081
        %v1083 = vadd.f32 %v1082, 0.014752088
        %v1084 = vmul.f32 %v1068, %v1083
        %v1085 = vadd.f32 %v1084, 0.112945676
        %v1086 = vmul.f32 %v1068, %v1085
        %v1087 = vadd.f32 %v1086, 0.4994258
        %v1088 = vmul.f32 %v1068, %v1087
        %v1089 = vadd.f32 %v1088, 1.0
        %v1090 = vrcp.pop %v1089
        %v1091 = vmul.f32 %v1089, %v1090
        %v1092 = vsub.f32 1.0, %v1091
        %v1093 = vmul.f32 %v1090, %v1092
        %v1094 = vadd.f32 %v1090, %v1093
        %vm1095 = vweird.f32 %v1089
        %vm1096 = vweird.f32 %v1090
        %vm1097 = vmor %vm1095, %vm1096
        %v1098 = vsel %vm1097, %v1090, %v1094
        %v1099 = vand.u32 2147483647, %v1089
        %vm1100 = vcmp.eq.f32.partialorder %v1099, 8.507059e+37
        %v1101 = vand.u32 %v1089, 2147483648
        %v1102 = vor.u32 1.1754944e-38, %v1101
        %v1103 = vsel %vm1100, %v1102, %v1098
        %v1104 = vmul.f32 %v1079, %v1103
        %v1105 = vmin.f32 %v1104, 1.0
        %v1106 = vmax.f32 %v1105, -1.0
        %v1107 = vmul.f32 %v821, %v821
        %v1108 = vmin.f32 16.0, %v1107
        %v1109 = vmul.f32 %v1108, 2.1237322e-06
        %v1110 = vadd.f32 %v1109, 0.00028619796
        %v1111 = vmul.f32 %v1108, %v1110
        %v1112 = vadd.f32 %v1111, 0.0036580483
        %v1113 = vmul.f32 %v1108, %v1112
        %v1114 = vadd.f32 %v1113, 0.05243302
        %v1115 = vmul.f32 %v1108, %v1114
        %v1116 = vadd.f32 %v1115, 0.18741608
        %v1117 = vmul.f32 %v1108, %v1116
        %v1118 = vadd.f32 %v1117, 1.1283791
        %v1119 = vmul.f32 %v821, %v1118
        %v1120 = vmul.f32 %v1108, 3.8918573e-05
        %v1121 = vadd.f32 %v1120, 0.001143296
        %v1122 = vmul.f32 %v1108, %v1121
        %v1123 = vadd.f32 %v1122, 0.014752088
        %v1124 = vmul.f32 %v1108, %v1123
        %v1125 = vadd.f32 %v1124, 0.112945676
        %v1126 = vmul.f32 %v1108, %v1125
        %v1127 = vadd.f32 %v1126, 0.4994258
        %v1128 = vmul.f32 %v1108, %v1127
        %v1129 = vadd.f32 %v1128, 1.0
        %v1130 = vrcp.pop %v1129
        %v1131 = vmul.f32 %v1129, %v1130
        %v1132 = vsub.f32 1.0, %v1131
        %v1133 = vmul.f32 %v1130, %v1132
        %v1134 = vadd.f32 %v1130, %v1133
        %vm1135 = vweird.f32 %v1129
        %vm1136 = vweird.f32 %v1130
        %vm1137 = vmor %vm1135, %vm1136
        %v1138 = vsel %vm1137, %v1130, %v1134
        %v1139 = vand.u32 2147483647, %v1129
        %vm1140 = vcmp.eq.f32.partialorder %v1139, 8.507059e+37
        %v1141 = vand.u32 %v1129, 2147483648
        %v1142 = vor.u32 1.1754944e-38, %v1141
        %v1143 = vsel %vm1140, %v1142, %v1138
        %v1144 = vmul.f32 %v1119, %v1143
        %v1145 = vmin.f32 %v1144, 1.0
        %v1146 = vmax.f32 %v1145, -1.0
        %v1147 = vmul.f32 %v822, %v822
        %v1148 = vmin.f32 16.0, %v1147
        %v1149 = vmul.f32 %v1148, 2.1237322e-06
        %v1150 = vadd.f32 %v1149, 0.00028619796
        %v1151 = vmul.f32 %v1148, %v1150
        %v1152 = vadd.f32 %v1151, 0.0036580483
        %v1153 = vmul.f32 %v1148, %v1152
        %v1154 = vadd.f32 %v1153, 0.05243302
        %v1155 = vmul.f32 %v1148, %v1154
        %v1156 = vadd.f32 %v1155, 0.18741608
        %v1157 = vmul.f32 %v1148, %v1156
        %v1158 = vadd.f32 %v1157, 1.1283791
        %v1159 = vmul.f32 %v822, %v1158
        %v1160 = vmul.f32 %v1148, 3.8918573e-05
        %v1161 = vadd.f32 %v1160, 0.001143296
        %v1162 = vmul.f32 %v1148, %v1161
        %v1163 = vadd.f32 %v1162, 0.014752088
        %v1164 = vmul.f32 %v1148, %v1163
        %v1165 = vadd.f32 %v1164, 0.112945676
        %v1166 = vmul.f32 %v1148, %v1165
        %v1167 = vadd.f32 %v1166, 0.4994258
        %v1168 = vmul.f32 %v1148, %v1167
        %v1169 = vadd.f32 %v1168, 1.0
        %v1170 = vrcp.pop %v1169
        %v1171 = vmul.f32 %v1169, %v1170
        %v1172 = vsub.f32 1.0, %v1171
        %v1173 = vmul.f32 %v1170, %v1172
        %v1174 = vadd.f32 %v1170, %v1173
        %vm1175 = vweird.f32 %v1169
        %vm1176 = vweird.f32 %v1170
        %vm1177 = vmor %vm1175, %vm1176
        %v1178 = vsel %vm1177, %v1170, %v1174
        %v1179 = vand.u32 2147483647, %v1169
        %vm1180 = vcmp.eq.f32.partialorder %v1179, 8.507059e+37
        %v1181 = vand.u32 %v1169, 2147483648
        %v1182 = vor.u32 1.1754944e-38, %v1181
        %v1183 = vsel %vm1180, %v1182, %v1178
        %v1184 = vmul.f32 %v1159, %v1183
        %v1185 = vmin.f32 %v1184, 1.0
        %v1186 = vmax.f32 %v1185, -1.0
        %v1187 = vmul.f32 %v823, %v823
        %v1188 = vmin.f32 16.0, %v1187
        %v1189 = vmul.f32 %v1188, 2.1237322e-06
        %v1190 = vadd.f32 %v1189, 0.00028619796
        %v1191 = vmul.f32 %v1188, %v1190
        %v1192 = vadd.f32 %v1191, 0.0036580483
        %v1193 = vmul.f32 %v1188, %v1192
        %v1194 = vadd.f32 %v1193, 0.05243302
        %v1195 = vmul.f32 %v1188, %v1194
        %v1196 = vadd.f32 %v1195, 0.18741608
        %v1197 = vmul.f32 %v1188, %v1196
        %v1198 = vadd.f32 %v1197, 1.1283791
        %v1199 = vmul.f32 %v823, %v1198
        %v1200 = vmul.f32 %v1188, 3.8918573e-05
        %v1201 = vadd.f32 %v1200, 0.001143296
        %v1202 = vmul.f32 %v1188, %v1201
        %v1203 = vadd.f32 %v1202, 0.014752088
        %v1204 = vmul.f32 %v1188, %v1203
        %v1205 = vadd.f32 %v1204, 0.112945676
        %v1206 = vmul.f32 %v1188, %v1205
        %v1207 = vadd.f32 %v1206, 0.4994258
        %v1208 = vmul.f32 %v1188, %v1207
        %v1209 = vadd.f32 %v1208, 1.0
        %v1210 = vrcp.pop %v1209
        %v1211 = vmul.f32 %v1209, %v1210
        %v1212 = vsub.f32 1.0, %v1211
        %v1213 = vmul.f32 %v1210, %v1212
        %v1214 = vadd.f32 %v1210, %v1213
        %vm1215 = vweird.f32 %v1209
        %vm1216 = vweird.f32 %v1210
        %vm1217 = vmor %vm1215, %vm1216
        %v1218 = vsel %vm1217, %v1210, %v1214
        %v1219 = vand.u32 2147483647, %v1209
        %vm1220 = vcmp.eq.f32.partialorder %v1219, 8.507059e+37
        %v1221 = vand.u32 %v1209, 2147483648
        %v1222 = vor.u32 1.1754944e-38, %v1221
        %v1223 = vsel %vm1220, %v1222, %v1218
        %v1224 = vmul.f32 %v1199, %v1223
        %v1225 = vmin.f32 %v1224, 1.0
        %v1226 = vmax.f32 %v1225, -1.0
        %v1227 = vmul.f32 %v824, %v824
        %v1228 = vmin.f32 16.0, %v1227
        %v1229 = vmul.f32 %v1228, 2.1237322e-06
        %v1230 = vadd.f32 %v1229, 0.00028619796
        %v1231 = vmul.f32 %v1228, %v1230
        %v1232 = vadd.f32 %v1231, 0.0036580483
        %v1233 = vmul.f32 %v1228, %v1232
        %v1234 = vadd.f32 %v1233, 0.05243302
        %v1235 = vmul.f32 %v1228, %v1234
        %v1236 = vadd.f32 %v1235, 0.18741608
        %v1237 = vmul.f32 %v1228, %v1236
        %v1238 = vadd.f32 %v1237, 1.1283791
        %v1239 = vmul.f32 %v824, %v1238
        %v1240 = vmul.f32 %v1228, 3.8918573e-05
        %v1241 = vadd.f32 %v1240, 0.001143296
        %v1242 = vmul.f32 %v1228, %v1241
        %v1243 = vadd.f32 %v1242, 0.014752088
        %v1244 = vmul.f32 %v1228, %v1243
        %v1245 = vadd.f32 %v1244, 0.112945676
        %v1246 = vmul.f32 %v1228, %v1245
        %v1247 = vadd.f32 %v1246, 0.4994258
        %v1248 = vmul.f32 %v1228, %v1247
        %v1249 = vadd.f32 %v1248, 1.0
        %v1250 = vrcp.pop %v1249
        %v1251 = vmul.f32 %v1249, %v1250
        %v1252 = vsub.f32 1.0, %v1251
        %v1253 = vmul.f32 %v1250, %v1252
        %v1254 = vadd.f32 %v1250, %v1253
        %vm1255 = vweird.f32 %v1249
        %vm1256 = vweird.f32 %v1250
        %vm1257 = vmor %vm1255, %vm1256
        %v1258 = vsel %vm1257, %v1250, %v1254
        %v1259 = vand.u32 2147483647, %v1249
        %vm1260 = vcmp.eq.f32.partialorder %v1259, 8.507059e+37
        %v1261 = vand.u32 %v1249, 2147483648
        %v1262 = vor.u32 1.1754944e-38, %v1261
        %v1263 = vsel %vm1260, %v1262, %v1258
        %v1264 = vmul.f32 %v1239, %v1263
        %v1265 = vmin.f32 %v1264, 1.0
        %v1266 = vmax.f32 %v1265, -1.0
        %v1267 = vmul.f32 %v825, %v825
        %v1268 = vmin.f32 16.0, %v1267
        %v1269 = vmul.f32 %v1268, 2.1237322e-06
        %v1270 = vadd.f32 %v1269, 0.00028619796
        %v1271 = vmul.f32 %v1268, %v1270
        %v1272 = vadd.f32 %v1271, 0.0036580483
        %v1273 = vmul.f32 %v1268, %v1272
        %v1274 = vadd.f32 %v1273, 0.05243302
        %v1275 = vmul.f32 %v1268, %v1274
        %v1276 = vadd.f32 %v1275, 0.18741608
        %v1277 = vmul.f32 %v1268, %v1276
        %v1278 = vadd.f32 %v1277, 1.1283791
        %v1279 = vmul.f32 %v825, %v1278
        %v1280 = vmul.f32 %v1268, 3.8918573e-05
        %v1281 = vadd.f32 %v1280, 0.001143296
        %v1282 = vmul.f32 %v1268, %v1281
        %v1283 = vadd.f32 %v1282, 0.014752088
        %v1284 = vmul.f32 %v1268, %v1283
        %v1285 = vadd.f32 %v1284, 0.112945676
        %v1286 = vmul.f32 %v1268, %v1285
        %v1287 = vadd.f32 %v1286, 0.4994258
        %v1288 = vmul.f32 %v1268, %v1287
        %v1289 = vadd.f32 %v1288, 1.0
        %v1290 = vrcp.pop %v1289
        %v1291 = vmul.f32 %v1289, %v1290
        %v1292 = vsub.f32 1.0, %v1291
        %v1293 = vmul.f32 %v1290, %v1292
        %v1294 = vadd.f32 %v1290, %v1293
        %vm1295 = vweird.f32 %v1289
        %vm1296 = vweird.f32 %v1290
        %vm1297 = vmor %vm1295, %vm1296
        %v1298 = vsel %vm1297, %v1290, %v1294
        %v1299 = vand.u32 2147483647, %v1289
        %vm1300 = vcmp.eq.f32.partialorder %v1299, 8.507059e+37
        %v1301 = vand.u32 %v1289, 2147483648
        %v1302 = vor.u32 1.1754944e-38, %v1301
        %v1303 = vsel %vm1300, %v1302, %v1298
        %v1304 = vmul.f32 %v1279, %v1303
        %v1305 = vmin.f32 %v1304, 1.0
        %v1306 = vmax.f32 %v1305, -1.0
        %v1307 = vmul.f32 %v826, %v826
        %v1308 = vmin.f32 16.0, %v1307
        %v1309 = vmul.f32 %v1308, 2.1237322e-06
        %v1310 = vadd.f32 %v1309, 0.00028619796
        %v1311 = vmul.f32 %v1308, %v1310
        %v1312 = vadd.f32 %v1311, 0.0036580483
        %v1313 = vmul.f32 %v1308, %v1312
        %v1314 = vadd.f32 %v1313, 0.05243302
        %v1315 = vmul.f32 %v1308, %v1314
        %v1316 = vadd.f32 %v1315, 0.18741608
        %v1317 = vmul.f32 %v1308, %v1316
        %v1318 = vadd.f32 %v1317, 1.1283791
        %v1319 = vmul.f32 %v826, %v1318
        %v1320 = vmul.f32 %v1308, 3.8918573e-05
        %v1321 = vadd.f32 %v1320, 0.001143296
        %v1322 = vmul.f32 %v1308, %v1321
        %v1323 = vadd.f32 %v1322, 0.014752088
        %v1324 = vmul.f32 %v1308, %v1323
        %v1325 = vadd.f32 %v1324, 0.112945676
        %v1326 = vmul.f32 %v1308, %v1325
        %v1327 = vadd.f32 %v1326, 0.4994258
        %v1328 = vmul.f32 %v1308, %v1327
        %v1329 = vadd.f32 %v1328, 1.0
        %v1330 = vrcp.pop %v1329
        %v1331 = vmul.f32 %v1329, %v1330
        %v1332 = vsub.f32 1.0, %v1331
        %v1333 = vmul.f32 %v1330, %v1332
        %v1334 = vadd.f32 %v1330, %v1333
        %vm1335 = vweird.f32 %v1329
        %vm1336 = vweird.f32 %v1330
        %vm1337 = vmor %vm1335, %vm1336
        %v1338 = vsel %vm1337, %v1330, %v1334
        %v1339 = vand.u32 2147483647, %v1329
        %vm1340 = vcmp.eq.f32.partialorder %v1339, 8.507059e+37
        %v1341 = vand.u32 %v1329, 2147483648
        %v1342 = vor.u32 1.1754944e-38, %v1341
        %v1343 = vsel %vm1340, %v1342, %v1338
        %v1344 = vmul.f32 %v1319, %v1343
        %v1345 = vmin.f32 %v1344, 1.0
        %v1346 = vmax.f32 %v1345, -1.0
        %v1347 = vadd.f32 %v866, 1.0
        %v1348 = vadd.f32 %v906, 1.0
        %v1349 = vadd.f32 %v946, 1.0
        %v1350 = vadd.f32 %v986, 1.0
        %v1351 = vadd.f32 %v1026, 1.0
        %v1352 = vadd.f32 %v1066, 1.0
        %v1353 = vadd.f32 %v1106, 1.0
        %v1354 = vadd.f32 %v1146, 1.0
        %v1355 = vadd.f32 %v1186, 1.0
        %v1356 = vadd.f32 %v1226, 1.0
        %v1357 = vadd.f32 %v1266, 1.0
        %v1358 = vadd.f32 %v1306, 1.0
        %v1359 = vadd.f32 %v1346, 1.0
        %v1360 = vmul.f32 %v801, %v1347
        %v1361 = vmul.f32 %v802, %v1348
        %v1362 = vmul.f32 %v803, %v1349
        %v1363 = vmul.f32 %v804, %v1350
        %v1364 = vmul.f32 %v805, %v1351
        %v1365 = vmul.f32 %v806, %v1352
        %v1366 = vmul.f32 %v807, %v1353
        %v1367 = vmul.f32 %v808, %v1354
        %v1368 = vmul.f32 %v809, %v1355
        %v1369 = vmul.f32 %v810, %v1356
        %v1370 = vmul.f32 %v811, %v1357
        %v1371 = vmul.f32 %v812, %v1358
        %v1372 = vmul.f32 %v813, %v1359
        %v1373 = vld [vmem:[%s4] sm:$0xff]
        %v1374 = vld [vmem:[%s4 + $0x8] sm:$0xff]
        %v1375 = vld [vmem:[%s4 + $0x10] sm:$0xff]
        %v1376 = vld [vmem:[%s4 + $0x18] sm:$0xff]
        %v1377 = vld [vmem:[%s5] sm:$0x1]
        %v1379 = vperm.slane %v1377, 0
        %v1382 = vsel %vm568, %v1360, 0
        %v1385 = vsel %vm568, %v1361, 0
        %v1388 = vsel %vm568, %v1362, 0
        %v1391 = vsel %vm568, %v1363, 0
        %v1394 = vsel %vm568, %v1364, 0
        %v1397 = vsel %vm568, %v1365, 0
        %v1400 = vsel %vm568, %v1366, 0
        %v1403 = vsel %vm568, %v1367, 0
        %v1406 = vsel %vm568, %v1368, 0
        %v1409 = vsel %vm568, %v1369, 0
        %v1412 = vsel %vm568, %v1370, 0
        %v1415 = vsel %vm568, %v1371, 0
        %v1418 = vsel %vm568, %v1372, 0
        %1420 = vmatpush.msra.mxu0 0.0
        %1421 = vmatpush.msra.mxu0 0.0
        %1422 = vmatpush.msra.mxu0 0.0
        %1423 = vmatpush.msra.mxu0 0.0
        %1424 = vmatpush.msra.mxu0 0.0
        %1425 = vmatpush.msra.mxu0 0.0
        %1426 = vmatpush.msra.mxu0 0.0
        %1427 = vmatpush.msra.mxu0 0.0
        %1428 = vmatpush.msra.mxu0 0.0
        %1429 = vmatpush.msra.mxu0 0.0
        %1430 = vmatpush.msra.mxu0 0.0
        %1431 = vmatpush.msra.mxu0 0.0
        %1432 = vmatpush.msra.mxu0 %v1376
        %1433 = vmatpush.msra.mxu0 %v1375
        %1434 = vmatpush.msra.mxu0 %v1374
        %1435 = vmatpush.msra.mxu0 %v1373
        %1436 = vmatmul.f32.gmra.mxu0 %v1382
        %v1437 = vpop.f32.mrf.mxu0
        %v1438 = vadd.f32 %v1379, %v1437
        %1439 = vmatmul.f32.gmra.mxu0 %v1385
        %v1440 = vpop.f32.mrf.mxu0
        %v1441 = vadd.f32 %v1379, %v1440
        %1442 = vmatmul.f32.gmra.mxu0 %v1388
        %v1443 = vpop.f32.mrf.mxu0
        %v1444 = vadd.f32 %v1379, %v1443
        %1445 = vmatmul.f32.gmra.mxu0 %v1391
        %v1446 = vpop.f32.mrf.mxu0
        %v1447 = vadd.f32 %v1379, %v1446
        %1448 = vmatmul.f32.gmra.mxu0 %v1394
        %v1449 = vpop.f32.mrf.mxu0
        %v1450 = vadd.f32 %v1379, %v1449
        %1451 = vmatmul.f32.gmra.mxu0 %v1397
        %v1452 = vpop.f32.mrf.mxu0
        %v1453 = vadd.f32 %v1379, %v1452
        %1454 = vmatmul.f32.gmra.mxu0 %v1400
        %v1455 = vpop.f32.mrf.mxu0
        %v1456 = vadd.f32 %v1379, %v1455
        %1457 = vmatmul.f32.gmra.mxu0 %v1403
        %v1458 = vpop.f32.mrf.mxu0
        %v1459 = vadd.f32 %v1379, %v1458
        %1460 = vmatmul.f32.gmra.mxu0 %v1406
        %v1461 = vpop.f32.mrf.mxu0
        %v1462 = vadd.f32 %v1379, %v1461
        %1463 = vmatmul.f32.gmra.mxu0 %v1409
        %v1464 = vpop.f32.mrf.mxu0
        %v1465 = vadd.f32 %v1379, %v1464
        %1466 = vmatmul.f32.gmra.mxu0 %v1412
        %v1467 = vpop.f32.mrf.mxu0
        %v1468 = vadd.f32 %v1379, %v1467
        %1469 = vmatmul.f32.gmra.mxu0 %v1415
        %v1470 = vpop.f32.mrf.mxu0
        %v1471 = vadd.f32 %v1379, %v1470
        %1472 = vmatmul.f32.gmra.mxu0 %v1418
        %v1473 = vpop.f32.mrf.mxu0
        %v1474 = vadd.f32 %v1379, %v1473
        %1475 = vdwg.mxu0
        %v1476 = vmul.f32 %v1438, %v1438
        %v1477 = vmul.f32 %v1441, %v1441
        %v1478 = vmul.f32 %v1444, %v1444
        %v1479 = vmul.f32 %v1447, %v1447
        %v1480 = vmul.f32 %v1450, %v1450
        %v1481 = vmul.f32 %v1453, %v1453
        %v1482 = vmul.f32 %v1456, %v1456
        %v1483 = vmul.f32 %v1459, %v1459
        %v1484 = vmul.f32 %v1462, %v1462
        %v1485 = vmul.f32 %v1465, %v1465
        %v1486 = vmul.f32 %v1468, %v1468
        %v1487 = vmul.f32 %v1471, %v1471
        %v1488 = vmul.f32 %v1474, %v1474
        %v1489 = vsel %vm568, %v1476, 0.0
        %1490 = vadd.xlane.f32.xlu0 %v1489
        %v1491 = vpop.xlane.xlu0 %1490
        %v1492 = vsel %vm568, %v1477, 0.0
        %1493 = vadd.xlane.f32.xlu0 %v1492
        %v1494 = vpop.xlane.xlu0 %1493
        %v1495 = vsel %vm568, %v1478, 0.0
        %1496 = vadd.xlane.f32.xlu0 %v1495
        %v1497 = vpop.xlane.xlu0 %1496
        %v1498 = vsel %vm568, %v1479, 0.0
        %1499 = vadd.xlane.f32.xlu0 %v1498
        %v1500 = vpop.xlane.xlu0 %1499
        %v1501 = vsel %vm568, %v1480, 0.0
        %1502 = vadd.xlane.f32.xlu0 %v1501
        %v1503 = vpop.xlane.xlu0 %1502
        %v1504 = vsel %vm568, %v1481, 0.0
        %1505 = vadd.xlane.f32.xlu0 %v1504
        %v1506 = vpop.xlane.xlu0 %1505
        %v1507 = vsel %vm568, %v1482, 0.0
        %1508 = vadd.xlane.f32.xlu0 %v1507
        %v1509 = vpop.xlane.xlu0 %1508
        %v1510 = vsel %vm568, %v1483, 0.0
        %1511 = vadd.xlane.f32.xlu0 %v1510
        %v1512 = vpop.xlane.xlu0 %1511
        %v1513 = vsel %vm568, %v1484, 0.0
        %1514 = vadd.xlane.f32.xlu0 %v1513
        %v1515 = vpop.xlane.xlu0 %1514
        %v1516 = vsel %vm568, %v1485, 0.0
        %1517 = vadd.xlane.f32.xlu0 %v1516
        %v1518 = vpop.xlane.xlu0 %1517
        %v1519 = vsel %vm568, %v1486, 0.0
        %1520 = vadd.xlane.f32.xlu0 %v1519
        %v1521 = vpop.xlane.xlu0 %1520
        %v1522 = vsel %vm568, %v1487, 0.0
        %1523 = vadd.xlane.f32.xlu0 %v1522
        %v1524 = vpop.xlane.xlu0 %1523
        %v1525 = vsel %vm568, %v1488, 0.0
        %1526 = vadd.xlane.f32.xlu0 %v1525
        %v1527 = vpop.xlane.xlu0 %1526
        %v1528 = vmul.f32 %v1491, %v614
        %v1529 = vmul.f32 %v1494, %v614
        %v1530 = vmul.f32 %v1497, %v614
        %v1531 = vmul.f32 %v1500, %v614
        %v1532 = vmul.f32 %v1503, %v614
        %v1533 = vmul.f32 %v1506, %v614
        %v1534 = vmul.f32 %v1509, %v614
        %v1535 = vmul.f32 %v1512, %v614
        %v1536 = vmul.f32 %v1515, %v614
        %v1537 = vmul.f32 %v1518, %v614
        %v1538 = vmul.f32 %v1521, %v614
        %v1539 = vmul.f32 %v1524, %v614
        %v1540 = vmul.f32 %v1527, %v614
        %v1541 = vadd.f32 %v1528, 1.1920929e-07
        %v1542 = vadd.f32 %v1529, 1.1920929e-07
        %v1543 = vadd.f32 %v1530, 1.1920929e-07
        %v1544 = vadd.f32 %v1531, 1.1920929e-07
        %v1545 = vadd.f32 %v1532, 1.1920929e-07
        %v1546 = vadd.f32 %v1533, 1.1920929e-07
        %v1547 = vadd.f32 %v1534, 1.1920929e-07
        %v1548 = vadd.f32 %v1535, 1.1920929e-07
        %v1549 = vadd.f32 %v1536, 1.1920929e-07
        %v1550 = vadd.f32 %v1537, 1.1920929e-07
        %v1551 = vadd.f32 %v1538, 1.1920929e-07
        %v1552 = vadd.f32 %v1539, 1.1920929e-07
        %v1553 = vadd.f32 %v1540, 1.1920929e-07
        %v1554 = vrsqrt.pop %v1541
        %v1555 = vmul.f32 %v1554, %v1541
        %v1556 = vmul.f32 %v1555, %v1554
        %v1557 = vmul.f32 0.5, %v1556
        %v1558 = vsub.f32 1.5, %v1557
        %v1559 = vmul.f32 %v1554, %v1558
        %vm1560 = vweird.f32 %v1541
        %vm1561 = vweird.f32 %v1554
        %vm1562 = vmor %vm1560, %vm1561
        %v1563 = vsel %vm1562, %v1554, %v1559
        %v1564 = vrsqrt.pop %v1542
        %v1565 = vmul.f32 %v1564, %v1542
        %v1566 = vmul.f32 %v1565, %v1564
        %v1567 = vmul.f32 0.5, %v1566
        %v1568 = vsub.f32 1.5, %v1567
        %v1569 = vmul.f32 %v1564, %v1568
        %vm1570 = vweird.f32 %v1542
        %vm1571 = vweird.f32 %v1564
        %vm1572 = vmor %vm1570, %vm1571
        %v1573 = vsel %vm1572, %v1564, %v1569
        %v1574 = vrsqrt.pop %v1543
        %v1575 = vmul.f32 %v1574, %v1543
        %v1576 = vmul.f32 %v1575, %v1574
        %v1577 = vmul.f32 0.5, %v1576
        %v1578 = vsub.f32 1.5, %v1577
        %v1579 = vmul.f32 %v1574, %v1578
        %vm1580 = vweird.f32 %v1543
        %vm1581 = vweird.f32 %v1574
        %vm1582 = vmor %vm1580, %vm1581
        %v1583 = vsel %vm1582, %v1574, %v1579
        %v1584 = vrsqrt.pop %v1544
        %v1585 = vmul.f32 %v1584, %v1544
        %v1586 = vmul.f32 %v1585, %v1584
        %v1587 = vmul.f32 0.5, %v1586
        %v1588 = vsub.f32 1.5, %v1587
        %v1589 = vmul.f32 %v1584, %v1588
        %vm1590 = vweird.f32 %v1544
        %vm1591 = vweird.f32 %v1584
        %vm1592 = vmor %vm1590, %vm1591
        %v1593 = vsel %vm1592, %v1584, %v1589
        %v1594 = vrsqrt.pop %v1545
        %v1595 = vmul.f32 %v1594, %v1545
        %v1596 = vmul.f32 %v1595, %v1594
        %v1597 = vmul.f32 0.5, %v1596
        %v1598 = vsub.f32 1.5, %v1597
        %v1599 = vmul.f32 %v1594, %v1598
        %vm1600 = vweird.f32 %v1545
        %vm1601 = vweird.f32 %v1594
        %vm1602 = vmor %vm1600, %vm1601
        %v1603 = vsel %vm1602, %v1594, %v1599
        %v1604 = vrsqrt.pop %v1546
        %v1605 = vmul.f32 %v1604, %v1546
        %v1606 = vmul.f32 %v1605, %v1604
        %v1607 = vmul.f32 0.5, %v1606
        %v1608 = vsub.f32 1.5, %v1607
        %v1609 = vmul.f32 %v1604, %v1608
        %vm1610 = vweird.f32 %v1546
        %vm1611 = vweird.f32 %v1604
        %vm1612 = vmor %vm1610, %vm1611
        %v1613 = vsel %vm1612, %v1604, %v1609
        %v1614 = vrsqrt.pop %v1547
        %v1615 = vmul.f32 %v1614, %v1547
        %v1616 = vmul.f32 %v1615, %v1614
        %v1617 = vmul.f32 0.5, %v1616
        %v1618 = vsub.f32 1.5, %v1617
        %v1619 = vmul.f32 %v1614, %v1618
        %vm1620 = vweird.f32 %v1547
        %vm1621 = vweird.f32 %v1614
        %vm1622 = vmor %vm1620, %vm1621
        %v1623 = vsel %vm1622, %v1614, %v1619
        %v1624 = vrsqrt.pop %v1548
        %v1625 = vmul.f32 %v1624, %v1548
        %v1626 = vmul.f32 %v1625, %v1624
        %v1627 = vmul.f32 0.5, %v1626
        %v1628 = vsub.f32 1.5, %v1627
        %v1629 = vmul.f32 %v1624, %v1628
        %vm1630 = vweird.f32 %v1548
        %vm1631 = vweird.f32 %v1624
        %vm1632 = vmor %vm1630, %vm1631
        %v1633 = vsel %vm1632, %v1624, %v1629
        %v1634 = vrsqrt.pop %v1549
        %v1635 = vmul.f32 %v1634, %v1549
        %v1636 = vmul.f32 %v1635, %v1634
        %v1637 = vmul.f32 0.5, %v1636
        %v1638 = vsub.f32 1.5, %v1637
        %v1639 = vmul.f32 %v1634, %v1638
        %vm1640 = vweird.f32 %v1549
        %vm1641 = vweird.f32 %v1634
        %vm1642 = vmor %vm1640, %vm1641
        %v1643 = vsel %vm1642, %v1634, %v1639
        %v1644 = vrsqrt.pop %v1550
        %v1645 = vmul.f32 %v1644, %v1550
        %v1646 = vmul.f32 %v1645, %v1644
        %v1647 = vmul.f32 0.5, %v1646
        %v1648 = vsub.f32 1.5, %v1647
        %v1649 = vmul.f32 %v1644, %v1648
        %vm1650 = vweird.f32 %v1550
        %vm1651 = vweird.f32 %v1644
        %vm1652 = vmor %vm1650, %vm1651
        %v1653 = vsel %vm1652, %v1644, %v1649
        %v1654 = vrsqrt.pop %v1551
        %v1655 = vmul.f32 %v1654, %v1551
        %v1656 = vmul.f32 %v1655, %v1654
        %v1657 = vmul.f32 0.5, %v1656
        %v1658 = vsub.f32 1.5, %v1657
        %v1659 = vmul.f32 %v1654, %v1658
        %vm1660 = vweird.f32 %v1551
        %vm1661 = vweird.f32 %v1654
        %vm1662 = vmor %vm1660, %vm1661
        %v1663 = vsel %vm1662, %v1654, %v1659
        %v1664 = vrsqrt.pop %v1552
        %v1665 = vmul.f32 %v1664, %v1552
        %v1666 = vmul.f32 %v1665, %v1664
        %v1667 = vmul.f32 0.5, %v1666
        %v1668 = vsub.f32 1.5, %v1667
        %v1669 = vmul.f32 %v1664, %v1668
        %vm1670 = vweird.f32 %v1552
        %vm1671 = vweird.f32 %v1664
        %vm1672 = vmor %vm1670, %vm1671
        %v1673 = vsel %vm1672, %v1664, %v1669
        %v1674 = vrsqrt.pop %v1553
        %v1675 = vmul.f32 %v1674, %v1553
        %v1676 = vmul.f32 %v1675, %v1674
        %v1677 = vmul.f32 0.5, %v1676
        %v1678 = vsub.f32 1.5, %v1677
        %v1679 = vmul.f32 %v1674, %v1678
        %vm1680 = vweird.f32 %v1553
        %vm1681 = vweird.f32 %v1674
        %vm1682 = vmor %vm1680, %vm1681
        %v1683 = vsel %vm1682, %v1674, %v1679
        %v1684 = vmul.f32 %v1438, %v1563
        %v1685 = vmul.f32 %v1441, %v1573
        %v1686 = vmul.f32 %v1444, %v1583
        %v1687 = vmul.f32 %v1447, %v1593
        %v1688 = vmul.f32 %v1450, %v1603
        %v1689 = vmul.f32 %v1453, %v1613
        %v1690 = vmul.f32 %v1456, %v1623
        %v1691 = vmul.f32 %v1459, %v1633
        %v1692 = vmul.f32 %v1462, %v1643
        %v1693 = vmul.f32 %v1465, %v1653
        %v1694 = vmul.f32 %v1468, %v1663
        %v1695 = vmul.f32 %v1471, %v1673
        %v1696 = vmul.f32 %v1474, %v1683
        %v1697 = vld [vmem:[%s6] sm:$0x1]
        %v1699 = vperm.slane %v1697, 0
        %v1701 = vmul.f32 %v1684, %v1699
        %v1702 = vmul.f32 %v1685, %v1699
        %v1703 = vmul.f32 %v1686, %v1699
        %v1704 = vmul.f32 %v1687, %v1699
        %v1705 = vmul.f32 %v1688, %v1699
        %v1706 = vmul.f32 %v1689, %v1699
        %v1707 = vmul.f32 %v1690, %v1699
        %v1708 = vmul.f32 %v1691, %v1699
        %v1709 = vmul.f32 %v1692, %v1699
        %v1710 = vmul.f32 %v1693, %v1699
        %v1711 = vmul.f32 %v1694, %v1699
        %v1712 = vmul.f32 %v1695, %v1699
        %v1713 = vmul.f32 %v1696, %v1699
        %v1714 = vmul.f32 %v1701, 0.5
        %v1715 = vmul.f32 %v1702, 0.5
        %v1716 = vmul.f32 %v1703, 0.5
        %v1717 = vmul.f32 %v1704, 0.5
        %v1718 = vmul.f32 %v1705, 0.5
        %v1719 = vmul.f32 %v1706, 0.5
        %v1720 = vmul.f32 %v1707, 0.5
        %v1721 = vmul.f32 %v1708, 0.5
        %v1722 = vmul.f32 %v1709, 0.5
        %v1723 = vmul.f32 %v1710, 0.5
        %v1724 = vmul.f32 %v1711, 0.5
        %v1725 = vmul.f32 %v1712, 0.5
        %v1726 = vmul.f32 %v1713, 0.5
        %v1727 = vmul.f32 %v1701, 0.70710677
        %v1728 = vmul.f32 %v1702, 0.70710677
        %v1729 = vmul.f32 %v1703, 0.70710677
        %v1730 = vmul.f32 %v1704, 0.70710677
        %v1731 = vmul.f32 %v1705, 0.70710677
        %v1732 = vmul.f32 %v1706, 0.70710677
        %v1733 = vmul.f32 %v1707, 0.70710677
        %v1734 = vmul.f32 %v1708, 0.70710677
        %v1735 = vmul.f32 %v1709, 0.70710677
        %v1736 = vmul.f32 %v1710, 0.70710677
        %v1737 = vmul.f32 %v1711, 0.70710677
        %v1738 = vmul.f32 %v1712, 0.70710677
        %v1739 = vmul.f32 %v1713, 0.70710677
        %v1740 = vmul.f32 %v1727, %v1727
        %v1741 = vmin.f32 16.0, %v1740
        %v1742 = vmul.f32 %v1741, 2.1237322e-06
        %v1743 = vadd.f32 %v1742, 0.00028619796
        %v1744 = vmul.f32 %v1741, %v1743
        %v1745 = vadd.f32 %v1744, 0.0036580483
        %v1746 = vmul.f32 %v1741, %v1745
        %v1747 = vadd.f32 %v1746, 0.05243302
        %v1748 = vmul.f32 %v1741, %v1747
        %v1749 = vadd.f32 %v1748, 0.18741608
        %v1750 = vmul.f32 %v1741, %v1749
        %v1751 = vadd.f32 %v1750, 1.1283791
        %v1752 = vmul.f32 %v1727, %v1751
        %v1753 = vmul.f32 %v1741, 3.8918573e-05
        %v1754 = vadd.f32 %v1753, 0.001143296
        %v1755 = vmul.f32 %v1741, %v1754
        %v1756 = vadd.f32 %v1755, 0.014752088
        %v1757 = vmul.f32 %v1741, %v1756
        %v1758 = vadd.f32 %v1757, 0.112945676
        %v1759 = vmul.f32 %v1741, %v1758
        %v1760 = vadd.f32 %v1759, 0.4994258
        %v1761 = vmul.f32 %v1741, %v1760
        %v1762 = vadd.f32 %v1761, 1.0
        %v1763 = vrcp.pop %v1762
        %v1764 = vmul.f32 %v1762, %v1763
        %v1765 = vsub.f32 1.0, %v1764
        %v1766 = vmul.f32 %v1763, %v1765
        %v1767 = vadd.f32 %v1763, %v1766
        %vm1768 = vweird.f32 %v1762
        %vm1769 = vweird.f32 %v1763
        %vm1770 = vmor %vm1768, %vm1769
        %v1771 = vsel %vm1770, %v1763, %v1767
        %v1772 = vand.u32 2147483647, %v1762
        %vm1773 = vcmp.eq.f32.partialorder %v1772, 8.507059e+37
        %v1774 = vand.u32 %v1762, 2147483648
        %v1775 = vor.u32 1.1754944e-38, %v1774
        %v1776 = vsel %vm1773, %v1775, %v1771
        %v1777 = vmul.f32 %v1752, %v1776
        %v1778 = vmin.f32 %v1777, 1.0
        %v1779 = vmax.f32 %v1778, -1.0
        %v1780 = vmul.f32 %v1728, %v1728
        %v1781 = vmin.f32 16.0, %v1780
        %v1782 = vmul.f32 %v1781, 2.1237322e-06
        %v1783 = vadd.f32 %v1782, 0.00028619796
        %v1784 = vmul.f32 %v1781, %v1783
        %v1785 = vadd.f32 %v1784, 0.0036580483
        %v1786 = vmul.f32 %v1781, %v1785
        %v1787 = vadd.f32 %v1786, 0.05243302
        %v1788 = vmul.f32 %v1781, %v1787
        %v1789 = vadd.f32 %v1788, 0.18741608
        %v1790 = vmul.f32 %v1781, %v1789
        %v1791 = vadd.f32 %v1790, 1.1283791
        %v1792 = vmul.f32 %v1728, %v1791
        %v1793 = vmul.f32 %v1781, 3.8918573e-05
        %v1794 = vadd.f32 %v1793, 0.001143296
        %v1795 = vmul.f32 %v1781, %v1794
        %v1796 = vadd.f32 %v1795, 0.014752088
        %v1797 = vmul.f32 %v1781, %v1796
        %v1798 = vadd.f32 %v1797, 0.112945676
        %v1799 = vmul.f32 %v1781, %v1798
        %v1800 = vadd.f32 %v1799, 0.4994258
        %v1801 = vmul.f32 %v1781, %v1800
        %v1802 = vadd.f32 %v1801, 1.0
        %v1803 = vrcp.pop %v1802
        %v1804 = vmul.f32 %v1802, %v1803
        %v1805 = vsub.f32 1.0, %v1804
        %v1806 = vmul.f32 %v1803, %v1805
        %v1807 = vadd.f32 %v1803, %v1806
        %vm1808 = vweird.f32 %v1802
        %vm1809 = vweird.f32 %v1803
        %vm1810 = vmor %vm1808, %vm1809
        %v1811 = vsel %vm1810, %v1803, %v1807
        %v1812 = vand.u32 2147483647, %v1802
        %vm1813 = vcmp.eq.f32.partialorder %v1812, 8.507059e+37
        %v1814 = vand.u32 %v1802, 2147483648
        %v1815 = vor.u32 1.1754944e-38, %v1814
        %v1816 = vsel %vm1813, %v1815, %v1811
        %v1817 = vmul.f32 %v1792, %v1816
        %v1818 = vmin.f32 %v1817, 1.0
        %v1819 = vmax.f32 %v1818, -1.0
        %v1820 = vmul.f32 %v1729, %v1729
        %v1821 = vmin.f32 16.0, %v1820
        %v1822 = vmul.f32 %v1821, 2.1237322e-06
        %v1823 = vadd.f32 %v1822, 0.00028619796
        %v1824 = vmul.f32 %v1821, %v1823
        %v1825 = vadd.f32 %v1824, 0.0036580483
        %v1826 = vmul.f32 %v1821, %v1825
        %v1827 = vadd.f32 %v1826, 0.05243302
        %v1828 = vmul.f32 %v1821, %v1827
        %v1829 = vadd.f32 %v1828, 0.18741608
        %v1830 = vmul.f32 %v1821, %v1829
        %v1831 = vadd.f32 %v1830, 1.1283791
        %v1832 = vmul.f32 %v1729, %v1831
        %v1833 = vmul.f32 %v1821, 3.8918573e-05
        %v1834 = vadd.f32 %v1833, 0.001143296
        %v1835 = vmul.f32 %v1821, %v1834
        %v1836 = vadd.f32 %v1835, 0.014752088
        %v1837 = vmul.f32 %v1821, %v1836
        %v1838 = vadd.f32 %v1837, 0.112945676
        %v1839 = vmul.f32 %v1821, %v1838
        %v1840 = vadd.f32 %v1839, 0.4994258
        %v1841 = vmul.f32 %v1821, %v1840
        %v1842 = vadd.f32 %v1841, 1.0
        %v1843 = vrcp.pop %v1842
        %v1844 = vmul.f32 %v1842, %v1843
        %v1845 = vsub.f32 1.0, %v1844
        %v1846 = vmul.f32 %v1843, %v1845
        %v1847 = vadd.f32 %v1843, %v1846
        %vm1848 = vweird.f32 %v1842
        %vm1849 = vweird.f32 %v1843
        %vm1850 = vmor %vm1848, %vm1849
        %v1851 = vsel %vm1850, %v1843, %v1847
        %v1852 = vand.u32 2147483647, %v1842
        %vm1853 = vcmp.eq.f32.partialorder %v1852, 8.507059e+37
        %v1854 = vand.u32 %v1842, 2147483648
        %v1855 = vor.u32 1.1754944e-38, %v1854
        %v1856 = vsel %vm1853, %v1855, %v1851
        %v1857 = vmul.f32 %v1832, %v1856
        %v1858 = vmin.f32 %v1857, 1.0
        %v1859 = vmax.f32 %v1858, -1.0
        %v1860 = vmul.f32 %v1730, %v1730
        %v1861 = vmin.f32 16.0, %v1860
        %v1862 = vmul.f32 %v1861, 2.1237322e-06
        %v1863 = vadd.f32 %v1862, 0.00028619796
        %v1864 = vmul.f32 %v1861, %v1863
        %v1865 = vadd.f32 %v1864, 0.0036580483
        %v1866 = vmul.f32 %v1861, %v1865
        %v1867 = vadd.f32 %v1866, 0.05243302
        %v1868 = vmul.f32 %v1861, %v1867
        %v1869 = vadd.f32 %v1868, 0.18741608
        %v1870 = vmul.f32 %v1861, %v1869
        %v1871 = vadd.f32 %v1870, 1.1283791
        %v1872 = vmul.f32 %v1730, %v1871
        %v1873 = vmul.f32 %v1861, 3.8918573e-05
        %v1874 = vadd.f32 %v1873, 0.001143296
        %v1875 = vmul.f32 %v1861, %v1874
        %v1876 = vadd.f32 %v1875, 0.014752088
        %v1877 = vmul.f32 %v1861, %v1876
        %v1878 = vadd.f32 %v1877, 0.112945676
        %v1879 = vmul.f32 %v1861, %v1878
        %v1880 = vadd.f32 %v1879, 0.4994258
        %v1881 = vmul.f32 %v1861, %v1880
        %v1882 = vadd.f32 %v1881, 1.0
        %v1883 = vrcp.pop %v1882
        %v1884 = vmul.f32 %v1882, %v1883
        %v1885 = vsub.f32 1.0, %v1884
        %v1886 = vmul.f32 %v1883, %v1885
        %v1887 = vadd.f32 %v1883, %v1886
        %vm1888 = vweird.f32 %v1882
        %vm1889 = vweird.f32 %v1883
        %vm1890 = vmor %vm1888, %vm1889
        %v1891 = vsel %vm1890, %v1883, %v1887
        %v1892 = vand.u32 2147483647, %v1882
        %vm1893 = vcmp.eq.f32.partialorder %v1892, 8.507059e+37
        %v1894 = vand.u32 %v1882, 2147483648
        %v1895 = vor.u32 1.1754944e-38, %v1894
        %v1896 = vsel %vm1893, %v1895, %v1891
        %v1897 = vmul.f32 %v1872, %v1896
        %v1898 = vmin.f32 %v1897, 1.0
        %v1899 = vmax.f32 %v1898, -1.0
        %v1900 = vmul.f32 %v1731, %v1731
        %v1901 = vmin.f32 16.0, %v1900
        %v1902 = vmul.f32 %v1901, 2.1237322e-06
        %v1903 = vadd.f32 %v1902, 0.00028619796
        %v1904 = vmul.f32 %v1901, %v1903
        %v1905 = vadd.f32 %v1904, 0.0036580483
        %v1906 = vmul.f32 %v1901, %v1905
        %v1907 = vadd.f32 %v1906, 0.05243302
        %v1908 = vmul.f32 %v1901, %v1907
        %v1909 = vadd.f32 %v1908, 0.18741608
        %v1910 = vmul.f32 %v1901, %v1909
        %v1911 = vadd.f32 %v1910, 1.1283791
        %v1912 = vmul.f32 %v1731, %v1911
        %v1913 = vmul.f32 %v1901, 3.8918573e-05
        %v1914 = vadd.f32 %v1913, 0.001143296
        %v1915 = vmul.f32 %v1901, %v1914
        %v1916 = vadd.f32 %v1915, 0.014752088
        %v1917 = vmul.f32 %v1901, %v1916
        %v1918 = vadd.f32 %v1917, 0.112945676
        %v1919 = vmul.f32 %v1901, %v1918
        %v1920 = vadd.f32 %v1919, 0.4994258
        %v1921 = vmul.f32 %v1901, %v1920
        %v1922 = vadd.f32 %v1921, 1.0
        %v1923 = vrcp.pop %v1922
        %v1924 = vmul.f32 %v1922, %v1923
        %v1925 = vsub.f32 1.0, %v1924
        %v1926 = vmul.f32 %v1923, %v1925
        %v1927 = vadd.f32 %v1923, %v1926
        %vm1928 = vweird.f32 %v1922
        %vm1929 = vweird.f32 %v1923
        %vm1930 = vmor %vm1928, %vm1929
        %v1931 = vsel %vm1930, %v1923, %v1927
        %v1932 = vand.u32 2147483647, %v1922
        %vm1933 = vcmp.eq.f32.partialorder %v1932, 8.507059e+37
        %v1934 = vand.u32 %v1922, 2147483648
        %v1935 = vor.u32 1.1754944e-38, %v1934
        %v1936 = vsel %vm1933, %v1935, %v1931
        %v1937 = vmul.f32 %v1912, %v1936
        %v1938 = vmin.f32 %v1937, 1.0
        %v1939 = vmax.f32 %v1938, -1.0
        %v1940 = vmul.f32 %v1732, %v1732
        %v1941 = vmin.f32 16.0, %v1940
        %v1942 = vmul.f32 %v1941, 2.1237322e-06
        %v1943 = vadd.f32 %v1942, 0.00028619796
        %v1944 = vmul.f32 %v1941, %v1943
        %v1945 = vadd.f32 %v1944, 0.0036580483
        %v1946 = vmul.f32 %v1941, %v1945
        %v1947 = vadd.f32 %v1946, 0.05243302
        %v1948 = vmul.f32 %v1941, %v1947
        %v1949 = vadd.f32 %v1948, 0.18741608
        %v1950 = vmul.f32 %v1941, %v1949
        %v1951 = vadd.f32 %v1950, 1.1283791
        %v1952 = vmul.f32 %v1732, %v1951
        %v1953 = vmul.f32 %v1941, 3.8918573e-05
        %v1954 = vadd.f32 %v1953, 0.001143296
        %v1955 = vmul.f32 %v1941, %v1954
        %v1956 = vadd.f32 %v1955, 0.014752088
        %v1957 = vmul.f32 %v1941, %v1956
        %v1958 = vadd.f32 %v1957, 0.112945676
        %v1959 = vmul.f32 %v1941, %v1958
        %v1960 = vadd.f32 %v1959, 0.4994258
        %v1961 = vmul.f32 %v1941, %v1960
        %v1962 = vadd.f32 %v1961, 1.0
        %v1963 = vrcp.pop %v1962
        %v1964 = vmul.f32 %v1962, %v1963
        %v1965 = vsub.f32 1.0, %v1964
        %v1966 = vmul.f32 %v1963, %v1965
        %v1967 = vadd.f32 %v1963, %v1966
        %vm1968 = vweird.f32 %v1962
        %vm1969 = vweird.f32 %v1963
        %vm1970 = vmor %vm1968, %vm1969
        %v1971 = vsel %vm1970, %v1963, %v1967
        %v1972 = vand.u32 2147483647, %v1962
        %vm1973 = vcmp.eq.f32.partialorder %v1972, 8.507059e+37
        %v1974 = vand.u32 %v1962, 2147483648
        %v1975 = vor.u32 1.1754944e-38, %v1974
        %v1976 = vsel %vm1973, %v1975, %v1971
        %v1977 = vmul.f32 %v1952, %v1976
        %v1978 = vmin.f32 %v1977, 1.0
        %v1979 = vmax.f32 %v1978, -1.0
        %v1980 = vmul.f32 %v1733, %v1733
        %v1981 = vmin.f32 16.0, %v1980
        %v1982 = vmul.f32 %v1981, 2.1237322e-06
        %v1983 = vadd.f32 %v1982, 0.00028619796
        %v1984 = vmul.f32 %v1981, %v1983
        %v1985 = vadd.f32 %v1984, 0.0036580483
        %v1986 = vmul.f32 %v1981, %v1985
        %v1987 = vadd.f32 %v1986, 0.05243302
        %v1988 = vmul.f32 %v1981, %v1987
        %v1989 = vadd.f32 %v1988, 0.18741608
        %v1990 = vmul.f32 %v1981, %v1989
        %v1991 = vadd.f32 %v1990, 1.1283791
        %v1992 = vmul.f32 %v1733, %v1991
        %v1993 = vmul.f32 %v1981, 3.8918573e-05
        %v1994 = vadd.f32 %v1993, 0.001143296
        %v1995 = vmul.f32 %v1981, %v1994
        %v1996 = vadd.f32 %v1995, 0.014752088
        %v1997 = vmul.f32 %v1981, %v1996
        %v1998 = vadd.f32 %v1997, 0.112945676
        %v1999 = vmul.f32 %v1981, %v1998
        %v2000 = vadd.f32 %v1999, 0.4994258
        %v2001 = vmul.f32 %v1981, %v2000
        %v2002 = vadd.f32 %v2001, 1.0
        %v2003 = vrcp.pop %v2002
        %v2004 = vmul.f32 %v2002, %v2003
        %v2005 = vsub.f32 1.0, %v2004
        %v2006 = vmul.f32 %v2003, %v2005
        %v2007 = vadd.f32 %v2003, %v2006
        %vm2008 = vweird.f32 %v2002
        %vm2009 = vweird.f32 %v2003
        %vm2010 = vmor %vm2008, %vm2009
        %v2011 = vsel %vm2010, %v2003, %v2007
        %v2012 = vand.u32 2147483647, %v2002
        %vm2013 = vcmp.eq.f32.partialorder %v2012, 8.507059e+37
        %v2014 = vand.u32 %v2002, 2147483648
        %v2015 = vor.u32 1.1754944e-38, %v2014
        %v2016 = vsel %vm2013, %v2015, %v2011
        %v2017 = vmul.f32 %v1992, %v2016
        %v2018 = vmin.f32 %v2017, 1.0
        %v2019 = vmax.f32 %v2018, -1.0
        %v2020 = vmul.f32 %v1734, %v1734
        %v2021 = vmin.f32 16.0, %v2020
        %v2022 = vmul.f32 %v2021, 2.1237322e-06
        %v2023 = vadd.f32 %v2022, 0.00028619796
        %v2024 = vmul.f32 %v2021, %v2023
        %v2025 = vadd.f32 %v2024, 0.0036580483
        %v2026 = vmul.f32 %v2021, %v2025
        %v2027 = vadd.f32 %v2026, 0.05243302
        %v2028 = vmul.f32 %v2021, %v2027
        %v2029 = vadd.f32 %v2028, 0.18741608
        %v2030 = vmul.f32 %v2021, %v2029
        %v2031 = vadd.f32 %v2030, 1.1283791
        %v2032 = vmul.f32 %v1734, %v2031
        %v2033 = vmul.f32 %v2021, 3.8918573e-05
        %v2034 = vadd.f32 %v2033, 0.001143296
        %v2035 = vmul.f32 %v2021, %v2034
        %v2036 = vadd.f32 %v2035, 0.014752088
        %v2037 = vmul.f32 %v2021, %v2036
        %v2038 = vadd.f32 %v2037, 0.112945676
        %v2039 = vmul.f32 %v2021, %v2038
        %v2040 = vadd.f32 %v2039, 0.4994258
        %v2041 = vmul.f32 %v2021, %v2040
        %v2042 = vadd.f32 %v2041, 1.0
        %v2043 = vrcp.pop %v2042
        %v2044 = vmul.f32 %v2042, %v2043
        %v2045 = vsub.f32 1.0, %v2044
        %v2046 = vmul.f32 %v2043, %v2045
        %v2047 = vadd.f32 %v2043, %v2046
        %vm2048 = vweird.f32 %v2042
        %vm2049 = vweird.f32 %v2043
        %vm2050 = vmor %vm2048, %vm2049
        %v2051 = vsel %vm2050, %v2043, %v2047
        %v2052 = vand.u32 2147483647, %v2042
        %vm2053 = vcmp.eq.f32.partialorder %v2052, 8.507059e+37
        %v2054 = vand.u32 %v2042, 2147483648
        %v2055 = vor.u32 1.1754944e-38, %v2054
        %v2056 = vsel %vm2053, %v2055, %v2051
        %v2057 = vmul.f32 %v2032, %v2056
        %v2058 = vmin.f32 %v2057, 1.0
        %v2059 = vmax.f32 %v2058, -1.0
        %v2060 = vmul.f32 %v1735, %v1735
        %v2061 = vmin.f32 16.0, %v2060
        %v2062 = vmul.f32 %v2061, 2.1237322e-06
        %v2063 = vadd.f32 %v2062, 0.00028619796
        %v2064 = vmul.f32 %v2061, %v2063
        %v2065 = vadd.f32 %v2064, 0.0036580483
        %v2066 = vmul.f32 %v2061, %v2065
        %v2067 = vadd.f32 %v2066, 0.05243302
        %v2068 = vmul.f32 %v2061, %v2067
        %v2069 = vadd.f32 %v2068, 0.18741608
        %v2070 = vmul.f32 %v2061, %v2069
        %v2071 = vadd.f32 %v2070, 1.1283791
        %v2072 = vmul.f32 %v1735, %v2071
        %v2073 = vmul.f32 %v2061, 3.8918573e-05
        %v2074 = vadd.f32 %v2073, 0.001143296
        %v2075 = vmul.f32 %v2061, %v2074
        %v2076 = vadd.f32 %v2075, 0.014752088
        %v2077 = vmul.f32 %v2061, %v2076
        %v2078 = vadd.f32 %v2077, 0.112945676
        %v2079 = vmul.f32 %v2061, %v2078
        %v2080 = vadd.f32 %v2079, 0.4994258
        %v2081 = vmul.f32 %v2061, %v2080
        %v2082 = vadd.f32 %v2081, 1.0
        %v2083 = vrcp.pop %v2082
        %v2084 = vmul.f32 %v2082, %v2083
        %v2085 = vsub.f32 1.0, %v2084
        %v2086 = vmul.f32 %v2083, %v2085
        %v2087 = vadd.f32 %v2083, %v2086
        %vm2088 = vweird.f32 %v2082
        %vm2089 = vweird.f32 %v2083
        %vm2090 = vmor %vm2088, %vm2089
        %v2091 = vsel %vm2090, %v2083, %v2087
        %v2092 = vand.u32 2147483647, %v2082
        %vm2093 = vcmp.eq.f32.partialorder %v2092, 8.507059e+37
        %v2094 = vand.u32 %v2082, 2147483648
        %v2095 = vor.u32 1.1754944e-38, %v2094
        %v2096 = vsel %vm2093, %v2095, %v2091
        %v2097 = vmul.f32 %v2072, %v2096
        %v2098 = vmin.f32 %v2097, 1.0
        %v2099 = vmax.f32 %v2098, -1.0
        %v2100 = vmul.f32 %v1736, %v1736
        %v2101 = vmin.f32 16.0, %v2100
        %v2102 = vmul.f32 %v2101, 2.1237322e-06
        %v2103 = vadd.f32 %v2102, 0.00028619796
        %v2104 = vmul.f32 %v2101, %v2103
        %v2105 = vadd.f32 %v2104, 0.0036580483
        %v2106 = vmul.f32 %v2101, %v2105
        %v2107 = vadd.f32 %v2106, 0.05243302
        %v2108 = vmul.f32 %v2101, %v2107
        %v2109 = vadd.f32 %v2108, 0.18741608
        %v2110 = vmul.f32 %v2101, %v2109
        %v2111 = vadd.f32 %v2110, 1.1283791
        %v2112 = vmul.f32 %v1736, %v2111
        %v2113 = vmul.f32 %v2101, 3.8918573e-05
        %v2114 = vadd.f32 %v2113, 0.001143296
        %v2115 = vmul.f32 %v2101, %v2114
        %v2116 = vadd.f32 %v2115, 0.014752088
        %v2117 = vmul.f32 %v2101, %v2116
        %v2118 = vadd.f32 %v2117, 0.112945676
        %v2119 = vmul.f32 %v2101, %v2118
        %v2120 = vadd.f32 %v2119, 0.4994258
        %v2121 = vmul.f32 %v2101, %v2120
        %v2122 = vadd.f32 %v2121, 1.0
        %v2123 = vrcp.pop %v2122
        %v2124 = vmul.f32 %v2122, %v2123
        %v2125 = vsub.f32 1.0, %v2124
        %v2126 = vmul.f32 %v2123, %v2125
        %v2127 = vadd.f32 %v2123, %v2126
        %vm2128 = vweird.f32 %v2122
        %vm2129 = vweird.f32 %v2123
        %vm2130 = vmor %vm2128, %vm2129
        %v2131 = vsel %vm2130, %v2123, %v2127
        %v2132 = vand.u32 2147483647, %v2122
        %vm2133 = vcmp.eq.f32.partialorder %v2132, 8.507059e+37
        %v2134 = vand.u32 %v2122, 2147483648
        %v2135 = vor.u32 1.1754944e-38, %v2134
        %v2136 = vsel %vm2133, %v2135, %v2131
        %v2137 = vmul.f32 %v2112, %v2136
        %v2138 = vmin.f32 %v2137, 1.0
        %v2139 = vmax.f32 %v2138, -1.0
        %v2140 = vmul.f32 %v1737, %v1737
        %v2141 = vmin.f32 16.0, %v2140
        %v2142 = vmul.f32 %v2141, 2.1237322e-06
        %v2143 = vadd.f32 %v2142, 0.00028619796
        %v2144 = vmul.f32 %v2141, %v2143
        %v2145 = vadd.f32 %v2144, 0.0036580483
        %v2146 = vmul.f32 %v2141, %v2145
        %v2147 = vadd.f32 %v2146, 0.05243302
        %v2148 = vmul.f32 %v2141, %v2147
        %v2149 = vadd.f32 %v2148, 0.18741608
        %v2150 = vmul.f32 %v2141, %v2149
        %v2151 = vadd.f32 %v2150, 1.1283791
        %v2152 = vmul.f32 %v1737, %v2151
        %v2153 = vmul.f32 %v2141, 3.8918573e-05
        %v2154 = vadd.f32 %v2153, 0.001143296
        %v2155 = vmul.f32 %v2141, %v2154
        %v2156 = vadd.f32 %v2155, 0.014752088
        %v2157 = vmul.f32 %v2141, %v2156
        %v2158 = vadd.f32 %v2157, 0.112945676
        %v2159 = vmul.f32 %v2141, %v2158
        %v2160 = vadd.f32 %v2159, 0.4994258
        %v2161 = vmul.f32 %v2141, %v2160
        %v2162 = vadd.f32 %v2161, 1.0
        %v2163 = vrcp.pop %v2162
        %v2164 = vmul.f32 %v2162, %v2163
        %v2165 = vsub.f32 1.0, %v2164
        %v2166 = vmul.f32 %v2163, %v2165
        %v2167 = vadd.f32 %v2163, %v2166
        %vm2168 = vweird.f32 %v2162
        %vm2169 = vweird.f32 %v2163
        %vm2170 = vmor %vm2168, %vm2169
        %v2171 = vsel %vm2170, %v2163, %v2167
        %v2172 = vand.u32 2147483647, %v2162
        %vm2173 = vcmp.eq.f32.partialorder %v2172, 8.507059e+37
        %v2174 = vand.u32 %v2162, 2147483648
        %v2175 = vor.u32 1.1754944e-38, %v2174
        %v2176 = vsel %vm2173, %v2175, %v2171
        %v2177 = vmul.f32 %v2152, %v2176
        %v2178 = vmin.f32 %v2177, 1.0
        %v2179 = vmax.f32 %v2178, -1.0
        %v2180 = vmul.f32 %v1738, %v1738
        %v2181 = vmin.f32 16.0, %v2180
        %v2182 = vmul.f32 %v2181, 2.1237322e-06
        %v2183 = vadd.f32 %v2182, 0.00028619796
        %v2184 = vmul.f32 %v2181, %v2183
        %v2185 = vadd.f32 %v2184, 0.0036580483
        %v2186 = vmul.f32 %v2181, %v2185
        %v2187 = vadd.f32 %v2186, 0.05243302
        %v2188 = vmul.f32 %v2181, %v2187
        %v2189 = vadd.f32 %v2188, 0.18741608
        %v2190 = vmul.f32 %v2181, %v2189
        %v2191 = vadd.f32 %v2190, 1.1283791
        %v2192 = vmul.f32 %v1738, %v2191
        %v2193 = vmul.f32 %v2181, 3.8918573e-05
        %v2194 = vadd.f32 %v2193, 0.001143296
        %v2195 = vmul.f32 %v2181, %v2194
        %v2196 = vadd.f32 %v2195, 0.014752088
        %v2197 = vmul.f32 %v2181, %v2196
        %v2198 = vadd.f32 %v2197, 0.112945676
        %v2199 = vmul.f32 %v2181, %v2198
        %v2200 = vadd.f32 %v2199, 0.4994258
        %v2201 = vmul.f32 %v2181, %v2200
        %v2202 = vadd.f32 %v2201, 1.0
        %v2203 = vrcp.pop %v2202
        %v2204 = vmul.f32 %v2202, %v2203
        %v2205 = vsub.f32 1.0, %v2204
        %v2206 = vmul.f32 %v2203, %v2205
        %v2207 = vadd.f32 %v2203, %v2206
        %vm2208 = vweird.f32 %v2202
        %vm2209 = vweird.f32 %v2203
        %vm2210 = vmor %vm2208, %vm2209
        %v2211 = vsel %vm2210, %v2203, %v2207
        %v2212 = vand.u32 2147483647, %v2202
        %vm2213 = vcmp.eq.f32.partialorder %v2212, 8.507059e+37
        %v2214 = vand.u32 %v2202, 2147483648
        %v2215 = vor.u32 1.1754944e-38, %v2214
        %v2216 = vsel %vm2213, %v2215, %v2211
        %v2217 = vmul.f32 %v2192, %v2216
        %v2218 = vmin.f32 %v2217, 1.0
        %v2219 = vmax.f32 %v2218, -1.0
        %v2220 = vmul.f32 %v1739, %v1739
        %v2221 = vmin.f32 16.0, %v2220
        %v2222 = vmul.f32 %v2221, 2.1237322e-06
        %v2223 = vadd.f32 %v2222, 0.00028619796
        %v2224 = vmul.f32 %v2221, %v2223
        %v2225 = vadd.f32 %v2224, 0.0036580483
        %v2226 = vmul.f32 %v2221, %v2225
        %v2227 = vadd.f32 %v2226, 0.05243302
        %v2228 = vmul.f32 %v2221, %v2227
        %v2229 = vadd.f32 %v2228, 0.18741608
        %v2230 = vmul.f32 %v2221, %v2229
        %v2231 = vadd.f32 %v2230, 1.1283791
        %v2232 = vmul.f32 %v1739, %v2231
        %v2233 = vmul.f32 %v2221, 3.8918573e-05
        %v2234 = vadd.f32 %v2233, 0.001143296
        %v2235 = vmul.f32 %v2221, %v2234
        %v2236 = vadd.f32 %v2235, 0.014752088
        %v2237 = vmul.f32 %v2221, %v2236
        %v2238 = vadd.f32 %v2237, 0.112945676
        %v2239 = vmul.f32 %v2221, %v2238
        %v2240 = vadd.f32 %v2239, 0.4994258
        %v2241 = vmul.f32 %v2221, %v2240
        %v2242 = vadd.f32 %v2241, 1.0
        %v2243 = vrcp.pop %v2242
        %v2244 = vmul.f32 %v2242, %v2243
        %v2245 = vsub.f32 1.0, %v2244
        %v2246 = vmul.f32 %v2243, %v2245
        %v2247 = vadd.f32 %v2243, %v2246
        %vm2248 = vweird.f32 %v2242
        %vm2249 = vweird.f32 %v2243
        %vm2250 = vmor %vm2248, %vm2249
        %v2251 = vsel %vm2250, %v2243, %v2247
        %v2252 = vand.u32 2147483647, %v2242
        %vm2253 = vcmp.eq.f32.partialorder %v2252, 8.507059e+37
        %v2254 = vand.u32 %v2242, 2147483648
        %v2255 = vor.u32 1.1754944e-38, %v2254
        %v2256 = vsel %vm2253, %v2255, %v2251
        %v2257 = vmul.f32 %v2232, %v2256
        %v2258 = vmin.f32 %v2257, 1.0
        %v2259 = vmax.f32 %v2258, -1.0
        %v2260 = vadd.f32 %v1779, 1.0
        %v2261 = vadd.f32 %v1819, 1.0
        %v2262 = vadd.f32 %v1859, 1.0
        %v2263 = vadd.f32 %v1899, 1.0
        %v2264 = vadd.f32 %v1939, 1.0
        %v2265 = vadd.f32 %v1979, 1.0
        %v2266 = vadd.f32 %v2019, 1.0
        %v2267 = vadd.f32 %v2059, 1.0
        %v2268 = vadd.f32 %v2099, 1.0
        %v2269 = vadd.f32 %v2139, 1.0
        %v2270 = vadd.f32 %v2179, 1.0
        %v2271 = vadd.f32 %v2219, 1.0
        %v2272 = vadd.f32 %v2259, 1.0
        %v2273 = vmul.f32 %v1714, %v2260
        %v2274 = vmul.f32 %v1715, %v2261
        %v2275 = vmul.f32 %v1716, %v2262
        %v2276 = vmul.f32 %v1717, %v2263
        %v2277 = vmul.f32 %v1718, %v2264
        %v2278 = vmul.f32 %v1719, %v2265
        %v2279 = vmul.f32 %v1720, %v2266
        %v2280 = vmul.f32 %v1721, %v2267
        %v2281 = vmul.f32 %v1722, %v2268
        %v2282 = vmul.f32 %v1723, %v2269
        %v2283 = vmul.f32 %v1724, %v2270
        %v2284 = vmul.f32 %v1725, %v2271
        %v2285 = vmul.f32 %v1726, %v2272
        %v2286 = vld [vmem:[%s7] sm:$0xff]
        %v2287 = vld [vmem:[%s7 + $0x8] sm:$0xff]
        %v2288 = vld [vmem:[%s7 + $0x10] sm:$0xff]
        %v2289 = vld [vmem:[%s7 + $0x18] sm:$0xff]
        %v2290 = vld [vmem:[%s8] sm:$0x1]
        %v2292 = vperm.slane %v2290, 0
        %v2295 = vsel %vm568, %v2273, 0
        %v2298 = vsel %vm568, %v2274, 0
        %v2301 = vsel %vm568, %v2275, 0
        %v2304 = vsel %vm568, %v2276, 0
        %v2307 = vsel %vm568, %v2277, 0
        %v2310 = vsel %vm568, %v2278, 0
        %v2313 = vsel %vm568, %v2279, 0
        %v2316 = vsel %vm568, %v2280, 0
        %v2319 = vsel %vm568, %v2281, 0
        %v2322 = vsel %vm568, %v2282, 0
        %v2325 = vsel %vm568, %v2283, 0
        %v2328 = vsel %vm568, %v2284, 0
        %v2331 = vsel %vm568, %v2285, 0
        %2333 = vmatpush.msra.mxu0 0.0
        %2334 = vmatpush.msra.mxu0 0.0
        %2335 = vmatpush.msra.mxu0 0.0
        %2336 = vmatpush.msra.mxu0 0.0
        %2337 = vmatpush.msra.mxu0 0.0
        %2338 = vmatpush.msra.mxu0 0.0
        %2339 = vmatpush.msra.mxu0 0.0
        %2340 = vmatpush.msra.mxu0 0.0
        %2341 = vmatpush.msra.mxu0 0.0
        %2342 = vmatpush.msra.mxu0 0.0
        %2343 = vmatpush.msra.mxu0 0.0
        %2344 = vmatpush.msra.mxu0 0.0
        %2345 = vmatpush.msra.mxu0 %v2289
        %2346 = vmatpush.msra.mxu0 %v2288
        %2347 = vmatpush.msra.mxu0 %v2287
        %2348 = vmatpush.msra.mxu0 %v2286
        %2349 = vmatmul.f32.gmra.mxu0 %v2295
        %v2350 = vpop.f32.mrf.mxu0
        %v2351 = vadd.f32 %v2292, %v2350
        %2352 = vmatmul.f32.gmra.mxu0 %v2298
        %v2353 = vpop.f32.mrf.mxu0
        %v2354 = vadd.f32 %v2292, %v2353
        %2355 = vmatmul.f32.gmra.mxu0 %v2301
        %v2356 = vpop.f32.mrf.mxu0
        %v2357 = vadd.f32 %v2292, %v2356
        %2358 = vmatmul.f32.gmra.mxu0 %v2304
        %v2359 = vpop.f32.mrf.mxu0
        %v2360 = vadd.f32 %v2292, %v2359
        %2361 = vmatmul.f32.gmra.mxu0 %v2307
        %v2362 = vpop.f32.mrf.mxu0
        %v2363 = vadd.f32 %v2292, %v2362
        %2364 = vmatmul.f32.gmra.mxu0 %v2310
        %v2365 = vpop.f32.mrf.mxu0
        %v2366 = vadd.f32 %v2292, %v2365
        %2367 = vmatmul.f32.gmra.mxu0 %v2313
        %v2368 = vpop.f32.mrf.mxu0
        %v2369 = vadd.f32 %v2292, %v2368
        %2370 = vmatmul.f32.gmra.mxu0 %v2316
        %v2371 = vpop.f32.mrf.mxu0
        %v2372 = vadd.f32 %v2292, %v2371
        %2373 = vmatmul.f32.gmra.mxu0 %v2319
        %v2374 = vpop.f32.mrf.mxu0
        %v2375 = vadd.f32 %v2292, %v2374
        %2376 = vmatmul.f32.gmra.mxu0 %v2322
        %v2377 = vpop.f32.mrf.mxu0
        %v2378 = vadd.f32 %v2292, %v2377
        %2379 = vmatmul.f32.gmra.mxu0 %v2325
        %v2380 = vpop.f32.mrf.mxu0
        %v2381 = vadd.f32 %v2292, %v2380
        %2382 = vmatmul.f32.gmra.mxu0 %v2328
        %v2383 = vpop.f32.mrf.mxu0
        %v2384 = vadd.f32 %v2292, %v2383
        %2385 = vmatmul.f32.gmra.mxu0 %v2331
        %v2386 = vpop.f32.mrf.mxu0
        %v2387 = vadd.f32 %v2292, %v2386
        %2388 = vdwg.mxu0
        %v2389 = vmul.f32 %v2351, %v2351
        %v2390 = vmul.f32 %v2354, %v2354
        %v2391 = vmul.f32 %v2357, %v2357
        %v2392 = vmul.f32 %v2360, %v2360
        %v2393 = vmul.f32 %v2363, %v2363
        %v2394 = vmul.f32 %v2366, %v2366
        %v2395 = vmul.f32 %v2369, %v2369
        %v2396 = vmul.f32 %v2372, %v2372
        %v2397 = vmul.f32 %v2375, %v2375
        %v2398 = vmul.f32 %v2378, %v2378
        %v2399 = vmul.f32 %v2381, %v2381
        %v2400 = vmul.f32 %v2384, %v2384
        %v2401 = vmul.f32 %v2387, %v2387
        %v2402 = vsel %vm568, %v2389, 0.0
        %2403 = vadd.xlane.f32.xlu0 %v2402
        %v2404 = vpop.xlane.xlu0 %2403
        %v2405 = vsel %vm568, %v2390, 0.0
        %2406 = vadd.xlane.f32.xlu0 %v2405
        %v2407 = vpop.xlane.xlu0 %2406
        %v2408 = vsel %vm568, %v2391, 0.0
        %2409 = vadd.xlane.f32.xlu0 %v2408
        %v2410 = vpop.xlane.xlu0 %2409
        %v2411 = vsel %vm568, %v2392, 0.0
        %2412 = vadd.xlane.f32.xlu0 %v2411
        %v2413 = vpop.xlane.xlu0 %2412
        %v2414 = vsel %vm568, %v2393, 0.0
        %2415 = vadd.xlane.f32.xlu0 %v2414
        %v2416 = vpop.xlane.xlu0 %2415
        %v2417 = vsel %vm568, %v2394, 0.0
        %2418 = vadd.xlane.f32.xlu0 %v2417
        %v2419 = vpop.xlane.xlu0 %2418
        %v2420 = vsel %vm568, %v2395, 0.0
        %2421 = vadd.xlane.f32.xlu0 %v2420
        %v2422 = vpop.xlane.xlu0 %2421
        %v2423 = vsel %vm568, %v2396, 0.0
        %2424 = vadd.xlane.f32.xlu0 %v2423
        %v2425 = vpop.xlane.xlu0 %2424
        %v2426 = vsel %vm568, %v2397, 0.0
        %2427 = vadd.xlane.f32.xlu0 %v2426
        %v2428 = vpop.xlane.xlu0 %2427
        %v2429 = vsel %vm568, %v2398, 0.0
        %2430 = vadd.xlane.f32.xlu0 %v2429
        %v2431 = vpop.xlane.xlu0 %2430
        %v2432 = vsel %vm568, %v2399, 0.0
        %2433 = vadd.xlane.f32.xlu0 %v2432
        %v2434 = vpop.xlane.xlu0 %2433
        %v2435 = vsel %vm568, %v2400, 0.0
        %2436 = vadd.xlane.f32.xlu0 %v2435
        %v2437 = vpop.xlane.xlu0 %2436
        %v2438 = vsel %vm568, %v2401, 0.0
        %2439 = vadd.xlane.f32.xlu0 %v2438
        %v2440 = vpop.xlane.xlu0 %2439
        %v2441 = vmul.f32 %v2404, %v614
        %v2442 = vmul.f32 %v2407, %v614
        %v2443 = vmul.f32 %v2410, %v614
        %v2444 = vmul.f32 %v2413, %v614
        %v2445 = vmul.f32 %v2416, %v614
        %v2446 = vmul.f32 %v2419, %v614
        %v2447 = vmul.f32 %v2422, %v614
        %v2448 = vmul.f32 %v2425, %v614
        %v2449 = vmul.f32 %v2428, %v614
        %v2450 = vmul.f32 %v2431, %v614
        %v2451 = vmul.f32 %v2434, %v614
        %v2452 = vmul.f32 %v2437, %v614
        %v2453 = vmul.f32 %v2440, %v614
        %v2454 = vadd.f32 %v2441, 1.1920929e-07
        %v2455 = vadd.f32 %v2442, 1.1920929e-07
        %v2456 = vadd.f32 %v2443, 1.1920929e-07
        %v2457 = vadd.f32 %v2444, 1.1920929e-07
        %v2458 = vadd.f32 %v2445, 1.1920929e-07
        %v2459 = vadd.f32 %v2446, 1.1920929e-07
        %v2460 = vadd.f32 %v2447, 1.1920929e-07
        %v2461 = vadd.f32 %v2448, 1.1920929e-07
        %v2462 = vadd.f32 %v2449, 1.1920929e-07
        %v2463 = vadd.f32 %v2450, 1.1920929e-07
        %v2464 = vadd.f32 %v2451, 1.1920929e-07
        %v2465 = vadd.f32 %v2452, 1.1920929e-07
        %v2466 = vadd.f32 %v2453, 1.1920929e-07
        %v2467 = vrsqrt.pop %v2454
        %v2468 = vmul.f32 %v2467, %v2454
        %v2469 = vmul.f32 %v2468, %v2467
        %v2470 = vmul.f32 0.5, %v2469
        %v2471 = vsub.f32 1.5, %v2470
        %v2472 = vmul.f32 %v2467, %v2471
        %vm2473 = vweird.f32 %v2454
        %vm2474 = vweird.f32 %v2467
        %vm2475 = vmor %vm2473, %vm2474
        %v2476 = vsel %vm2475, %v2467, %v2472
        %v2477 = vrsqrt.pop %v2455
        %v2478 = vmul.f32 %v2477, %v2455
        %v2479 = vmul.f32 %v2478, %v2477
        %v2480 = vmul.f32 0.5, %v2479
        %v2481 = vsub.f32 1.5, %v2480
        %v2482 = vmul.f32 %v2477, %v2481
        %vm2483 = vweird.f32 %v2455
        %vm2484 = vweird.f32 %v2477
        %vm2485 = vmor %vm2483, %vm2484
        %v2486 = vsel %vm2485, %v2477, %v2482
        %v2487 = vrsqrt.pop %v2456
        %v2488 = vmul.f32 %v2487, %v2456
        %v2489 = vmul.f32 %v2488, %v2487
        %v2490 = vmul.f32 0.5, %v2489
        %v2491 = vsub.f32 1.5, %v2490
        %v2492 = vmul.f32 %v2487, %v2491
        %vm2493 = vweird.f32 %v2456
        %vm2494 = vweird.f32 %v2487
        %vm2495 = vmor %vm2493, %vm2494
        %v2496 = vsel %vm2495, %v2487, %v2492
        %v2497 = vrsqrt.pop %v2457
        %v2498 = vmul.f32 %v2497, %v2457
        %v2499 = vmul.f32 %v2498, %v2497
        %v2500 = vmul.f32 0.5, %v2499
        %v2501 = vsub.f32 1.5, %v2500
        %v2502 = vmul.f32 %v2497, %v2501
        %vm2503 = vweird.f32 %v2457
        %vm2504 = vweird.f32 %v2497
        %vm2505 = vmor %vm2503, %vm2504
        %v2506 = vsel %vm2505, %v2497, %v2502
        %v2507 = vrsqrt.pop %v2458
        %v2508 = vmul.f32 %v2507, %v2458
        %v2509 = vmul.f32 %v2508, %v2507
        %v2510 = vmul.f32 0.5, %v2509
        %v2511 = vsub.f32 1.5, %v2510
        %v2512 = vmul.f32 %v2507, %v2511
        %vm2513 = vweird.f32 %v2458
        %vm2514 = vweird.f32 %v2507
        %vm2515 = vmor %vm2513, %vm2514
        %v2516 = vsel %vm2515, %v2507, %v2512
        %v2517 = vrsqrt.pop %v2459
        %v2518 = vmul.f32 %v2517, %v2459
        %v2519 = vmul.f32 %v2518, %v2517
        %v2520 = vmul.f32 0.5, %v2519
        %v2521 = vsub.f32 1.5, %v2520
        %v2522 = vmul.f32 %v2517, %v2521
        %vm2523 = vweird.f32 %v2459
        %vm2524 = vweird.f32 %v2517
        %vm2525 = vmor %vm2523, %vm2524
        %v2526 = vsel %vm2525, %v2517, %v2522
        %v2527 = vrsqrt.pop %v2460
        %v2528 = vmul.f32 %v2527, %v2460
        %v2529 = vmul.f32 %v2528, %v2527
        %v2530 = vmul.f32 0.5, %v2529
        %v2531 = vsub.f32 1.5, %v2530
        %v2532 = vmul.f32 %v2527, %v2531
        %vm2533 = vweird.f32 %v2460
        %vm2534 = vweird.f32 %v2527
        %vm2535 = vmor %vm2533, %vm2534
        %v2536 = vsel %vm2535, %v2527, %v2532
        %v2537 = vrsqrt.pop %v2461
        %v2538 = vmul.f32 %v2537, %v2461
        %v2539 = vmul.f32 %v2538, %v2537
        %v2540 = vmul.f32 0.5, %v2539
        %v2541 = vsub.f32 1.5, %v2540
        %v2542 = vmul.f32 %v2537, %v2541
        %vm2543 = vweird.f32 %v2461
        %vm2544 = vweird.f32 %v2537
        %vm2545 = vmor %vm2543, %vm2544
        %v2546 = vsel %vm2545, %v2537, %v2542
        %v2547 = vrsqrt.pop %v2462
        %v2548 = vmul.f32 %v2547, %v2462
        %v2549 = vmul.f32 %v2548, %v2547
        %v2550 = vmul.f32 0.5, %v2549
        %v2551 = vsub.f32 1.5, %v2550
        %v2552 = vmul.f32 %v2547, %v2551
        %vm2553 = vweird.f32 %v2462
        %vm2554 = vweird.f32 %v2547
        %vm2555 = vmor %vm2553, %vm2554
        %v2556 = vsel %vm2555, %v2547, %v2552
        %v2557 = vrsqrt.pop %v2463
        %v2558 = vmul.f32 %v2557, %v2463
        %v2559 = vmul.f32 %v2558, %v2557
        %v2560 = vmul.f32 0.5, %v2559
        %v2561 = vsub.f32 1.5, %v2560
        %v2562 = vmul.f32 %v2557, %v2561
        %vm2563 = vweird.f32 %v2463
        %vm2564 = vweird.f32 %v2557
        %vm2565 = vmor %vm2563, %vm2564
        %v2566 = vsel %vm2565, %v2557, %v2562
        %v2567 = vrsqrt.pop %v2464
        %v2568 = vmul.f32 %v2567, %v2464
        %v2569 = vmul.f32 %v2568, %v2567
        %v2570 = vmul.f32 0.5, %v2569
        %v2571 = vsub.f32 1.5, %v2570
        %v2572 = vmul.f32 %v2567, %v2571
        %vm2573 = vweird.f32 %v2464
        %vm2574 = vweird.f32 %v2567
        %vm2575 = vmor %vm2573, %vm2574
        %v2576 = vsel %vm2575, %v2567, %v2572
        %v2577 = vrsqrt.pop %v2465
        %v2578 = vmul.f32 %v2577, %v2465
        %v2579 = vmul.f32 %v2578, %v2577
        %v2580 = vmul.f32 0.5, %v2579
        %v2581 = vsub.f32 1.5, %v2580
        %v2582 = vmul.f32 %v2577, %v2581
        %vm2583 = vweird.f32 %v2465
        %vm2584 = vweird.f32 %v2577
        %vm2585 = vmor %vm2583, %vm2584
        %v2586 = vsel %vm2585, %v2577, %v2582
        %v2587 = vrsqrt.pop %v2466
        %v2588 = vmul.f32 %v2587, %v2466
        %v2589 = vmul.f32 %v2588, %v2587
        %v2590 = vmul.f32 0.5, %v2589
        %v2591 = vsub.f32 1.5, %v2590
        %v2592 = vmul.f32 %v2587, %v2591
        %vm2593 = vweird.f32 %v2466
        %vm2594 = vweird.f32 %v2587
        %vm2595 = vmor %vm2593, %vm2594
        %v2596 = vsel %vm2595, %v2587, %v2592
        %v2597 = vmul.f32 %v2351, %v2476
        %v2598 = vmul.f32 %v2354, %v2486
        %v2599 = vmul.f32 %v2357, %v2496
        %v2600 = vmul.f32 %v2360, %v2506
        %v2601 = vmul.f32 %v2363, %v2516
        %v2602 = vmul.f32 %v2366, %v2526
        %v2603 = vmul.f32 %v2369, %v2536
        %v2604 = vmul.f32 %v2372, %v2546
        %v2605 = vmul.f32 %v2375, %v2556
        %v2606 = vmul.f32 %v2378, %v2566
        %v2607 = vmul.f32 %v2381, %v2576
        %v2608 = vmul.f32 %v2384, %v2586
        %v2609 = vmul.f32 %v2387, %v2596
        %v2610 = vld [vmem:[%s9] sm:$0x1]
        %v2612 = vperm.slane %v2610, 0
        %v2614 = vmul.f32 %v2597, %v2612
        %v2615 = vmul.f32 %v2598, %v2612
        %v2616 = vmul.f32 %v2599, %v2612
        %v2617 = vmul.f32 %v2600, %v2612
        %v2618 = vmul.f32 %v2601, %v2612
        %v2619 = vmul.f32 %v2602, %v2612
        %v2620 = vmul.f32 %v2603, %v2612
        %v2621 = vmul.f32 %v2604, %v2612
        %v2622 = vmul.f32 %v2605, %v2612
        %v2623 = vmul.f32 %v2606, %v2612
        %v2624 = vmul.f32 %v2607, %v2612
        %v2625 = vmul.f32 %v2608, %v2612
        %v2626 = vmul.f32 %v2609, %v2612
        %v2627 = vmul.f32 %v2614, 0.5
        %v2628 = vmul.f32 %v2615, 0.5
        %v2629 = vmul.f32 %v2616, 0.5
        %v2630 = vmul.f32 %v2617, 0.5
        %v2631 = vmul.f32 %v2618, 0.5
        %v2632 = vmul.f32 %v2619, 0.5
        %v2633 = vmul.f32 %v2620, 0.5
        %v2634 = vmul.f32 %v2621, 0.5
        %v2635 = vmul.f32 %v2622, 0.5
        %v2636 = vmul.f32 %v2623, 0.5
        %v2637 = vmul.f32 %v2624, 0.5
        %v2638 = vmul.f32 %v2625, 0.5
        %v2639 = vmul.f32 %v2626, 0.5
        %v2640 = vmul.f32 %v2614, 0.70710677
        %v2641 = vmul.f32 %v2615, 0.70710677
        %v2642 = vmul.f32 %v2616, 0.70710677
        %v2643 = vmul.f32 %v2617, 0.70710677
        %v2644 = vmul.f32 %v2618, 0.70710677
        %v2645 = vmul.f32 %v2619, 0.70710677
        %v2646 = vmul.f32 %v2620, 0.70710677
        %v2647 = vmul.f32 %v2621, 0.70710677
        %v2648 = vmul.f32 %v2622, 0.70710677
        %v2649 = vmul.f32 %v2623, 0.70710677
        %v2650 = vmul.f32 %v2624, 0.70710677
        %v2651 = vmul.f32 %v2625, 0.70710677
        %v2652 = vmul.f32 %v2626, 0.70710677
        %v2653 = vmul.f32 %v2640, %v2640
        %v2654 = vmin.f32 16.0, %v2653
        %v2655 = vmul.f32 %v2654, 2.1237322e-06
        %v2656 = vadd.f32 %v2655, 0.00028619796
        %v2657 = vmul.f32 %v2654, %v2656
        %v2658 = vadd.f32 %v2657, 0.0036580483
        %v2659 = vmul.f32 %v2654, %v2658
        %v2660 = vadd.f32 %v2659, 0.05243302
        %v2661 = vmul.f32 %v2654, %v2660
        %v2662 = vadd.f32 %v2661, 0.18741608
        %v2663 = vmul.f32 %v2654, %v2662
        %v2664 = vadd.f32 %v2663, 1.1283791
        %v2665 = vmul.f32 %v2640, %v2664
        %v2666 = vmul.f32 %v2654, 3.8918573e-05
        %v2667 = vadd.f32 %v2666, 0.001143296
        %v2668 = vmul.f32 %v2654, %v2667
        %v2669 = vadd.f32 %v2668, 0.014752088
        %v2670 = vmul.f32 %v2654, %v2669
        %v2671 = vadd.f32 %v2670, 0.112945676
        %v2672 = vmul.f32 %v2654, %v2671
        %v2673 = vadd.f32 %v2672, 0.4994258
        %v2674 = vmul.f32 %v2654, %v2673
        %v2675 = vadd.f32 %v2674, 1.0
        %v2676 = vrcp.pop %v2675
        %v2677 = vmul.f32 %v2675, %v2676
        %v2678 = vsub.f32 1.0, %v2677
        %v2679 = vmul.f32 %v2676, %v2678
        %v2680 = vadd.f32 %v2676, %v2679
        %vm2681 = vweird.f32 %v2675
        %vm2682 = vweird.f32 %v2676
        %vm2683 = vmor %vm2681, %vm2682
        %v2684 = vsel %vm2683, %v2676, %v2680
        %v2685 = vand.u32 2147483647, %v2675
        %vm2686 = vcmp.eq.f32.partialorder %v2685, 8.507059e+37
        %v2687 = vand.u32 %v2675, 2147483648
        %v2688 = vor.u32 1.1754944e-38, %v2687
        %v2689 = vsel %vm2686, %v2688, %v2684
        %v2690 = vmul.f32 %v2665, %v2689
        %v2691 = vmin.f32 %v2690, 1.0
        %v2692 = vmax.f32 %v2691, -1.0
        %v2693 = vmul.f32 %v2641, %v2641
        %v2694 = vmin.f32 16.0, %v2693
        %v2695 = vmul.f32 %v2694, 2.1237322e-06
        %v2696 = vadd.f32 %v2695, 0.00028619796
        %v2697 = vmul.f32 %v2694, %v2696
        %v2698 = vadd.f32 %v2697, 0.0036580483
        %v2699 = vmul.f32 %v2694, %v2698
        %v2700 = vadd.f32 %v2699, 0.05243302
        %v2701 = vmul.f32 %v2694, %v2700
        %v2702 = vadd.f32 %v2701, 0.18741608
        %v2703 = vmul.f32 %v2694, %v2702
        %v2704 = vadd.f32 %v2703, 1.1283791
        %v2705 = vmul.f32 %v2641, %v2704
        %v2706 = vmul.f32 %v2694, 3.8918573e-05
        %v2707 = vadd.f32 %v2706, 0.001143296
        %v2708 = vmul.f32 %v2694, %v2707
        %v2709 = vadd.f32 %v2708, 0.014752088
        %v2710 = vmul.f32 %v2694, %v2709
        %v2711 = vadd.f32 %v2710, 0.112945676
        %v2712 = vmul.f32 %v2694, %v2711
        %v2713 = vadd.f32 %v2712, 0.4994258
        %v2714 = vmul.f32 %v2694, %v2713
        %v2715 = vadd.f32 %v2714, 1.0
        %v2716 = vrcp.pop %v2715
        %v2717 = vmul.f32 %v2715, %v2716
        %v2718 = vsub.f32 1.0, %v2717
        %v2719 = vmul.f32 %v2716, %v2718
        %v2720 = vadd.f32 %v2716, %v2719
        %vm2721 = vweird.f32 %v2715
        %vm2722 = vweird.f32 %v2716
        %vm2723 = vmor %vm2721, %vm2722
        %v2724 = vsel %vm2723, %v2716, %v2720
        %v2725 = vand.u32 2147483647, %v2715
        %vm2726 = vcmp.eq.f32.partialorder %v2725, 8.507059e+37
        %v2727 = vand.u32 %v2715, 2147483648
        %v2728 = vor.u32 1.1754944e-38, %v2727
        %v2729 = vsel %vm2726, %v2728, %v2724
        %v2730 = vmul.f32 %v2705, %v2729
        %v2731 = vmin.f32 %v2730, 1.0
        %v2732 = vmax.f32 %v2731, -1.0
        %v2733 = vmul.f32 %v2642, %v2642
        %v2734 = vmin.f32 16.0, %v2733
        %v2735 = vmul.f32 %v2734, 2.1237322e-06
        %v2736 = vadd.f32 %v2735, 0.00028619796
        %v2737 = vmul.f32 %v2734, %v2736
        %v2738 = vadd.f32 %v2737, 0.0036580483
        %v2739 = vmul.f32 %v2734, %v2738
        %v2740 = vadd.f32 %v2739, 0.05243302
        %v2741 = vmul.f32 %v2734, %v2740
        %v2742 = vadd.f32 %v2741, 0.18741608
        %v2743 = vmul.f32 %v2734, %v2742
        %v2744 = vadd.f32 %v2743, 1.1283791
        %v2745 = vmul.f32 %v2642, %v2744
        %v2746 = vmul.f32 %v2734, 3.8918573e-05
        %v2747 = vadd.f32 %v2746, 0.001143296
        %v2748 = vmul.f32 %v2734, %v2747
        %v2749 = vadd.f32 %v2748, 0.014752088
        %v2750 = vmul.f32 %v2734, %v2749
        %v2751 = vadd.f32 %v2750, 0.112945676
        %v2752 = vmul.f32 %v2734, %v2751
        %v2753 = vadd.f32 %v2752, 0.4994258
        %v2754 = vmul.f32 %v2734, %v2753
        %v2755 = vadd.f32 %v2754, 1.0
        %v2756 = vrcp.pop %v2755
        %v2757 = vmul.f32 %v2755, %v2756
        %v2758 = vsub.f32 1.0, %v2757
        %v2759 = vmul.f32 %v2756, %v2758
        %v2760 = vadd.f32 %v2756, %v2759
        %vm2761 = vweird.f32 %v2755
        %vm2762 = vweird.f32 %v2756
        %vm2763 = vmor %vm2761, %vm2762
        %v2764 = vsel %vm2763, %v2756, %v2760
        %v2765 = vand.u32 2147483647, %v2755
        %vm2766 = vcmp.eq.f32.partialorder %v2765, 8.507059e+37
        %v2767 = vand.u32 %v2755, 2147483648
        %v2768 = vor.u32 1.1754944e-38, %v2767
        %v2769 = vsel %vm2766, %v2768, %v2764
        %v2770 = vmul.f32 %v2745, %v2769
        %v2771 = vmin.f32 %v2770, 1.0
        %v2772 = vmax.f32 %v2771, -1.0
        %v2773 = vmul.f32 %v2643, %v2643
        %v2774 = vmin.f32 16.0, %v2773
        %v2775 = vmul.f32 %v2774, 2.1237322e-06
        %v2776 = vadd.f32 %v2775, 0.00028619796
        %v2777 = vmul.f32 %v2774, %v2776
        %v2778 = vadd.f32 %v2777, 0.0036580483
        %v2779 = vmul.f32 %v2774, %v2778
        %v2780 = vadd.f32 %v2779, 0.05243302
        %v2781 = vmul.f32 %v2774, %v2780
        %v2782 = vadd.f32 %v2781, 0.18741608
        %v2783 = vmul.f32 %v2774, %v2782
        %v2784 = vadd.f32 %v2783, 1.1283791
        %v2785 = vmul.f32 %v2643, %v2784
        %v2786 = vmul.f32 %v2774, 3.8918573e-05
        %v2787 = vadd.f32 %v2786, 0.001143296
        %v2788 = vmul.f32 %v2774, %v2787
        %v2789 = vadd.f32 %v2788, 0.014752088
        %v2790 = vmul.f32 %v2774, %v2789
        %v2791 = vadd.f32 %v2790, 0.112945676
        %v2792 = vmul.f32 %v2774, %v2791
        %v2793 = vadd.f32 %v2792, 0.4994258
        %v2794 = vmul.f32 %v2774, %v2793
        %v2795 = vadd.f32 %v2794, 1.0
        %v2796 = vrcp.pop %v2795
        %v2797 = vmul.f32 %v2795, %v2796
        %v2798 = vsub.f32 1.0, %v2797
        %v2799 = vmul.f32 %v2796, %v2798
        %v2800 = vadd.f32 %v2796, %v2799
        %vm2801 = vweird.f32 %v2795
        %vm2802 = vweird.f32 %v2796
        %vm2803 = vmor %vm2801, %vm2802
        %v2804 = vsel %vm2803, %v2796, %v2800
        %v2805 = vand.u32 2147483647, %v2795
        %vm2806 = vcmp.eq.f32.partialorder %v2805, 8.507059e+37
        %v2807 = vand.u32 %v2795, 2147483648
        %v2808 = vor.u32 1.1754944e-38, %v2807
        %v2809 = vsel %vm2806, %v2808, %v2804
        %v2810 = vmul.f32 %v2785, %v2809
        %v2811 = vmin.f32 %v2810, 1.0
        %v2812 = vmax.f32 %v2811, -1.0
        %v2813 = vmul.f32 %v2644, %v2644
        %v2814 = vmin.f32 16.0, %v2813
        %v2815 = vmul.f32 %v2814, 2.1237322e-06
        %v2816 = vadd.f32 %v2815, 0.00028619796
        %v2817 = vmul.f32 %v2814, %v2816
        %v2818 = vadd.f32 %v2817, 0.0036580483
        %v2819 = vmul.f32 %v2814, %v2818
        %v2820 = vadd.f32 %v2819, 0.05243302
        %v2821 = vmul.f32 %v2814, %v2820
        %v2822 = vadd.f32 %v2821, 0.18741608
        %v2823 = vmul.f32 %v2814, %v2822
        %v2824 = vadd.f32 %v2823, 1.1283791
        %v2825 = vmul.f32 %v2644, %v2824
        %v2826 = vmul.f32 %v2814, 3.8918573e-05
        %v2827 = vadd.f32 %v2826, 0.001143296
        %v2828 = vmul.f32 %v2814, %v2827
        %v2829 = vadd.f32 %v2828, 0.014752088
        %v2830 = vmul.f32 %v2814, %v2829
        %v2831 = vadd.f32 %v2830, 0.112945676
        %v2832 = vmul.f32 %v2814, %v2831
        %v2833 = vadd.f32 %v2832, 0.4994258
        %v2834 = vmul.f32 %v2814, %v2833
        %v2835 = vadd.f32 %v2834, 1.0
        %v2836 = vrcp.pop %v2835
        %v2837 = vmul.f32 %v2835, %v2836
        %v2838 = vsub.f32 1.0, %v2837
        %v2839 = vmul.f32 %v2836, %v2838
        %v2840 = vadd.f32 %v2836, %v2839
        %vm2841 = vweird.f32 %v2835
        %vm2842 = vweird.f32 %v2836
        %vm2843 = vmor %vm2841, %vm2842
        %v2844 = vsel %vm2843, %v2836, %v2840
        %v2845 = vand.u32 2147483647, %v2835
        %vm2846 = vcmp.eq.f32.partialorder %v2845, 8.507059e+37
        %v2847 = vand.u32 %v2835, 2147483648
        %v2848 = vor.u32 1.1754944e-38, %v2847
        %v2849 = vsel %vm2846, %v2848, %v2844
        %v2850 = vmul.f32 %v2825, %v2849
        %v2851 = vmin.f32 %v2850, 1.0
        %v2852 = vmax.f32 %v2851, -1.0
        %v2853 = vmul.f32 %v2645, %v2645
        %v2854 = vmin.f32 16.0, %v2853
        %v2855 = vmul.f32 %v2854, 2.1237322e-06
        %v2856 = vadd.f32 %v2855, 0.00028619796
        %v2857 = vmul.f32 %v2854, %v2856
        %v2858 = vadd.f32 %v2857, 0.0036580483
        %v2859 = vmul.f32 %v2854, %v2858
        %v2860 = vadd.f32 %v2859, 0.05243302
        %v2861 = vmul.f32 %v2854, %v2860
        %v2862 = vadd.f32 %v2861, 0.18741608
        %v2863 = vmul.f32 %v2854, %v2862
        %v2864 = vadd.f32 %v2863, 1.1283791
        %v2865 = vmul.f32 %v2645, %v2864
        %v2866 = vmul.f32 %v2854, 3.8918573e-05
        %v2867 = vadd.f32 %v2866, 0.001143296
        %v2868 = vmul.f32 %v2854, %v2867
        %v2869 = vadd.f32 %v2868, 0.014752088
        %v2870 = vmul.f32 %v2854, %v2869
        %v2871 = vadd.f32 %v2870, 0.112945676
        %v2872 = vmul.f32 %v2854, %v2871
        %v2873 = vadd.f32 %v2872, 0.4994258
        %v2874 = vmul.f32 %v2854, %v2873
        %v2875 = vadd.f32 %v2874, 1.0
        %v2876 = vrcp.pop %v2875
        %v2877 = vmul.f32 %v2875, %v2876
        %v2878 = vsub.f32 1.0, %v2877
        %v2879 = vmul.f32 %v2876, %v2878
        %v2880 = vadd.f32 %v2876, %v2879
        %vm2881 = vweird.f32 %v2875
        %vm2882 = vweird.f32 %v2876
        %vm2883 = vmor %vm2881, %vm2882
        %v2884 = vsel %vm2883, %v2876, %v2880
        %v2885 = vand.u32 2147483647, %v2875
        %vm2886 = vcmp.eq.f32.partialorder %v2885, 8.507059e+37
        %v2887 = vand.u32 %v2875, 2147483648
        %v2888 = vor.u32 1.1754944e-38, %v2887
        %v2889 = vsel %vm2886, %v2888, %v2884
        %v2890 = vmul.f32 %v2865, %v2889
        %v2891 = vmin.f32 %v2890, 1.0
        %v2892 = vmax.f32 %v2891, -1.0
        %v2893 = vmul.f32 %v2646, %v2646
        %v2894 = vmin.f32 16.0, %v2893
        %v2895 = vmul.f32 %v2894, 2.1237322e-06
        %v2896 = vadd.f32 %v2895, 0.00028619796
        %v2897 = vmul.f32 %v2894, %v2896
        %v2898 = vadd.f32 %v2897, 0.0036580483
        %v2899 = vmul.f32 %v2894, %v2898
        %v2900 = vadd.f32 %v2899, 0.05243302
        %v2901 = vmul.f32 %v2894, %v2900
        %v2902 = vadd.f32 %v2901, 0.18741608
        %v2903 = vmul.f32 %v2894, %v2902
        %v2904 = vadd.f32 %v2903, 1.1283791
        %v2905 = vmul.f32 %v2646, %v2904
        %v2906 = vmul.f32 %v2894, 3.8918573e-05
        %v2907 = vadd.f32 %v2906, 0.001143296
        %v2908 = vmul.f32 %v2894, %v2907
        %v2909 = vadd.f32 %v2908, 0.014752088
        %v2910 = vmul.f32 %v2894, %v2909
        %v2911 = vadd.f32 %v2910, 0.112945676
        %v2912 = vmul.f32 %v2894, %v2911
        %v2913 = vadd.f32 %v2912, 0.4994258
        %v2914 = vmul.f32 %v2894, %v2913
        %v2915 = vadd.f32 %v2914, 1.0
        %v2916 = vrcp.pop %v2915
        %v2917 = vmul.f32 %v2915, %v2916
        %v2918 = vsub.f32 1.0, %v2917
        %v2919 = vmul.f32 %v2916, %v2918
        %v2920 = vadd.f32 %v2916, %v2919
        %vm2921 = vweird.f32 %v2915
        %vm2922 = vweird.f32 %v2916
        %vm2923 = vmor %vm2921, %vm2922
        %v2924 = vsel %vm2923, %v2916, %v2920
        %v2925 = vand.u32 2147483647, %v2915
        %vm2926 = vcmp.eq.f32.partialorder %v2925, 8.507059e+37
        %v2927 = vand.u32 %v2915, 2147483648
        %v2928 = vor.u32 1.1754944e-38, %v2927
        %v2929 = vsel %vm2926, %v2928, %v2924
        %v2930 = vmul.f32 %v2905, %v2929
        %v2931 = vmin.f32 %v2930, 1.0
        %v2932 = vmax.f32 %v2931, -1.0
        %v2933 = vmul.f32 %v2647, %v2647
        %v2934 = vmin.f32 16.0, %v2933
        %v2935 = vmul.f32 %v2934, 2.1237322e-06
        %v2936 = vadd.f32 %v2935, 0.00028619796
        %v2937 = vmul.f32 %v2934, %v2936
        %v2938 = vadd.f32 %v2937, 0.0036580483
        %v2939 = vmul.f32 %v2934, %v2938
        %v2940 = vadd.f32 %v2939, 0.05243302
        %v2941 = vmul.f32 %v2934, %v2940
        %v2942 = vadd.f32 %v2941, 0.18741608
        %v2943 = vmul.f32 %v2934, %v2942
        %v2944 = vadd.f32 %v2943, 1.1283791
        %v2945 = vmul.f32 %v2647, %v2944
        %v2946 = vmul.f32 %v2934, 3.8918573e-05
        %v2947 = vadd.f32 %v2946, 0.001143296
        %v2948 = vmul.f32 %v2934, %v2947
        %v2949 = vadd.f32 %v2948, 0.014752088
        %v2950 = vmul.f32 %v2934, %v2949
        %v2951 = vadd.f32 %v2950, 0.112945676
        %v2952 = vmul.f32 %v2934, %v2951
        %v2953 = vadd.f32 %v2952, 0.4994258
        %v2954 = vmul.f32 %v2934, %v2953
        %v2955 = vadd.f32 %v2954, 1.0
        %v2956 = vrcp.pop %v2955
        %v2957 = vmul.f32 %v2955, %v2956
        %v2958 = vsub.f32 1.0, %v2957
        %v2959 = vmul.f32 %v2956, %v2958
        %v2960 = vadd.f32 %v2956, %v2959
        %vm2961 = vweird.f32 %v2955
        %vm2962 = vweird.f32 %v2956
        %vm2963 = vmor %vm2961, %vm2962
        %v2964 = vsel %vm2963, %v2956, %v2960
        %v2965 = vand.u32 2147483647, %v2955
        %vm2966 = vcmp.eq.f32.partialorder %v2965, 8.507059e+37
        %v2967 = vand.u32 %v2955, 2147483648
        %v2968 = vor.u32 1.1754944e-38, %v2967
        %v2969 = vsel %vm2966, %v2968, %v2964
        %v2970 = vmul.f32 %v2945, %v2969
        %v2971 = vmin.f32 %v2970, 1.0
        %v2972 = vmax.f32 %v2971, -1.0
        %v2973 = vmul.f32 %v2648, %v2648
        %v2974 = vmin.f32 16.0, %v2973
        %v2975 = vmul.f32 %v2974, 2.1237322e-06
        %v2976 = vadd.f32 %v2975, 0.00028619796
        %v2977 = vmul.f32 %v2974, %v2976
        %v2978 = vadd.f32 %v2977, 0.0036580483
        %v2979 = vmul.f32 %v2974, %v2978
        %v2980 = vadd.f32 %v2979, 0.05243302
        %v2981 = vmul.f32 %v2974, %v2980
        %v2982 = vadd.f32 %v2981, 0.18741608
        %v2983 = vmul.f32 %v2974, %v2982
        %v2984 = vadd.f32 %v2983, 1.1283791
        %v2985 = vmul.f32 %v2648, %v2984
        %v2986 = vmul.f32 %v2974, 3.8918573e-05
        %v2987 = vadd.f32 %v2986, 0.001143296
        %v2988 = vmul.f32 %v2974, %v2987
        %v2989 = vadd.f32 %v2988, 0.014752088
        %v2990 = vmul.f32 %v2974, %v2989
        %v2991 = vadd.f32 %v2990, 0.112945676
        %v2992 = vmul.f32 %v2974, %v2991
        %v2993 = vadd.f32 %v2992, 0.4994258
        %v2994 = vmul.f32 %v2974, %v2993
        %v2995 = vadd.f32 %v2994, 1.0
        %v2996 = vrcp.pop %v2995
        %v2997 = vmul.f32 %v2995, %v2996
        %v2998 = vsub.f32 1.0, %v2997
        %v2999 = vmul.f32 %v2996, %v2998
        %v3000 = vadd.f32 %v2996, %v2999
        %vm3001 = vweird.f32 %v2995
        %vm3002 = vweird.f32 %v2996
        %vm3003 = vmor %vm3001, %vm3002
        %v3004 = vsel %vm3003, %v2996, %v3000
        %v3005 = vand.u32 2147483647, %v2995
        %vm3006 = vcmp.eq.f32.partialorder %v3005, 8.507059e+37
        %v3007 = vand.u32 %v2995, 2147483648
        %v3008 = vor.u32 1.1754944e-38, %v3007
        %v3009 = vsel %vm3006, %v3008, %v3004
        %v3010 = vmul.f32 %v2985, %v3009
        %v3011 = vmin.f32 %v3010, 1.0
        %v3012 = vmax.f32 %v3011, -1.0
        %v3013 = vmul.f32 %v2649, %v2649
        %v3014 = vmin.f32 16.0, %v3013
        %v3015 = vmul.f32 %v3014, 2.1237322e-06
        %v3016 = vadd.f32 %v3015, 0.00028619796
        %v3017 = vmul.f32 %v3014, %v3016
        %v3018 = vadd.f32 %v3017, 0.0036580483
        %v3019 = vmul.f32 %v3014, %v3018
        %v3020 = vadd.f32 %v3019, 0.05243302
        %v3021 = vmul.f32 %v3014, %v3020
        %v3022 = vadd.f32 %v3021, 0.18741608
        %v3023 = vmul.f32 %v3014, %v3022
        %v3024 = vadd.f32 %v3023, 1.1283791
        %v3025 = vmul.f32 %v2649, %v3024
        %v3026 = vmul.f32 %v3014, 3.8918573e-05
        %v3027 = vadd.f32 %v3026, 0.001143296
        %v3028 = vmul.f32 %v3014, %v3027
        %v3029 = vadd.f32 %v3028, 0.014752088
        %v3030 = vmul.f32 %v3014, %v3029
        %v3031 = vadd.f32 %v3030, 0.112945676
        %v3032 = vmul.f32 %v3014, %v3031
        %v3033 = vadd.f32 %v3032, 0.4994258
        %v3034 = vmul.f32 %v3014, %v3033
        %v3035 = vadd.f32 %v3034, 1.0
        %v3036 = vrcp.pop %v3035
        %v3037 = vmul.f32 %v3035, %v3036
        %v3038 = vsub.f32 1.0, %v3037
        %v3039 = vmul.f32 %v3036, %v3038
        %v3040 = vadd.f32 %v3036, %v3039
        %vm3041 = vweird.f32 %v3035
        %vm3042 = vweird.f32 %v3036
        %vm3043 = vmor %vm3041, %vm3042
        %v3044 = vsel %vm3043, %v3036, %v3040
        %v3045 = vand.u32 2147483647, %v3035
        %vm3046 = vcmp.eq.f32.partialorder %v3045, 8.507059e+37
        %v3047 = vand.u32 %v3035, 2147483648
        %v3048 = vor.u32 1.1754944e-38, %v3047
        %v3049 = vsel %vm3046, %v3048, %v3044
        %v3050 = vmul.f32 %v3025, %v3049
        %v3051 = vmin.f32 %v3050, 1.0
        %v3052 = vmax.f32 %v3051, -1.0
        %v3053 = vmul.f32 %v2650, %v2650
        %v3054 = vmin.f32 16.0, %v3053
        %v3055 = vmul.f32 %v3054, 2.1237322e-06
        %v3056 = vadd.f32 %v3055, 0.00028619796
        %v3057 = vmul.f32 %v3054, %v3056
        %v3058 = vadd.f32 %v3057, 0.0036580483
        %v3059 = vmul.f32 %v3054, %v3058
        %v3060 = vadd.f32 %v3059, 0.05243302
        %v3061 = vmul.f32 %v3054, %v3060
        %v3062 = vadd.f32 %v3061, 0.18741608
        %v3063 = vmul.f32 %v3054, %v3062
        %v3064 = vadd.f32 %v3063, 1.1283791
        %v3065 = vmul.f32 %v2650, %v3064
        %v3066 = vmul.f32 %v3054, 3.8918573e-05
        %v3067 = vadd.f32 %v3066, 0.001143296
        %v3068 = vmul.f32 %v3054, %v3067
        %v3069 = vadd.f32 %v3068, 0.014752088
        %v3070 = vmul.f32 %v3054, %v3069
        %v3071 = vadd.f32 %v3070, 0.112945676
        %v3072 = vmul.f32 %v3054, %v3071
        %v3073 = vadd.f32 %v3072, 0.4994258
        %v3074 = vmul.f32 %v3054, %v3073
        %v3075 = vadd.f32 %v3074, 1.0
        %v3076 = vrcp.pop %v3075
        %v3077 = vmul.f32 %v3075, %v3076
        %v3078 = vsub.f32 1.0, %v3077
        %v3079 = vmul.f32 %v3076, %v3078
        %v3080 = vadd.f32 %v3076, %v3079
        %vm3081 = vweird.f32 %v3075
        %vm3082 = vweird.f32 %v3076
        %vm3083 = vmor %vm3081, %vm3082
        %v3084 = vsel %vm3083, %v3076, %v3080
        %v3085 = vand.u32 2147483647, %v3075
        %vm3086 = vcmp.eq.f32.partialorder %v3085, 8.507059e+37
        %v3087 = vand.u32 %v3075, 2147483648
        %v3088 = vor.u32 1.1754944e-38, %v3087
        %v3089 = vsel %vm3086, %v3088, %v3084
        %v3090 = vmul.f32 %v3065, %v3089
        %v3091 = vmin.f32 %v3090, 1.0
        %v3092 = vmax.f32 %v3091, -1.0
        %v3093 = vmul.f32 %v2651, %v2651
        %v3094 = vmin.f32 16.0, %v3093
        %v3095 = vmul.f32 %v3094, 2.1237322e-06
        %v3096 = vadd.f32 %v3095, 0.00028619796
        %v3097 = vmul.f32 %v3094, %v3096
        %v3098 = vadd.f32 %v3097, 0.0036580483
        %v3099 = vmul.f32 %v3094, %v3098
        %v3100 = vadd.f32 %v3099, 0.05243302
        %v3101 = vmul.f32 %v3094, %v3100
        %v3102 = vadd.f32 %v3101, 0.18741608
        %v3103 = vmul.f32 %v3094, %v3102
        %v3104 = vadd.f32 %v3103, 1.1283791
        %v3105 = vmul.f32 %v2651, %v3104
        %v3106 = vmul.f32 %v3094, 3.8918573e-05
        %v3107 = vadd.f32 %v3106, 0.001143296
        %v3108 = vmul.f32 %v3094, %v3107
        %v3109 = vadd.f32 %v3108, 0.014752088
        %v3110 = vmul.f32 %v3094, %v3109
        %v3111 = vadd.f32 %v3110, 0.112945676
        %v3112 = vmul.f32 %v3094, %v3111
        %v3113 = vadd.f32 %v3112, 0.4994258
        %v3114 = vmul.f32 %v3094, %v3113
        %v3115 = vadd.f32 %v3114, 1.0
        %v3116 = vrcp.pop %v3115
        %v3117 = vmul.f32 %v3115, %v3116
        %v3118 = vsub.f32 1.0, %v3117
        %v3119 = vmul.f32 %v3116, %v3118
        %v3120 = vadd.f32 %v3116, %v3119
        %vm3121 = vweird.f32 %v3115
        %vm3122 = vweird.f32 %v3116
        %vm3123 = vmor %vm3121, %vm3122
        %v3124 = vsel %vm3123, %v3116, %v3120
        %v3125 = vand.u32 2147483647, %v3115
        %vm3126 = vcmp.eq.f32.partialorder %v3125, 8.507059e+37
        %v3127 = vand.u32 %v3115, 2147483648
        %v3128 = vor.u32 1.1754944e-38, %v3127
        %v3129 = vsel %vm3126, %v3128, %v3124
        %v3130 = vmul.f32 %v3105, %v3129
        %v3131 = vmin.f32 %v3130, 1.0
        %v3132 = vmax.f32 %v3131, -1.0
        %v3133 = vmul.f32 %v2652, %v2652
        %v3134 = vmin.f32 16.0, %v3133
        %v3135 = vmul.f32 %v3134, 2.1237322e-06
        %v3136 = vadd.f32 %v3135, 0.00028619796
        %v3137 = vmul.f32 %v3134, %v3136
        %v3138 = vadd.f32 %v3137, 0.0036580483
        %v3139 = vmul.f32 %v3134, %v3138
        %v3140 = vadd.f32 %v3139, 0.05243302
        %v3141 = vmul.f32 %v3134, %v3140
        %v3142 = vadd.f32 %v3141, 0.18741608
        %v3143 = vmul.f32 %v3134, %v3142
        %v3144 = vadd.f32 %v3143, 1.1283791
        %v3145 = vmul.f32 %v2652, %v3144
        %v3146 = vmul.f32 %v3134, 3.8918573e-05
        %v3147 = vadd.f32 %v3146, 0.001143296
        %v3148 = vmul.f32 %v3134, %v3147
        %v3149 = vadd.f32 %v3148, 0.014752088
        %v3150 = vmul.f32 %v3134, %v3149
        %v3151 = vadd.f32 %v3150, 0.112945676
        %v3152 = vmul.f32 %v3134, %v3151
        %v3153 = vadd.f32 %v3152, 0.4994258
        %v3154 = vmul.f32 %v3134, %v3153
        %v3155 = vadd.f32 %v3154, 1.0
        %v3156 = vrcp.pop %v3155
        %v3157 = vmul.f32 %v3155, %v3156
        %v3158 = vsub.f32 1.0, %v3157
        %v3159 = vmul.f32 %v3156, %v3158
        %v3160 = vadd.f32 %v3156, %v3159
        %vm3161 = vweird.f32 %v3155
        %vm3162 = vweird.f32 %v3156
        %vm3163 = vmor %vm3161, %vm3162
        %v3164 = vsel %vm3163, %v3156, %v3160
        %v3165 = vand.u32 2147483647, %v3155
        %vm3166 = vcmp.eq.f32.partialorder %v3165, 8.507059e+37
        %v3167 = vand.u32 %v3155, 2147483648
        %v3168 = vor.u32 1.1754944e-38, %v3167
        %v3169 = vsel %vm3166, %v3168, %v3164
        %v3170 = vmul.f32 %v3145, %v3169
        %v3171 = vmin.f32 %v3170, 1.0
        %v3172 = vmax.f32 %v3171, -1.0
        %v3173 = vadd.f32 %v2692, 1.0
        %v3174 = vadd.f32 %v2732, 1.0
        %v3175 = vadd.f32 %v2772, 1.0
        %v3176 = vadd.f32 %v2812, 1.0
        %v3177 = vadd.f32 %v2852, 1.0
        %v3178 = vadd.f32 %v2892, 1.0
        %v3179 = vadd.f32 %v2932, 1.0
        %v3180 = vadd.f32 %v2972, 1.0
        %v3181 = vadd.f32 %v3012, 1.0
        %v3182 = vadd.f32 %v3052, 1.0
        %v3183 = vadd.f32 %v3092, 1.0
        %v3184 = vadd.f32 %v3132, 1.0
        %v3185 = vadd.f32 %v3172, 1.0
        %v3186 = vmul.f32 %v2627, %v3173
        %v3187 = vmul.f32 %v2628, %v3174
        %v3188 = vmul.f32 %v2629, %v3175
        %v3189 = vmul.f32 %v2630, %v3176
        %v3190 = vmul.f32 %v2631, %v3177
        %v3191 = vmul.f32 %v2632, %v3178
        %v3192 = vmul.f32 %v2633, %v3179
        %v3193 = vmul.f32 %v2634, %v3180
        %v3194 = vmul.f32 %v2635, %v3181
        %v3195 = vmul.f32 %v2636, %v3182
        %v3196 = vmul.f32 %v2637, %v3183
        %v3197 = vmul.f32 %v2638, %v3184
        %v3198 = vmul.f32 %v2639, %v3185
        %v3199 = vld [vmem:[%s10] sm:$0xff]
        %v3200 = vld [vmem:[%s10 + $0x8] sm:$0xff]
        %v3201 = vld [vmem:[%s10 + $0x10] sm:$0xff]
        %v3202 = vld [vmem:[%s10 + $0x18] sm:$0xff]
        %v3203 = vld [vmem:[%s11] sm:$0x1]
        %v3205 = vperm.slane %v3203, 0
        %v3208 = vsel %vm568, %v3186, 0
        %v3211 = vsel %vm568, %v3187, 0
        %v3214 = vsel %vm568, %v3188, 0
        %v3217 = vsel %vm568, %v3189, 0
        %v3220 = vsel %vm568, %v3190, 0
        %v3223 = vsel %vm568, %v3191, 0
        %v3226 = vsel %vm568, %v3192, 0
        %v3229 = vsel %vm568, %v3193, 0
        %v3232 = vsel %vm568, %v3194, 0
        %v3235 = vsel %vm568, %v3195, 0
        %v3238 = vsel %vm568, %v3196, 0
        %v3241 = vsel %vm568, %v3197, 0
        %v3244 = vsel %vm568, %v3198, 0
        %3246 = vmatpush.msra.mxu0 0.0
        %3247 = vmatpush.msra.mxu0 0.0
        %3248 = vmatpush.msra.mxu0 0.0
        %3249 = vmatpush.msra.mxu0 0.0
        %3250 = vmatpush.msra.mxu0 0.0
        %3251 = vmatpush.msra.mxu0 0.0
        %3252 = vmatpush.msra.mxu0 0.0
        %3253 = vmatpush.msra.mxu0 0.0
        %3254 = vmatpush.msra.mxu0 0.0
        %3255 = vmatpush.msra.mxu0 0.0
        %3256 = vmatpush.msra.mxu0 0.0
        %3257 = vmatpush.msra.mxu0 0.0
        %3258 = vmatpush.msra.mxu0 %v3202
        %3259 = vmatpush.msra.mxu0 %v3201
        %3260 = vmatpush.msra.mxu0 %v3200
        %3261 = vmatpush.msra.mxu0 %v3199
        %3262 = vmatmul.f32.gmra.mxu0 %v3208
        %v3263 = vpop.f32.mrf.mxu0
        %v3264 = vadd.f32 %v3205, %v3263
        %3265 = vmatmul.f32.gmra.mxu0 %v3211
        %v3266 = vpop.f32.mrf.mxu0
        %v3267 = vadd.f32 %v3205, %v3266
        %3268 = vmatmul.f32.gmra.mxu0 %v3214
        %v3269 = vpop.f32.mrf.mxu0
        %v3270 = vadd.f32 %v3205, %v3269
        %3271 = vmatmul.f32.gmra.mxu0 %v3217
        %v3272 = vpop.f32.mrf.mxu0
        %v3273 = vadd.f32 %v3205, %v3272
        %3274 = vmatmul.f32.gmra.mxu0 %v3220
        %v3275 = vpop.f32.mrf.mxu0
        %v3276 = vadd.f32 %v3205, %v3275
        %3277 = vmatmul.f32.gmra.mxu0 %v3223
        %v3278 = vpop.f32.mrf.mxu0
        %v3279 = vadd.f32 %v3205, %v3278
        %3280 = vmatmul.f32.gmra.mxu0 %v3226
        %v3281 = vpop.f32.mrf.mxu0
        %v3282 = vadd.f32 %v3205, %v3281
        %3283 = vmatmul.f32.gmra.mxu0 %v3229
        %v3284 = vpop.f32.mrf.mxu0
        %v3285 = vadd.f32 %v3205, %v3284
        %3286 = vmatmul.f32.gmra.mxu0 %v3232
        %v3287 = vpop.f32.mrf.mxu0
        %v3288 = vadd.f32 %v3205, %v3287
        %3289 = vmatmul.f32.gmra.mxu0 %v3235
        %v3290 = vpop.f32.mrf.mxu0
        %v3291 = vadd.f32 %v3205, %v3290
        %3292 = vmatmul.f32.gmra.mxu0 %v3238
        %v3293 = vpop.f32.mrf.mxu0
        %v3294 = vadd.f32 %v3205, %v3293
        %3295 = vmatmul.f32.gmra.mxu0 %v3241
        %v3296 = vpop.f32.mrf.mxu0
        %v3297 = vadd.f32 %v3205, %v3296
        %3298 = vmatmul.f32.gmra.mxu0 %v3244
        %v3299 = vpop.f32.mrf.mxu0
        %v3300 = vadd.f32 %v3205, %v3299
        %3301 = vdwg.mxu0
        %v3302 = vmul.f32 %v3264, 0.5
        %v3303 = vmul.f32 %v3267, 0.5
        %v3304 = vmul.f32 %v3270, 0.5
        %v3305 = vmul.f32 %v3273, 0.5
        %v3306 = vmul.f32 %v3276, 0.5
        %v3307 = vmul.f32 %v3279, 0.5
        %v3308 = vmul.f32 %v3282, 0.5
        %v3309 = vmul.f32 %v3285, 0.5
        %v3310 = vmul.f32 %v3288, 0.5
        %v3311 = vmul.f32 %v3291, 0.5
        %v3312 = vmul.f32 %v3294, 0.5
        %v3313 = vmul.f32 %v3297, 0.5
        %v3314 = vmul.f32 %v3300, 0.5
        %v3315 = vtanh.pop %v3302
        %v3316 = vtanh.pop %v3303
        %v3317 = vtanh.pop %v3304
        %v3318 = vtanh.pop %v3305
        %v3319 = vtanh.pop %v3306
        %v3320 = vtanh.pop %v3307
        %v3321 = vtanh.pop %v3308
        %v3322 = vtanh.pop %v3309
        %v3323 = vtanh.pop %v3310
        %v3324 = vtanh.pop %v3311
        %v3325 = vtanh.pop %v3312
        %v3326 = vtanh.pop %v3313
        %v3327 = vtanh.pop %v3314
        %v3328 = vadd.f32 %v3315, 1.0
        %v3329 = vadd.f32 %v3316, 1.0
        %v3330 = vadd.f32 %v3317, 1.0
        %v3331 = vadd.f32 %v3318, 1.0
        %v3332 = vadd.f32 %v3319, 1.0
        %v3333 = vadd.f32 %v3320, 1.0
        %v3334 = vadd.f32 %v3321, 1.0
        %v3335 = vadd.f32 %v3322, 1.0
        %v3336 = vadd.f32 %v3323, 1.0
        %v3337 = vadd.f32 %v3324, 1.0
        %v3338 = vadd.f32 %v3325, 1.0
        %v3339 = vadd.f32 %v3326, 1.0
        %v3340 = vadd.f32 %v3327, 1.0
        %v3341 = vmul.f32 %v3328, 0.5
        %v3342 = vmul.f32 %v3329, 0.5
        %v3343 = vmul.f32 %v3330, 0.5
        %v3344 = vmul.f32 %v3331, 0.5
        %v3345 = vmul.f32 %v3332, 0.5
        %v3346 = vmul.f32 %v3333, 0.5
        %v3347 = vmul.f32 %v3334, 0.5
        %v3348 = vmul.f32 %v3335, 0.5
        %v3349 = vmul.f32 %v3336, 0.5
        %v3350 = vmul.f32 %v3337, 0.5
        %v3351 = vmul.f32 %v3338, 0.5
        %v3352 = vmul.f32 %v3339, 0.5
        %v3353 = vmul.f32 %v3340, 0.5
        %vm3354 = vcmask 80896
        %3355 = vst.msk [vmem:[%s415] sm:$0xff] %vm3354, %v3341
        %3356 = vst.msk [vmem:[%s415 + $0x8] sm:$0xff] %vm3354, %v3342
        %3357 = vst.msk [vmem:[%s415 + $0x10] sm:$0xff] %vm3354, %v3343
        %3358 = vst.msk [vmem:[%s415 + $0x18] sm:$0xff] %vm3354, %v3344
        %3359 = vst.msk [vmem:[%s415 + $0x20] sm:$0xff] %vm3354, %v3345
        %3360 = vst.msk [vmem:[%s415 + $0x28] sm:$0xff] %vm3354, %v3346
        %3361 = vst.msk [vmem:[%s415 + $0x30] sm:$0xff] %vm3354, %v3347
        %3362 = vst.msk [vmem:[%s415 + $0x38] sm:$0xff] %vm3354, %v3348
        %3363 = vst.msk [vmem:[%s415 + $0x40] sm:$0xff] %vm3354, %v3349
        %3364 = vst.msk [vmem:[%s415 + $0x48] sm:$0xff] %vm3354, %v3350
        %3365 = vst.msk [vmem:[%s415 + $0x50] sm:$0xff] %vm3354, %v3351
        %3366 = vst.msk [vmem:[%s415 + $0x58] sm:$0xff] %vm3354, %v3352
        %3367 = vst.msk [vmem:[%s415 + $0x60] sm:$0xff] %vm3354, %v3353
        %s3368 = sand.u32 %s288, 1
        %s3369 = sand.u32 %s288, 1
        %s3370 = smul.addr %s3369, 104
        %s3371 = scalar_lea.vmem [#allocation2], %s3370
        // Predicated region
        $region69: #{emulator_forward.1} parent=67 // pred_check
          %p3372 = pneg %p298
        $region70: #{emulator_forward.1} parent=67 // pred_check_branch
          %3374 = sbr.rel (%p3372) target = $region72
        $region71: #{emulator_forward.1} parent=67 // pred_region
          %s3375 = smul.u32 13, %s23
          %s3376 = ssub.s32 25, %s3375
          %p3377 = scmp.lt.s32.totalorder %s3376, 13
          %s3378 = scalar_select %p3377, %s3376, 13
          %s3379 = smul.u32 8, %s3378
          %p3380 = scmp.ne.s32.totalorder 0, %s3379
          %s3381 = smul.addr %s3375, 8
          %s3382 = scalar_lea.vmem %s12, %s3381
          // Predicated region
          $region73: #{emulator_forward.1} parent=71 // pred_check
            %p3383 = pneg %p3380
          $region74: #{emulator_forward.1} parent=71 // pred_check_branch
            %3385 = sbr.rel (%p3383) target = $region76
          $region75: #{emulator_forward.1} parent=71 // pred_region
            // Predicated region
            $region77: #{emulator_forward.1} parent=75 // pred_check
              _
            $region78: #{emulator_forward.1} parent=75 // pred_check_branch
              %3387 = sbr.rel (0) target = $region80
            $region79: #{emulator_forward.1} parent=75 // pred_region
              // Predicated region
              $region99: #{emulator_forward.1} parent=79 // pred_check
                _
              $region100: #{emulator_forward.1} parent=79 // pred_check_branch
                %3462 = sbr.rel (0) target = $region102
              $region101: #{emulator_forward.1} parent=79 // pred_region
                %s3463 = sdiv.u32.pop %s3378, 13
                %s3464 = srem.u32.pop %s3378, 13
                // While loop
                $region103: #{emulator_forward.1} parent=101 // loop_pre_header
                  _
                $region104: #{emulator_forward.1} parent=101 // loop_header
                  %s3466 = sphi 0, %s3468
                  %p3467 = scmp.ge.s32.totalorder %s3466, %s3463
                  %s3471 = sphi 0, %s3502
                  %s3472 = sphi %s3371, %s3505
                  %s3473 = sphi %s3382, %s3506
                $region105: #{emulator_forward.1} parent=101 // loop_header_branch
                  %3470 = sbr.rel (%p3467) target = $region109
                $region106: #{emulator_forward.1} parent=101 // loop_body
                  %v3474 = vld [vmem:[%s3472] sm:$0xff]
                  %3475 = vst [vmem:[%s3473] sm:$0xff] %v3474
                  %v3476 = vld [vmem:[%s3472 + $0x8] sm:$0xff]
                  %3477 = vst [vmem:[%s3473 + $0x8] sm:$0xff] %v3476
                  %v3478 = vld [vmem:[%s3472 + $0x10] sm:$0xff]
                  %3479 = vst [vmem:[%s3473 + $0x10] sm:$0xff] %v3478
                  %v3480 = vld [vmem:[%s3472 + $0x18] sm:$0xff]
                  %3481 = vst [vmem:[%s3473 + $0x18] sm:$0xff] %v3480
                  %v3482 = vld [vmem:[%s3472 + $0x20] sm:$0xff]
                  %3483 = vst [vmem:[%s3473 + $0x20] sm:$0xff] %v3482
                  %v3484 = vld [vmem:[%s3472 + $0x28] sm:$0xff]
                  %3485 = vst [vmem:[%s3473 + $0x28] sm:$0xff] %v3484
                  %v3486 = vld [vmem:[%s3472 + $0x30] sm:$0xff]
                  %3487 = vst [vmem:[%s3473 + $0x30] sm:$0xff] %v3486
                  %v3488 = vld [vmem:[%s3472 + $0x38] sm:$0xff]
                  %3489 = vst [vmem:[%s3473 + $0x38] sm:$0xff] %v3488
                  %v3490 = vld [vmem:[%s3472 + $0x40] sm:$0xff]
                  %3491 = vst [vmem:[%s3473 + $0x40] sm:$0xff] %v3490
                  %v3492 = vld [vmem:[%s3472 + $0x48] sm:$0xff]
                  %3493 = vst [vmem:[%s3473 + $0x48] sm:$0xff] %v3492
                  %v3494 = vld [vmem:[%s3472 + $0x50] sm:$0xff]
                  %3495 = vst [vmem:[%s3473 + $0x50] sm:$0xff] %v3494
                  %v3496 = vld [vmem:[%s3472 + $0x58] sm:$0xff]
                  %3497 = vst [vmem:[%s3473 + $0x58] sm:$0xff] %v3496
                  %v3498 = vld [vmem:[%s3472 + $0x60] sm:$0xff]
                  %3499 = vst [vmem:[%s3473 + $0x60] sm:$0xff] %v3498
                  %s3500 = sadd.s32 1, %s3471
                  %p3501 = scmp.ge.s32.totalorder %s3500, %s3463
                  %s3502 = scalar_select %p3501, 0, %s3500
                  %s3503 = smul.u32 %s3502, 104
                  %s3504 = smul.u32 %s3502, 104
                  %s3505 = scalar_lea.vmem %s3371, %s3503 [#allocation2]
                  %s3506 = scalar_lea.vmem %s3382, %s3504
                $region107: #{emulator_forward.1} parent=101 // loop_footer
                  %s3468 = sadd.s32 %s3466, 1
                $region108: #{emulator_forward.1} parent=101 // loop_footer_branch
                  %3465 = sbr.rel target = $region104
                $region109: #{emulator_forward.1} parent=101 // loop_exit
                  _
                %s3507 = sdiv.u32.pop %s3378, 13
                %s3508 = srem.u32.pop %s3378, 13
                %s3509 = smul.u32 %s3507, 13
                %s3510 = smul.u32 8, %s3509
                %s3511 = scalar_lea.vmem %s3371, %s3510 [#allocation2]
                %s3512 = smul.u32 8, %s3509
                %s3513 = scalar_lea.vmem %s3382, %s3512
                // While loop
                $region110: #{emulator_forward.1} parent=101 // loop_pre_header
                  _
                $region111: #{emulator_forward.1} parent=101 // loop_header
                  %s3515 = sphi 0, %s3517
                  %p3516 = scmp.ge.s32.totalorder %s3515, %s3508
                  %s3520 = sphi 0, %s3527
                  %s3521 = sphi %s3511, %s3530
                  %s3522 = sphi %s3513, %s3531
                $region112: #{emulator_forward.1} parent=101 // loop_header_branch
                  %3519 = sbr.rel (%p3516) target = $region116
                $region113: #{emulator_forward.1} parent=101 // loop_body
                  %v3523 = vld [vmem:[%s3521] sm:$0xff]
                  %3524 = vst [vmem:[%s3522] sm:$0xff] %v3523
                  %s3525 = sadd.s32 1, %s3520
                  %p3526 = scmp.ge.s32.totalorder %s3525, %s3508
                  %s3527 = scalar_select %p3526, 0, %s3525
                  %s3528 = smul.u32 %s3527, 8
                  %s3529 = smul.u32 %s3527, 8
                  %s3530 = scalar_lea.vmem %s3511, %s3528 [#allocation2]
                  %s3531 = scalar_lea.vmem %s3513, %s3529
                $region114: #{emulator_forward.1} parent=101 // loop_footer
                  %s3517 = sadd.s32 %s3515, 1
                $region115: #{emulator_forward.1} parent=101 // loop_footer_branch
                  %3514 = sbr.rel target = $region111
                $region116: #{emulator_forward.1} parent=101 // loop_exit
                  _
              $region102: #{emulator_forward.1} parent=79 // pred_fallthru
                _
              // Predicated region
              $region117: #{emulator_forward.1} parent=79 // pred_check
                _
              $region118: #{emulator_forward.1} parent=79 // pred_check_branch
                %3533 = sbr.rel target = $region120
              $region119: #{emulator_forward.1} parent=79 // pred_region
                _
              $region120: #{emulator_forward.1} parent=79 // pred_fallthru
                _
            $region80: #{emulator_forward.1} parent=75 // pred_fallthru
              _
            // Predicated region
            $region81: #{emulator_forward.1} parent=75 // pred_check
              _
            $region82: #{emulator_forward.1} parent=75 // pred_check_branch
              %3389 = sbr.rel target = $region84
            $region83: #{emulator_forward.1} parent=75 // pred_region
              %s3391 = ssub.s32 256, 1
              %s3392 = sdiv.u32.pop %s3378, 13
              %s3393 = srem.u32.pop %s3378, 13
              // While loop
              $region85: #{emulator_forward.1} parent=83 // loop_pre_header
                _
              $region86: #{emulator_forward.1} parent=83 // loop_header
                %s3395 = sphi 0, %s3397
                %p3396 = scmp.ge.s32.totalorder %s3395, %s3392
                %s3400 = sphi 0, %s3431
                %s3401 = sphi %s3371, %s3434
                %s3402 = sphi %s3382, %s3435
              $region87: #{emulator_forward.1} parent=83 // loop_header_branch
                %3399 = sbr.rel (%p3396) target = $region91
              $region88: #{emulator_forward.1} parent=83 // loop_body
                %v3403 = vld [vmem:[%s3401] sm:%s3391]
                %3404 = vst [vmem:[%s3402] sm:%s3391] %v3403
                %v3405 = vld [vmem:[%s3401 + $0x8] sm:%s3391]
                %3406 = vst [vmem:[%s3402 + $0x8] sm:%s3391] %v3405
                %v3407 = vld [vmem:[%s3401 + $0x10] sm:%s3391]
                %3408 = vst [vmem:[%s3402 + $0x10] sm:%s3391] %v3407
                %v3409 = vld [vmem:[%s3401 + $0x18] sm:%s3391]
                %3410 = vst [vmem:[%s3402 + $0x18] sm:%s3391] %v3409
                %v3411 = vld [vmem:[%s3401 + $0x20] sm:%s3391]
                %3412 = vst [vmem:[%s3402 + $0x20] sm:%s3391] %v3411
                %v3413 = vld [vmem:[%s3401 + $0x28] sm:%s3391]
                %3414 = vst [vmem:[%s3402 + $0x28] sm:%s3391] %v3413
                %v3415 = vld [vmem:[%s3401 + $0x30] sm:%s3391]
                %3416 = vst [vmem:[%s3402 + $0x30] sm:%s3391] %v3415
                %v3417 = vld [vmem:[%s3401 + $0x38] sm:%s3391]
                %3418 = vst [vmem:[%s3402 + $0x38] sm:%s3391] %v3417
                %v3419 = vld [vmem:[%s3401 + $0x40] sm:%s3391]
                %3420 = vst [vmem:[%s3402 + $0x40] sm:%s3391] %v3419
                %v3421 = vld [vmem:[%s3401 + $0x48] sm:%s3391]
                %3422 = vst [vmem:[%s3402 + $0x48] sm:%s3391] %v3421
                %v3423 = vld [vmem:[%s3401 + $0x50] sm:%s3391]
                %3424 = vst [vmem:[%s3402 + $0x50] sm:%s3391] %v3423
                %v3425 = vld [vmem:[%s3401 + $0x58] sm:%s3391]
                %3426 = vst [vmem:[%s3402 + $0x58] sm:%s3391] %v3425
                %v3427 = vld [vmem:[%s3401 + $0x60] sm:%s3391]
                %3428 = vst [vmem:[%s3402 + $0x60] sm:%s3391] %v3427
                %s3429 = sadd.s32 1, %s3400
                %p3430 = scmp.ge.s32.totalorder %s3429, %s3392
                %s3431 = scalar_select %p3430, 0, %s3429
                %s3432 = smul.u32 %s3431, 104
                %s3433 = smul.u32 %s3431, 104
                %s3434 = scalar_lea.vmem %s3371, %s3432 [#allocation2]
                %s3435 = scalar_lea.vmem %s3382, %s3433
              $region89: #{emulator_forward.1} parent=83 // loop_footer
                %s3397 = sadd.s32 %s3395, 1
              $region90: #{emulator_forward.1} parent=83 // loop_footer_branch
                %3394 = sbr.rel target = $region86
              $region91: #{emulator_forward.1} parent=83 // loop_exit
                _
              %s3436 = sdiv.u32.pop %s3378, 13
              %s3437 = srem.u32.pop %s3378, 13
              %s3438 = smul.u32 %s3436, 13
              %s3439 = smul.u32 8, %s3438
              %s3440 = scalar_lea.vmem %s3371, %s3439 [#allocation2]
              %s3441 = smul.u32 8, %s3438
              %s3442 = scalar_lea.vmem %s3382, %s3441
              // While loop
              $region92: #{emulator_forward.1} parent=83 // loop_pre_header
                _
              $region93: #{emulator_forward.1} parent=83 // loop_header
                %s3444 = sphi 0, %s3446
                %p3445 = scmp.ge.s32.totalorder %s3444, %s3437
                %s3449 = sphi 0, %s3456
                %s3450 = sphi %s3440, %s3459
                %s3451 = sphi %s3442, %s3460
              $region94: #{emulator_forward.1} parent=83 // loop_header_branch
                %3448 = sbr.rel (%p3445) target = $region98
              $region95: #{emulator_forward.1} parent=83 // loop_body
                %v3452 = vld [vmem:[%s3450] sm:%s3391]
                %3453 = vst [vmem:[%s3451] sm:%s3391] %v3452
                %s3454 = sadd.s32 1, %s3449
                %p3455 = scmp.ge.s32.totalorder %s3454, %s3437
                %s3456 = scalar_select %p3455, 0, %s3454
                %s3457 = smul.u32 %s3456, 8
                %s3458 = smul.u32 %s3456, 8
                %s3459 = scalar_lea.vmem %s3440, %s3457 [#allocation2]
                %s3460 = scalar_lea.vmem %s3442, %s3458
              $region96: #{emulator_forward.1} parent=83 // loop_footer
                %s3446 = sadd.s32 %s3444, 1
              $region97: #{emulator_forward.1} parent=83 // loop_footer_branch
                %3443 = sbr.rel target = $region93
              $region98: #{emulator_forward.1} parent=83 // loop_exit
                _
            $region84: #{emulator_forward.1} parent=75 // pred_fallthru
              _
          $region76: #{emulator_forward.1} parent=71 // pred_fallthru
            _
          %3534 = vnop
        $region72: #{emulator_forward.1} parent=67 // pred_fallthru
          _
      $region68: #{emulator_forward.1} parent=5 // pred_fallthru
        _
      %p3535 = scmp.le.s32.totalorder 2, %s18
      // Predicated region
      $region121: #{emulator_forward.1} parent=5 // pred_check
        %p3536 = pneg %p3535
      $region122: #{emulator_forward.1} parent=5 // pred_check_branch
        %3538 = sbr.rel (%p3536) target = $region124
      $region123: #{emulator_forward.1} parent=5 // pred_region
        %s3539 = ssub.s32 %s18, 2
        // Predicated region
        $region125: #{emulator_forward.1} parent=123 // pred_check
          %p3540 = pneg %p304
        $region126: #{emulator_forward.1} parent=123 // pred_check_branch
          %3542 = sbr.rel (%p3540) target = $region128
        $region127: #{emulator_forward.1} parent=123 // pred_region
          %s3543 = sand.u32 %s289, 1
          %s3544 = sand.u32 %s289, 1
          %s3545 = smul.addr %s3544, 104
          %s3546 = scalar_lea.vmem [#allocation2], %s3545
        $region128: #{emulator_forward.1} parent=123 // pred_fallthru
          _
      $region124: #{emulator_forward.1} parent=5 // pred_fallthru
        _
    $region6: #{emulator_forward.1} parent=1 // loop_footer
      %s22 = sadd.s32 1, %s18
    $region7: #{emulator_forward.1} parent=1 // loop_footer_branch
      %17 = sbr.rel target = $region3
    $region8: #{emulator_forward.1} parent=1 // loop_exit
      _

</llo_original>
